<compile_context>
chip_gen: v6e
topology: v6e:2x2x1
jax: 0.10.0
libtpu: 0.0.40
codegen_flags: <defaults>
</compile_context>

<pallas_src>
import functools

import jax
import jax.numpy as jnp
from jax import lax
from jax.experimental import pallas as pl
from jax.experimental.pallas import tpu as pltpu


# -----------------------------------------------------------------------------
# Fused Pallas kernel
# -----------------------------------------------------------------------------
def birnn_kernel(*refs, T, B, H, num_layers):
    """Fused bidirectional LSTM stack + final Linear.

    Ref layout (all VMEM-resident, no grid):
      refs[0]                       x_flat (T*B, input_size)   time-major, flat
      refs[1+3l : 4+3l], l=0..L-1   (w_ih (2, D_l, 4H), w_hh (2, H, 4H),
                                     b (2, 1, 4H))   -- stacked [fwd, rev]
      refs[1+3L], refs[2+3L]        fc_w (2H, C), fc_b (1, C)
      refs[3+3L]                    out (B, C)
    Gate order follows PyTorch nn.LSTM: [i, f, g, o].
    """
    x_ref = refs[0]
    layer_refs = [refs[1 + 3 * l: 4 + 3 * l] for l in range(num_layers)]
    fc_w_ref = refs[1 + 3 * num_layers]
    fc_b_ref = refs[2 + 3 * num_layers]
    out_ref = refs[3 + 3 * num_layers]

    def lstm_cell(gates, c_prev):
        i = jax.nn.sigmoid(gates[:, 0 * H:1 * H])
        f = jax.nn.sigmoid(gates[:, 1 * H:2 * H])
        g = jnp.tanh(gates[:, 2 * H:3 * H])
        o = jax.nn.sigmoid(gates[:, 3 * H:4 * H])
        c = f * c_prev + i * g
        h = o * jnp.tanh(c)
        return h, c

    def project(parts, w, b):
        """sum_k parts[k] @ w[rows_k] + b  (hoisted input projection)."""
        acc = b                                     # (1, 4H) broadcast, once
        off = 0
        for p in parts:
            d = p.shape[-1]
            acc = acc + jnp.dot(p, w[off:off + d],
                                preferred_element_type=jnp.float32)
            off += d
        return acc

    def scan_dir(proj, w_hh, reverse):
        """Statically-unrolled T-step recurrence.

        proj: (T*B, 4H) hoisted input projection (+bias), original time order.
        Returns list of T hidden states (B, H), indexed by original time.
        """
        h = jnp.zeros((B, H), jnp.float32)
        c = jnp.zeros((B, H), jnp.float32)
        outs = [None] * T
        order = range(T - 1, -1, -1) if reverse else range(T)
        for t in order:                             # static unroll (small T)
            gates = proj[t * B:(t + 1) * B] + jnp.dot(
                h, w_hh, preferred_element_type=jnp.float32)
            h, c = lstm_cell(gates, c)
            outs[t] = h
        return outs

    parts = [x_ref[...]]                            # layer-0 input: (T*B, D_in)
    fwd_last = None
    h_rev_last = None
    for l in range(num_layers):
        w_ih = layer_refs[l][0][...]                # (2, D_l, 4H)
        w_hh = layer_refs[l][1][...]                # (2, H, 4H)
        b = layer_refs[l][2][...]                   # (2, 1, 4H)
        last_layer = l == num_layers - 1

        proj_f = project(parts, w_ih[0], b[0])      # (T*B, 4H), hoisted
        fwd = scan_dir(proj_f, w_hh[0], reverse=False)

        if last_layer:
            # Only out[:, -1, :] feeds the fc.  The reverse hidden at the last
            # time step is exactly one cell step from zero state on x[T-1].
            last_parts = [p[(T - 1) * B:T * B] for p in parts]
            gates_r = project(last_parts, w_ih[1], b[1])
            h_rev_last, _ = lstm_cell(gates_r, jnp.zeros((B, H), jnp.float32))
            fwd_last = fwd[T - 1]
        else:
            proj_r = project(parts, w_ih[1], b[1])
            rev = scan_dir(proj_r, w_hh[1], reverse=True)
            # Keep fwd/rev halves as separate flat (T*B, H) values; the next
            # layer's W_ih rows are split accordingly (no lane-dim concat).
            parts = [jnp.concatenate(fwd, axis=0),
                     jnp.concatenate(rev, axis=0)]

    # Final fc on out[:, -1, :] = [h_fwd_last, h_rev_last]; fc weight row-split.
    fc_w = fc_w_ref[...]                            # (2H, C)
    out_ref[...] = (jnp.dot(fwd_last, fc_w[:H],
                            preferred_element_type=jnp.float32)
                    + jnp.dot(h_rev_last, fc_w[H:],
                              preferred_element_type=jnp.float32)
                    + fc_b_ref[...])


# -----------------------------------------------------------------------------
# Wrapper
# -----------------------------------------------------------------------------
def birnn_forward(x, params, hidden, num_layers, num_classes):
    """x: (B, T, input_size), batch_first — same convention as the PyTorch module."""
    B, T, D = x.shape
    # Pad batch to a multiple of 8 so (B, *) tiles fill vreg sublanes / MXU rows.
    Bp = ((B + 7) // 8) * 8
    xp = jnp.pad(x, ((0, Bp - B), (0, 0), (0, 0)))
    x_flat = jnp.transpose(xp, (1, 0, 2)).reshape(T * Bp, D)  # time-major, flat

    args = [x_flat]
    for layer in range(num_layers):
        p = params["lstm"][layer]
        w_ih = jnp.stack([p["fwd"][0].T, p["rev"][0].T])        # (2, D_l, 4H)
        w_hh = jnp.stack([p["fwd"][1].T, p["rev"][1].T])        # (2, H, 4H)
        b = jnp.stack([(p["fwd"][2] + p["fwd"][3]).reshape(1, 4 * hidden),
                       (p["rev"][2] + p["rev"][3]).reshape(1, 4 * hidden)])
        args += [w_ih, w_hh, b]
    w_fc, b_fc = params["fc"]
    args += [w_fc.T, b_fc.reshape(1, num_classes)]

    out = pl.pallas_call(
        functools.partial(birnn_kernel, T=T, B=Bp, H=hidden,
                          num_layers=num_layers),
        out_shape=jax.ShapeDtypeStruct((Bp, num_classes), jnp.float32),
        in_specs=[pl.BlockSpec(memory_space=pltpu.MemorySpace.VMEM)] * len(args),
        out_specs=pl.BlockSpec(memory_space=pltpu.MemorySpace.VMEM),
    )(*args)
    return out[:B]


# -----------------------------------------------------------------------------
# Pure-JAX reference (for correctness check of the Pallas lowering)
# -----------------------------------------------------------------------------
def lstm_layer_ref(x_tbf, w_ih, w_hh, b_ih, b_hh, hidden):
    _, B, _ = x_tbf.shape

    def step(carry, x_t):
        h, c = carry
        gates = x_t @ w_ih.T + h @ w_hh.T + b_ih + b_hh
        i = jax.nn.sigmoid(gates[:, :hidden])
        f = jax.nn.sigmoid(gates[:, hidden:2 * hidden])
        g = jnp.tanh(gates[:, 2 * hidden:3 * hidden])
        o = jax.nn.sigmoid(gates[:, 3 * hidden:])
        c = f * c + i * g
        h = o * jnp.tanh(c)
        return (h, c), h

    init = (jnp.zeros((B, hidden), jnp.float32),
            jnp.zeros((B, hidden), jnp.float32))
    _, ys = lax.scan(step, init, x_tbf)
    return ys


def birnn_ref(x, params, hidden, num_layers, num_classes):
    B, T, _ = x.shape
    seq = jnp.transpose(x, (1, 0, 2))
    for layer in range(num_layers):
        p = params["lstm"][layer]
        y_fwd = lstm_layer_ref(seq, *p["fwd"], hidden)
        y_rev = jnp.flip(lstm_layer_ref(jnp.flip(seq, axis=0), *p["rev"], hidden),
                         axis=0)
        seq = jnp.concatenate([y_fwd, y_rev], axis=-1)
    last = seq[T - 1]
    w_fc, b_fc = params["fc"]
    return last @ w_fc.T + b_fc


# -----------------------------------------------------------------------------
# Deterministic parameter init (same shapes as nn.LSTM / nn.Linear in __init__)
# -----------------------------------------------------------------------------
def init_params(key, input_size, hidden, num_layers, num_classes):
    k = 1.0 / jnp.sqrt(jnp.float32(hidden))
    layers = []
    for layer in range(num_layers):
        in_dim = input_size if layer == 0 else 2 * hidden
        dirs = {}
        for d in ("fwd", "rev"):
            key, k0, k1, k2, k3 = jax.random.split(key, 5)
            w_ih = jax.random.uniform(k0, (4 * hidden, in_dim), jnp.float32, -k, k)
            w_hh = jax.random.uniform(k1, (4 * hidden, hidden), jnp.float32, -k, k)
            b_ih = jax.random.uniform(k2, (4 * hidden,), jnp.float32, -k, k)
            b_hh = jax.random.uniform(k3, (4 * hidden,), jnp.float32, -k, k)
            dirs[d] = (w_ih, w_hh, b_ih, b_hh)
        layers.append(dirs)
    key, kf1, kf2 = jax.random.split(key, 3)
    kf = 1.0 / jnp.sqrt(jnp.float32(2 * hidden))
    w_fc = jax.random.uniform(kf1, (num_classes, 2 * hidden), jnp.float32, -kf, kf)
    b_fc = jax.random.uniform(kf2, (num_classes,), jnp.float32, -kf, kf)
    return {"lstm": layers, "fc": (w_fc, b_fc)}


# -----------------------------------------------------------------------------
if __name__ == "__main__":
    # Small shapes consistent with the module's forward (MNIST-row-style input).
    batch = 2
    seq_len = 8
    input_size = 28
    hidden_size = 32
    num_layers = 2
    num_classes = 10

    key = jax.random.PRNGKey(0)
    key, xkey = jax.random.split(key)
    x = jax.random.normal(xkey, (batch, seq_len, input_size), jnp.float32)

    params = init_params(key, input_size, hidden_size, num_layers, num_classes)

    out = birnn_forward(x, params, hidden_size, num_layers, num_classes)
    out = jax.block_until_ready(out)

    ref = birnn_ref(x, params, hidden_size, num_layers, num_classes)
    assert out.shape == (batch, num_classes)
    assert jnp.allclose(out, ref, atol=2e-3, rtol=2e-3), (out, ref)

    print("KERNEL_OK")
</pallas_src>

<mosaic_0001>
module attributes {stable_mosaic.version = 11 : i64} {
  func.func @birnn_kernel(%arg0: memref<64x28xf32, #tpu.memory_space<vmem>>, %arg1: memref<2x28x128xf32, #tpu.memory_space<vmem>>, %arg2: memref<2x32x128xf32, #tpu.memory_space<vmem>>, %arg3: memref<2x1x128xf32, #tpu.memory_space<vmem>>, %arg4: memref<2x64x128xf32, #tpu.memory_space<vmem>>, %arg5: memref<2x32x128xf32, #tpu.memory_space<vmem>>, %arg6: memref<2x1x128xf32, #tpu.memory_space<vmem>>, %arg7: memref<64x10xf32, #tpu.memory_space<vmem>>, %arg8: memref<1x10xf32, #tpu.memory_space<vmem>>, %arg9: memref<8x10xf32, #tpu.memory_space<vmem>>) attributes {dimension_semantics = [], scalar_prefetch = 0 : i64, scratch_operands = 0 : i64, tpu.core_type = #tpu.core_type<tc>} {
    %c0 = arith.constant 0 : index
    %c0_0 = arith.constant 0 : index
    %0 = vector.load %arg0[%c0, %c0_0] : memref<64x28xf32, #tpu.memory_space<vmem>>, vector<64x28xf32>
    %c0_1 = arith.constant 0 : index
    %c0_2 = arith.constant 0 : index
    %c0_3 = arith.constant 0 : index
    %1 = vector.load %arg1[%c0_1, %c0_2, %c0_3] : memref<2x28x128xf32, #tpu.memory_space<vmem>>, vector<2x28x128xf32>
    %c0_4 = arith.constant 0 : index
    %c0_5 = arith.constant 0 : index
    %c0_6 = arith.constant 0 : index
    %2 = vector.load %arg2[%c0_4, %c0_5, %c0_6] : memref<2x32x128xf32, #tpu.memory_space<vmem>>, vector<2x32x128xf32>
    %c0_7 = arith.constant 0 : index
    %c0_8 = arith.constant 0 : index
    %c0_9 = arith.constant 0 : index
    %3 = vector.load %arg3[%c0_7, %c0_8, %c0_9] : memref<2x1x128xf32, #tpu.memory_space<vmem>>, vector<2x1x128xf32>
    %4 = vector.extract_strided_slice %1 {offsets = [0, 0, 0], sizes = [1, 28, 128], strides = [1, 1, 1]} : vector<2x28x128xf32> to vector<1x28x128xf32>
    %5 = vector.shape_cast %4 : vector<1x28x128xf32> to vector<28x128xf32>
    %6 = vector.extract_strided_slice %3 {offsets = [0, 0, 0], sizes = [1, 1, 128], strides = [1, 1, 1]} : vector<2x1x128xf32> to vector<1x1x128xf32>
    %7 = vector.shape_cast %6 : vector<1x1x128xf32> to vector<1x128xf32>
    %cst = arith.constant dense<0.000000e+00> : vector<64x128xf32>
    %8 = tpu.matmul %0, %5, %cst {dimension_numbers = #tpu.dot_dimension_numbers<[1], [0], [0], [1], [0, 0, 1, 1], [], []>} : vector<64x28xf32>, vector<28x128xf32>, vector<64x128xf32> -> vector<64x128xf32>
    %9 = vector.broadcast %7 : vector<1x128xf32> to vector<64x128xf32>
    %10 = arith.addf %9, %8 : vector<64x128xf32>
    %11 = vector.extract_strided_slice %2 {offsets = [0, 0, 0], sizes = [1, 32, 128], strides = [1, 1, 1]} : vector<2x32x128xf32> to vector<1x32x128xf32>
    %12 = vector.shape_cast %11 : vector<1x32x128xf32> to vector<32x128xf32>
    %cst_10 = arith.constant 0.000000e+00 : f32
    %13 = vector.broadcast %cst_10 : f32 to vector<8x32xf32>
    %cst_11 = arith.constant 0.000000e+00 : f32
    %14 = vector.broadcast %cst_11 : f32 to vector<8x32xf32>
    %15 = vector.extract_strided_slice %10 {offsets = [0, 0], sizes = [8, 128], strides = [1, 1]} : vector<64x128xf32> to vector<8x128xf32>
    %cst_12 = arith.constant dense<0.000000e+00> : vector<8x128xf32>
    %16 = tpu.matmul %13, %12, %cst_12 {dimension_numbers = #tpu.dot_dimension_numbers<[1], [0], [0], [1], [0, 0, 1, 1], [], []>} : vector<8x32xf32>, vector<32x128xf32>, vector<8x128xf32> -> vector<8x128xf32>
    %17 = arith.addf %15, %16 : vector<8x128xf32>
    %18 = vector.extract_strided_slice %17 {offsets = [0, 0], sizes = [8, 32], strides = [1, 1]} : vector<8x128xf32> to vector<8x32xf32>
    %19 = arith.negf %18 : vector<8x32xf32>
    %20 = math.exp %19 : vector<8x32xf32>
    %cst_13 = arith.constant 1.000000e+00 : f32
    %21 = vector.broadcast %cst_13 : f32 to vector<8x32xf32>
    %22 = arith.addf %21, %20 : vector<8x32xf32>
    %23 = arith.divf %21, %22 : vector<8x32xf32>
    %24 = vector.extract_strided_slice %17 {offsets = [0, 32], sizes = [8, 32], strides = [1, 1]} : vector<8x128xf32> to vector<8x32xf32>
    %25 = arith.negf %24 : vector<8x32xf32>
    %26 = math.exp %25 : vector<8x32xf32>
    %cst_14 = arith.constant 1.000000e+00 : f32
    %27 = vector.broadcast %cst_14 : f32 to vector<8x32xf32>
    %28 = arith.addf %27, %26 : vector<8x32xf32>
    %29 = arith.divf %27, %28 : vector<8x32xf32>
    %30 = vector.extract_strided_slice %17 {offsets = [0, 64], sizes = [8, 32], strides = [1, 1]} : vector<8x128xf32> to vector<8x32xf32>
    %31 = math.tanh %30 : vector<8x32xf32>
    %32 = vector.extract_strided_slice %17 {offsets = [0, 96], sizes = [8, 32], strides = [1, 1]} : vector<8x128xf32> to vector<8x32xf32>
    %33 = arith.negf %32 : vector<8x32xf32>
    %34 = math.exp %33 : vector<8x32xf32>
    %cst_15 = arith.constant 1.000000e+00 : f32
    %35 = vector.broadcast %cst_15 : f32 to vector<8x32xf32>
    %36 = arith.addf %35, %34 : vector<8x32xf32>
    %37 = arith.divf %35, %36 : vector<8x32xf32>
    %38 = arith.mulf %29, %14 : vector<8x32xf32>
    %39 = arith.mulf %23, %31 : vector<8x32xf32>
    %40 = arith.addf %38, %39 : vector<8x32xf32>
    %41 = math.tanh %40 : vector<8x32xf32>
    %42 = arith.mulf %37, %41 : vector<8x32xf32>
    %43 = vector.extract_strided_slice %10 {offsets = [8, 0], sizes = [8, 128], strides = [1, 1]} : vector<64x128xf32> to vector<8x128xf32>
    %cst_16 = arith.constant dense<0.000000e+00> : vector<8x128xf32>
    %44 = tpu.matmul %42, %12, %cst_16 {dimension_numbers = #tpu.dot_dimension_numbers<[1], [0], [0], [1], [0, 0, 1, 1], [], []>} : vector<8x32xf32>, vector<32x128xf32>, vector<8x128xf32> -> vector<8x128xf32>
    %45 = arith.addf %43, %44 : vector<8x128xf32>
    %46 = vector.extract_strided_slice %45 {offsets = [0, 0], sizes = [8, 32], strides = [1, 1]} : vector<8x128xf32> to vector<8x32xf32>
    %47 = arith.negf %46 : vector<8x32xf32>
    %48 = math.exp %47 : vector<8x32xf32>
    %cst_17 = arith.constant 1.000000e+00 : f32
    %49 = vector.broadcast %cst_17 : f32 to vector<8x32xf32>
    %50 = arith.addf %49, %48 : vector<8x32xf32>
    %51 = arith.divf %49, %50 : vector<8x32xf32>
    %52 = vector.extract_strided_slice %45 {offsets = [0, 32], sizes = [8, 32], strides = [1, 1]} : vector<8x128xf32> to vector<8x32xf32>
    %53 = arith.negf %52 : vector<8x32xf32>
    %54 = math.exp %53 : vector<8x32xf32>
    %cst_18 = arith.constant 1.000000e+00 : f32
    %55 = vector.broadcast %cst_18 : f32 to vector<8x32xf32>
    %56 = arith.addf %55, %54 : vector<8x32xf32>
    %57 = arith.divf %55, %56 : vector<8x32xf32>
    %58 = vector.extract_strided_slice %45 {offsets = [0, 64], sizes = [8, 32], strides = [1, 1]} : vector<8x128xf32> to vector<8x32xf32>
    %59 = math.tanh %58 : vector<8x32xf32>
    %60 = vector.extract_strided_slice %45 {offsets = [0, 96], sizes = [8, 32], strides = [1, 1]} : vector<8x128xf32> to vector<8x32xf32>
    %61 = arith.negf %60 : vector<8x32xf32>
    %62 = math.exp %61 : vector<8x32xf32>
    %cst_19 = arith.constant 1.000000e+00 : f32
    %63 = vector.broadcast %cst_19 : f32 to vector<8x32xf32>
    %64 = arith.addf %63, %62 : vector<8x32xf32>
    %65 = arith.divf %63, %64 : vector<8x32xf32>
    %66 = arith.mulf %57, %40 : vector<8x32xf32>
    %67 = arith.mulf %51, %59 : vector<8x32xf32>
    %68 = arith.addf %66, %67 : vector<8x32xf32>
    %69 = math.tanh %68 : vector<8x32xf32>
    %70 = arith.mulf %65, %69 : vector<8x32xf32>
    %71 = vector.extract_strided_slice %10 {offsets = [16, 0], sizes = [8, 128], strides = [1, 1]} : vector<64x128xf32> to vector<8x128xf32>
    %cst_20 = arith.constant dense<0.000000e+00> : vector<8x128xf32>
    %72 = tpu.matmul %70, %12, %cst_20 {dimension_numbers = #tpu.dot_dimension_numbers<[1], [0], [0], [1], [0, 0, 1, 1], [], []>} : vector<8x32xf32>, vector<32x128xf32>, vector<8x128xf32> -> vector<8x128xf32>
    %73 = arith.addf %71, %72 : vector<8x128xf32>
    %74 = vector.extract_strided_slice %73 {offsets = [0, 0], sizes = [8, 32], strides = [1, 1]} : vector<8x128xf32> to vector<8x32xf32>
    %75 = arith.negf %74 : vector<8x32xf32>
    %76 = math.exp %75 : vector<8x32xf32>
    %cst_21 = arith.constant 1.000000e+00 : f32
    %77 = vector.broadcast %cst_21 : f32 to vector<8x32xf32>
    %78 = arith.addf %77, %76 : vector<8x32xf32>
    %79 = arith.divf %77, %78 : vector<8x32xf32>
    %80 = vector.extract_strided_slice %73 {offsets = [0, 32], sizes = [8, 32], strides = [1, 1]} : vector<8x128xf32> to vector<8x32xf32>
    %81 = arith.negf %80 : vector<8x32xf32>
    %82 = math.exp %81 : vector<8x32xf32>
    %cst_22 = arith.constant 1.000000e+00 : f32
    %83 = vector.broadcast %cst_22 : f32 to vector<8x32xf32>
    %84 = arith.addf %83, %82 : vector<8x32xf32>
    %85 = arith.divf %83, %84 : vector<8x32xf32>
    %86 = vector.extract_strided_slice %73 {offsets = [0, 64], sizes = [8, 32], strides = [1, 1]} : vector<8x128xf32> to vector<8x32xf32>
    %87 = math.tanh %86 : vector<8x32xf32>
    %88 = vector.extract_strided_slice %73 {offsets = [0, 96], sizes = [8, 32], strides = [1, 1]} : vector<8x128xf32> to vector<8x32xf32>
    %89 = arith.negf %88 : vector<8x32xf32>
    %90 = math.exp %89 : vector<8x32xf32>
    %cst_23 = arith.constant 1.000000e+00 : f32
    %91 = vector.broadcast %cst_23 : f32 to vector<8x32xf32>
    %92 = arith.addf %91, %90 : vector<8x32xf32>
    %93 = arith.divf %91, %92 : vector<8x32xf32>
    %94 = arith.mulf %85, %68 : vector<8x32xf32>
    %95 = arith.mulf %79, %87 : vector<8x32xf32>
    %96 = arith.addf %94, %95 : vector<8x32xf32>
    %97 = math.tanh %96 : vector<8x32xf32>
    %98 = arith.mulf %93, %97 : vector<8x32xf32>
    %99 = vector.extract_strided_slice %10 {offsets = [24, 0], sizes = [8, 128], strides = [1, 1]} : vector<64x128xf32> to vector<8x128xf32>
    %cst_24 = arith.constant dense<0.000000e+00> : vector<8x128xf32>
    %100 = tpu.matmul %98, %12, %cst_24 {dimension_numbers = #tpu.dot_dimension_numbers<[1], [0], [0], [1], [0, 0, 1, 1], [], []>} : vector<8x32xf32>, vector<32x128xf32>, vector<8x128xf32> -> vector<8x128xf32>
    %101 = arith.addf %99, %100 : vector<8x128xf32>
    %102 = vector.extract_strided_slice %101 {offsets = [0, 0], sizes = [8, 32], strides = [1, 1]} : vector<8x128xf32> to vector<8x32xf32>
    %103 = arith.negf %102 : vector<8x32xf32>
    %104 = math.exp %103 : vector<8x32xf32>
    %cst_25 = arith.constant 1.000000e+00 : f32
    %105 = vector.broadcast %cst_25 : f32 to vector<8x32xf32>
    %106 = arith.addf %105, %104 : vector<8x32xf32>
    %107 = arith.divf %105, %106 : vector<8x32xf32>
    %108 = vector.extract_strided_slice %101 {offsets = [0, 32], sizes = [8, 32], strides = [1, 1]} : vector<8x128xf32> to vector<8x32xf32>
    %109 = arith.negf %108 : vector<8x32xf32>
    %110 = math.exp %109 : vector<8x32xf32>
    %cst_26 = arith.constant 1.000000e+00 : f32
    %111 = vector.broadcast %cst_26 : f32 to vector<8x32xf32>
    %112 = arith.addf %111, %110 : vector<8x32xf32>
    %113 = arith.divf %111, %112 : vector<8x32xf32>
    %114 = vector.extract_strided_slice %101 {offsets = [0, 64], sizes = [8, 32], strides = [1, 1]} : vector<8x128xf32> to vector<8x32xf32>
    %115 = math.tanh %114 : vector<8x32xf32>
    %116 = vector.extract_strided_slice %101 {offsets = [0, 96], sizes = [8, 32], strides = [1, 1]} : vector<8x128xf32> to vector<8x32xf32>
    %117 = arith.negf %116 : vector<8x32xf32>
    %118 = math.exp %117 : vector<8x32xf32>
    %cst_27 = arith.constant 1.000000e+00 : f32
    %119 = vector.broadcast %cst_27 : f32 to vector<8x32xf32>
    %120 = arith.addf %119, %118 : vector<8x32xf32>
    %121 = arith.divf %119, %120 : vector<8x32xf32>
    %122 = arith.mulf %113, %96 : vector<8x32xf32>
    %123 = arith.mulf %107, %115 : vector<8x32xf32>
    %124 = arith.addf %122, %123 : vector<8x32xf32>
    %125 = math.tanh %124 : vector<8x32xf32>
    %126 = arith.mulf %121, %125 : vector<8x32xf32>
    %127 = vector.extract_strided_slice %10 {offsets = [32, 0], sizes = [8, 128], strides = [1, 1]} : vector<64x128xf32> to vector<8x128xf32>
    %cst_28 = arith.constant dense<0.000000e+00> : vector<8x128xf32>
    %128 = tpu.matmul %126, %12, %cst_28 {dimension_numbers = #tpu.dot_dimension_numbers<[1], [0], [0], [1], [0, 0, 1, 1], [], []>} : vector<8x32xf32>, vector<32x128xf32>, vector<8x128xf32> -> vector<8x128xf32>
    %129 = arith.addf %127, %128 : vector<8x128xf32>
    %130 = vector.extract_strided_slice %129 {offsets = [0, 0], sizes = [8, 32], strides = [1, 1]} : vector<8x128xf32> to vector<8x32xf32>
    %131 = arith.negf %130 : vector<8x32xf32>
    %132 = math.exp %131 : vector<8x32xf32>
    %cst_29 = arith.constant 1.000000e+00 : f32
    %133 = vector.broadcast %cst_29 : f32 to vector<8x32xf32>
    %134 = arith.addf %133, %132 : vector<8x32xf32>
    %135 = arith.divf %133, %134 : vector<8x32xf32>
    %136 = vector.extract_strided_slice %129 {offsets = [0, 32], sizes = [8, 32], strides = [1, 1]} : vector<8x128xf32> to vector<8x32xf32>
    %137 = arith.negf %136 : vector<8x32xf32>
    %138 = math.exp %137 : vector<8x32xf32>
    %cst_30 = arith.constant 1.000000e+00 : f32
    %139 = vector.broadcast %cst_30 : f32 to vector<8x32xf32>
    %140 = arith.addf %139, %138 : vector<8x32xf32>
    %141 = arith.divf %139, %140 : vector<8x32xf32>
    %142 = vector.extract_strided_slice %129 {offsets = [0, 64], sizes = [8, 32], strides = [1, 1]} : vector<8x128xf32> to vector<8x32xf32>
    %143 = math.tanh %142 : vector<8x32xf32>
    %144 = vector.extract_strided_slice %129 {offsets = [0, 96], sizes = [8, 32], strides = [1, 1]} : vector<8x128xf32> to vector<8x32xf32>
    %145 = arith.negf %144 : vector<8x32xf32>
    %146 = math.exp %145 : vector<8x32xf32>
    %cst_31 = arith.constant 1.000000e+00 : f32
    %147 = vector.broadcast %cst_31 : f32 to vector<8x32xf32>
    %148 = arith.addf %147, %146 : vector<8x32xf32>
    %149 = arith.divf %147, %148 : vector<8x32xf32>
    %150 = arith.mulf %141, %124 : vector<8x32xf32>
    %151 = arith.mulf %135, %143 : vector<8x32xf32>
    %152 = arith.addf %150, %151 : vector<8x32xf32>
    %153 = math.tanh %152 : vector<8x32xf32>
    %154 = arith.mulf %149, %153 : vector<8x32xf32>
    %155 = vector.extract_strided_slice %10 {offsets = [40, 0], sizes = [8, 128], strides = [1, 1]} : vector<64x128xf32> to vector<8x128xf32>
    %cst_32 = arith.constant dense<0.000000e+00> : vector<8x128xf32>
    %156 = tpu.matmul %154, %12, %cst_32 {dimension_numbers = #tpu.dot_dimension_numbers<[1], [0], [0], [1], [0, 0, 1, 1], [], []>} : vector<8x32xf32>, vector<32x128xf32>, vector<8x128xf32> -> vector<8x128xf32>
    %157 = arith.addf %155, %156 : vector<8x128xf32>
    %158 = vector.extract_strided_slice %157 {offsets = [0, 0], sizes = [8, 32], strides = [1, 1]} : vector<8x128xf32> to vector<8x32xf32>
    %159 = arith.negf %158 : vector<8x32xf32>
    %160 = math.exp %159 : vector<8x32xf32>
    %cst_33 = arith.constant 1.000000e+00 : f32
    %161 = vector.broadcast %cst_33 : f32 to vector<8x32xf32>
    %162 = arith.addf %161, %160 : vector<8x32xf32>
    %163 = arith.divf %161, %162 : vector<8x32xf32>
    %164 = vector.extract_strided_slice %157 {offsets = [0, 32], sizes = [8, 32], strides = [1, 1]} : vector<8x128xf32> to vector<8x32xf32>
    %165 = arith.negf %164 : vector<8x32xf32>
    %166 = math.exp %165 : vector<8x32xf32>
    %cst_34 = arith.constant 1.000000e+00 : f32
    %167 = vector.broadcast %cst_34 : f32 to vector<8x32xf32>
    %168 = arith.addf %167, %166 : vector<8x32xf32>
    %169 = arith.divf %167, %168 : vector<8x32xf32>
    %170 = vector.extract_strided_slice %157 {offsets = [0, 64], sizes = [8, 32], strides = [1, 1]} : vector<8x128xf32> to vector<8x32xf32>
    %171 = math.tanh %170 : vector<8x32xf32>
    %172 = vector.extract_strided_slice %157 {offsets = [0, 96], sizes = [8, 32], strides = [1, 1]} : vector<8x128xf32> to vector<8x32xf32>
    %173 = arith.negf %172 : vector<8x32xf32>
    %174 = math.exp %173 : vector<8x32xf32>
    %cst_35 = arith.constant 1.000000e+00 : f32
    %175 = vector.broadcast %cst_35 : f32 to vector<8x32xf32>
    %176 = arith.addf %175, %174 : vector<8x32xf32>
    %177 = arith.divf %175, %176 : vector<8x32xf32>
    %178 = arith.mulf %169, %152 : vector<8x32xf32>
    %179 = arith.mulf %163, %171 : vector<8x32xf32>
    %180 = arith.addf %178, %179 : vector<8x32xf32>
    %181 = math.tanh %180 : vector<8x32xf32>
    %182 = arith.mulf %177, %181 : vector<8x32xf32>
    %183 = vector.extract_strided_slice %10 {offsets = [48, 0], sizes = [8, 128], strides = [1, 1]} : vector<64x128xf32> to vector<8x128xf32>
    %cst_36 = arith.constant dense<0.000000e+00> : vector<8x128xf32>
    %184 = tpu.matmul %182, %12, %cst_36 {dimension_numbers = #tpu.dot_dimension_numbers<[1], [0], [0], [1], [0, 0, 1, 1], [], []>} : vector<8x32xf32>, vector<32x128xf32>, vector<8x128xf32> -> vector<8x128xf32>
    %185 = arith.addf %183, %184 : vector<8x128xf32>
    %186 = vector.extract_strided_slice %185 {offsets = [0, 0], sizes = [8, 32], strides = [1, 1]} : vector<8x128xf32> to vector<8x32xf32>
    %187 = arith.negf %186 : vector<8x32xf32>
    %188 = math.exp %187 : vector<8x32xf32>
    %cst_37 = arith.constant 1.000000e+00 : f32
    %189 = vector.broadcast %cst_37 : f32 to vector<8x32xf32>
    %190 = arith.addf %189, %188 : vector<8x32xf32>
    %191 = arith.divf %189, %190 : vector<8x32xf32>
    %192 = vector.extract_strided_slice %185 {offsets = [0, 32], sizes = [8, 32], strides = [1, 1]} : vector<8x128xf32> to vector<8x32xf32>
    %193 = arith.negf %192 : vector<8x32xf32>
    %194 = math.exp %193 : vector<8x32xf32>
    %cst_38 = arith.constant 1.000000e+00 : f32
    %195 = vector.broadcast %cst_38 : f32 to vector<8x32xf32>
    %196 = arith.addf %195, %194 : vector<8x32xf32>
    %197 = arith.divf %195, %196 : vector<8x32xf32>
    %198 = vector.extract_strided_slice %185 {offsets = [0, 64], sizes = [8, 32], strides = [1, 1]} : vector<8x128xf32> to vector<8x32xf32>
    %199 = math.tanh %198 : vector<8x32xf32>
    %200 = vector.extract_strided_slice %185 {offsets = [0, 96], sizes = [8, 32], strides = [1, 1]} : vector<8x128xf32> to vector<8x32xf32>
    %201 = arith.negf %200 : vector<8x32xf32>
    %202 = math.exp %201 : vector<8x32xf32>
    %cst_39 = arith.constant 1.000000e+00 : f32
    %203 = vector.broadcast %cst_39 : f32 to vector<8x32xf32>
    %204 = arith.addf %203, %202 : vector<8x32xf32>
    %205 = arith.divf %203, %204 : vector<8x32xf32>
    %206 = arith.mulf %197, %180 : vector<8x32xf32>
    %207 = arith.mulf %191, %199 : vector<8x32xf32>
    %208 = arith.addf %206, %207 : vector<8x32xf32>
    %209 = math.tanh %208 : vector<8x32xf32>
    %210 = arith.mulf %205, %209 : vector<8x32xf32>
    %211 = vector.extract_strided_slice %10 {offsets = [56, 0], sizes = [8, 128], strides = [1, 1]} : vector<64x128xf32> to vector<8x128xf32>
    %cst_40 = arith.constant dense<0.000000e+00> : vector<8x128xf32>
    %212 = tpu.matmul %210, %12, %cst_40 {dimension_numbers = #tpu.dot_dimension_numbers<[1], [0], [0], [1], [0, 0, 1, 1], [], []>} : vector<8x32xf32>, vector<32x128xf32>, vector<8x128xf32> -> vector<8x128xf32>
    %213 = arith.addf %211, %212 : vector<8x128xf32>
    %214 = vector.extract_strided_slice %213 {offsets = [0, 0], sizes = [8, 32], strides = [1, 1]} : vector<8x128xf32> to vector<8x32xf32>
    %215 = arith.negf %214 : vector<8x32xf32>
    %216 = math.exp %215 : vector<8x32xf32>
    %cst_41 = arith.constant 1.000000e+00 : f32
    %217 = vector.broadcast %cst_41 : f32 to vector<8x32xf32>
    %218 = arith.addf %217, %216 : vector<8x32xf32>
    %219 = arith.divf %217, %218 : vector<8x32xf32>
    %220 = vector.extract_strided_slice %213 {offsets = [0, 32], sizes = [8, 32], strides = [1, 1]} : vector<8x128xf32> to vector<8x32xf32>
    %221 = arith.negf %220 : vector<8x32xf32>
    %222 = math.exp %221 : vector<8x32xf32>
    %cst_42 = arith.constant 1.000000e+00 : f32
    %223 = vector.broadcast %cst_42 : f32 to vector<8x32xf32>
    %224 = arith.addf %223, %222 : vector<8x32xf32>
    %225 = arith.divf %223, %224 : vector<8x32xf32>
    %226 = vector.extract_strided_slice %213 {offsets = [0, 64], sizes = [8, 32], strides = [1, 1]} : vector<8x128xf32> to vector<8x32xf32>
    %227 = math.tanh %226 : vector<8x32xf32>
    %228 = vector.extract_strided_slice %213 {offsets = [0, 96], sizes = [8, 32], strides = [1, 1]} : vector<8x128xf32> to vector<8x32xf32>
    %229 = arith.negf %228 : vector<8x32xf32>
    %230 = math.exp %229 : vector<8x32xf32>
    %cst_43 = arith.constant 1.000000e+00 : f32
    %231 = vector.broadcast %cst_43 : f32 to vector<8x32xf32>
    %232 = arith.addf %231, %230 : vector<8x32xf32>
    %233 = arith.divf %231, %232 : vector<8x32xf32>
    %234 = arith.mulf %225, %208 : vector<8x32xf32>
    %235 = arith.mulf %219, %227 : vector<8x32xf32>
    %236 = arith.addf %234, %235 : vector<8x32xf32>
    %237 = math.tanh %236 : vector<8x32xf32>
    %238 = arith.mulf %233, %237 : vector<8x32xf32>
    %239 = vector.extract_strided_slice %1 {offsets = [1, 0, 0], sizes = [1, 28, 128], strides = [1, 1, 1]} : vector<2x28x128xf32> to vector<1x28x128xf32>
    %240 = vector.shape_cast %239 : vector<1x28x128xf32> to vector<28x128xf32>
    %241 = vector.extract_strided_slice %3 {offsets = [1, 0, 0], sizes = [1, 1, 128], strides = [1, 1, 1]} : vector<2x1x128xf32> to vector<1x1x128xf32>
    %242 = vector.shape_cast %241 : vector<1x1x128xf32> to vector<1x128xf32>
    %cst_44 = arith.constant dense<0.000000e+00> : vector<64x128xf32>
    %243 = tpu.matmul %0, %240, %cst_44 {dimension_numbers = #tpu.dot_dimension_numbers<[1], [0], [0], [1], [0, 0, 1, 1], [], []>} : vector<64x28xf32>, vector<28x128xf32>, vector<64x128xf32> -> vector<64x128xf32>
    %244 = vector.broadcast %242 : vector<1x128xf32> to vector<64x128xf32>
    %245 = arith.addf %244, %243 : vector<64x128xf32>
    %246 = vector.extract_strided_slice %2 {offsets = [1, 0, 0], sizes = [1, 32, 128], strides = [1, 1, 1]} : vector<2x32x128xf32> to vector<1x32x128xf32>
    %247 = vector.shape_cast %246 : vector<1x32x128xf32> to vector<32x128xf32>
    %cst_45 = arith.constant 0.000000e+00 : f32
    %248 = vector.broadcast %cst_45 : f32 to vector<8x32xf32>
    %cst_46 = arith.constant 0.000000e+00 : f32
    %249 = vector.broadcast %cst_46 : f32 to vector<8x32xf32>
    %250 = vector.extract_strided_slice %245 {offsets = [56, 0], sizes = [8, 128], strides = [1, 1]} : vector<64x128xf32> to vector<8x128xf32>
    %cst_47 = arith.constant dense<0.000000e+00> : vector<8x128xf32>
    %251 = tpu.matmul %248, %247, %cst_47 {dimension_numbers = #tpu.dot_dimension_numbers<[1], [0], [0], [1], [0, 0, 1, 1], [], []>} : vector<8x32xf32>, vector<32x128xf32>, vector<8x128xf32> -> vector<8x128xf32>
    %252 = arith.addf %250, %251 : vector<8x128xf32>
    %253 = vector.extract_strided_slice %252 {offsets = [0, 0], sizes = [8, 32], strides = [1, 1]} : vector<8x128xf32> to vector<8x32xf32>
    %254 = arith.negf %253 : vector<8x32xf32>
    %255 = math.exp %254 : vector<8x32xf32>
    %cst_48 = arith.constant 1.000000e+00 : f32
    %256 = vector.broadcast %cst_48 : f32 to vector<8x32xf32>
    %257 = arith.addf %256, %255 : vector<8x32xf32>
    %258 = arith.divf %256, %257 : vector<8x32xf32>
    %259 = vector.extract_strided_slice %252 {offsets = [0, 32], sizes = [8, 32], strides = [1, 1]} : vector<8x128xf32> to vector<8x32xf32>
    %260 = arith.negf %259 : vector<8x32xf32>
    %261 = math.exp %260 : vector<8x32xf32>
    %cst_49 = arith.constant 1.000000e+00 : f32
    %262 = vector.broadcast %cst_49 : f32 to vector<8x32xf32>
    %263 = arith.addf %262, %261 : vector<8x32xf32>
    %264 = arith.divf %262, %263 : vector<8x32xf32>
    %265 = vector.extract_strided_slice %252 {offsets = [0, 64], sizes = [8, 32], strides = [1, 1]} : vector<8x128xf32> to vector<8x32xf32>
    %266 = math.tanh %265 : vector<8x32xf32>
    %267 = vector.extract_strided_slice %252 {offsets = [0, 96], sizes = [8, 32], strides = [1, 1]} : vector<8x128xf32> to vector<8x32xf32>
    %268 = arith.negf %267 : vector<8x32xf32>
    %269 = math.exp %268 : vector<8x32xf32>
    %cst_50 = arith.constant 1.000000e+00 : f32
    %270 = vector.broadcast %cst_50 : f32 to vector<8x32xf32>
    %271 = arith.addf %270, %269 : vector<8x32xf32>
    %272 = arith.divf %270, %271 : vector<8x32xf32>
    %273 = arith.mulf %264, %249 : vector<8x32xf32>
    %274 = arith.mulf %258, %266 : vector<8x32xf32>
    %275 = arith.addf %273, %274 : vector<8x32xf32>
    %276 = math.tanh %275 : vector<8x32xf32>
    %277 = arith.mulf %272, %276 : vector<8x32xf32>
    %278 = vector.extract_strided_slice %245 {offsets = [48, 0], sizes = [8, 128], strides = [1, 1]} : vector<64x128xf32> to vector<8x128xf32>
    %cst_51 = arith.constant dense<0.000000e+00> : vector<8x128xf32>
    %279 = tpu.matmul %277, %247, %cst_51 {dimension_numbers = #tpu.dot_dimension_numbers<[1], [0], [0], [1], [0, 0, 1, 1], [], []>} : vector<8x32xf32>, vector<32x128xf32>, vector<8x128xf32> -> vector<8x128xf32>
    %280 = arith.addf %278, %279 : vector<8x128xf32>
    %281 = vector.extract_strided_slice %280 {offsets = [0, 0], sizes = [8, 32], strides = [1, 1]} : vector<8x128xf32> to vector<8x32xf32>
    %282 = arith.negf %281 : vector<8x32xf32>
    %283 = math.exp %282 : vector<8x32xf32>
    %cst_52 = arith.constant 1.000000e+00 : f32
    %284 = vector.broadcast %cst_52 : f32 to vector<8x32xf32>
    %285 = arith.addf %284, %283 : vector<8x32xf32>
    %286 = arith.divf %284, %285 : vector<8x32xf32>
    %287 = vector.extract_strided_slice %280 {offsets = [0, 32], sizes = [8, 32], strides = [1, 1]} : vector<8x128xf32> to vector<8x32xf32>
    %288 = arith.negf %287 : vector<8x32xf32>
    %289 = math.exp %288 : vector<8x32xf32>
    %cst_53 = arith.constant 1.000000e+00 : f32
    %290 = vector.broadcast %cst_53 : f32 to vector<8x32xf32>
    %291 = arith.addf %290, %289 : vector<8x32xf32>
    %292 = arith.divf %290, %291 : vector<8x32xf32>
    %293 = vector.extract_strided_slice %280 {offsets = [0, 64], sizes = [8, 32], strides = [1, 1]} : vector<8x128xf32> to vector<8x32xf32>
    %294 = math.tanh %293 : vector<8x32xf32>
    %295 = vector.extract_strided_slice %280 {offsets = [0, 96], sizes = [8, 32], strides = [1, 1]} : vector<8x128xf32> to vector<8x32xf32>
    %296 = arith.negf %295 : vector<8x32xf32>
    %297 = math.exp %296 : vector<8x32xf32>
    %cst_54 = arith.constant 1.000000e+00 : f32
    %298 = vector.broadcast %cst_54 : f32 to vector<8x32xf32>
    %299 = arith.addf %298, %297 : vector<8x32xf32>
    %300 = arith.divf %298, %299 : vector<8x32xf32>
    %301 = arith.mulf %292, %275 : vector<8x32xf32>
    %302 = arith.mulf %286, %294 : vector<8x32xf32>
    %303 = arith.addf %301, %302 : vector<8x32xf32>
    %304 = math.tanh %303 : vector<8x32xf32>
    %305 = arith.mulf %300, %304 : vector<8x32xf32>
    %306 = vector.extract_strided_slice %245 {offsets = [40, 0], sizes = [8, 128], strides = [1, 1]} : vector<64x128xf32> to vector<8x128xf32>
    %cst_55 = arith.constant dense<0.000000e+00> : vector<8x128xf32>
    %307 = tpu.matmul %305, %247, %cst_55 {dimension_numbers = #tpu.dot_dimension_numbers<[1], [0], [0], [1], [0, 0, 1, 1], [], []>} : vector<8x32xf32>, vector<32x128xf32>, vector<8x128xf32> -> vector<8x128xf32>
    %308 = arith.addf %306, %307 : vector<8x128xf32>
    %309 = vector.extract_strided_slice %308 {offsets = [0, 0], sizes = [8, 32], strides = [1, 1]} : vector<8x128xf32> to vector<8x32xf32>
    %310 = arith.negf %309 : vector<8x32xf32>
    %311 = math.exp %310 : vector<8x32xf32>
    %cst_56 = arith.constant 1.000000e+00 : f32
    %312 = vector.broadcast %cst_56 : f32 to vector<8x32xf32>
    %313 = arith.addf %312, %311 : vector<8x32xf32>
    %314 = arith.divf %312, %313 : vector<8x32xf32>
    %315 = vector.extract_strided_slice %308 {offsets = [0, 32], sizes = [8, 32], strides = [1, 1]} : vector<8x128xf32> to vector<8x32xf32>
    %316 = arith.negf %315 : vector<8x32xf32>
    %317 = math.exp %316 : vector<8x32xf32>
    %cst_57 = arith.constant 1.000000e+00 : f32
    %318 = vector.broadcast %cst_57 : f32 to vector<8x32xf32>
    %319 = arith.addf %318, %317 : vector<8x32xf32>
    %320 = arith.divf %318, %319 : vector<8x32xf32>
    %321 = vector.extract_strided_slice %308 {offsets = [0, 64], sizes = [8, 32], strides = [1, 1]} : vector<8x128xf32> to vector<8x32xf32>
    %322 = math.tanh %321 : vector<8x32xf32>
    %323 = vector.extract_strided_slice %308 {offsets = [0, 96], sizes = [8, 32], strides = [1, 1]} : vector<8x128xf32> to vector<8x32xf32>
    %324 = arith.negf %323 : vector<8x32xf32>
    %325 = math.exp %324 : vector<8x32xf32>
    %cst_58 = arith.constant 1.000000e+00 : f32
    %326 = vector.broadcast %cst_58 : f32 to vector<8x32xf32>
    %327 = arith.addf %326, %325 : vector<8x32xf32>
    %328 = arith.divf %326, %327 : vector<8x32xf32>
    %329 = arith.mulf %320, %303 : vector<8x32xf32>
    %330 = arith.mulf %314, %322 : vector<8x32xf32>
    %331 = arith.addf %329, %330 : vector<8x32xf32>
    %332 = math.tanh %331 : vector<8x32xf32>
    %333 = arith.mulf %328, %332 : vector<8x32xf32>
    %334 = vector.extract_strided_slice %245 {offsets = [32, 0], sizes = [8, 128], strides = [1, 1]} : vector<64x128xf32> to vector<8x128xf32>
    %cst_59 = arith.constant dense<0.000000e+00> : vector<8x128xf32>
    %335 = tpu.matmul %333, %247, %cst_59 {dimension_numbers = #tpu.dot_dimension_numbers<[1], [0], [0], [1], [0, 0, 1, 1], [], []>} : vector<8x32xf32>, vector<32x128xf32>, vector<8x128xf32> -> vector<8x128xf32>
    %336 = arith.addf %334, %335 : vector<8x128xf32>
    %337 = vector.extract_strided_slice %336 {offsets = [0, 0], sizes = [8, 32], strides = [1, 1]} : vector<8x128xf32> to vector<8x32xf32>
    %338 = arith.negf %337 : vector<8x32xf32>
    %339 = math.exp %338 : vector<8x32xf32>
    %cst_60 = arith.constant 1.000000e+00 : f32
    %340 = vector.broadcast %cst_60 : f32 to vector<8x32xf32>
    %341 = arith.addf %340, %339 : vector<8x32xf32>
    %342 = arith.divf %340, %341 : vector<8x32xf32>
    %343 = vector.extract_strided_slice %336 {offsets = [0, 32], sizes = [8, 32], strides = [1, 1]} : vector<8x128xf32> to vector<8x32xf32>
    %344 = arith.negf %343 : vector<8x32xf32>
    %345 = math.exp %344 : vector<8x32xf32>
    %cst_61 = arith.constant 1.000000e+00 : f32
    %346 = vector.broadcast %cst_61 : f32 to vector<8x32xf32>
    %347 = arith.addf %346, %345 : vector<8x32xf32>
    %348 = arith.divf %346, %347 : vector<8x32xf32>
    %349 = vector.extract_strided_slice %336 {offsets = [0, 64], sizes = [8, 32], strides = [1, 1]} : vector<8x128xf32> to vector<8x32xf32>
    %350 = math.tanh %349 : vector<8x32xf32>
    %351 = vector.extract_strided_slice %336 {offsets = [0, 96], sizes = [8, 32], strides = [1, 1]} : vector<8x128xf32> to vector<8x32xf32>
    %352 = arith.negf %351 : vector<8x32xf32>
    %353 = math.exp %352 : vector<8x32xf32>
    %cst_62 = arith.constant 1.000000e+00 : f32
    %354 = vector.broadcast %cst_62 : f32 to vector<8x32xf32>
    %355 = arith.addf %354, %353 : vector<8x32xf32>
    %356 = arith.divf %354, %355 : vector<8x32xf32>
    %357 = arith.mulf %348, %331 : vector<8x32xf32>
    %358 = arith.mulf %342, %350 : vector<8x32xf32>
    %359 = arith.addf %357, %358 : vector<8x32xf32>
    %360 = math.tanh %359 : vector<8x32xf32>
    %361 = arith.mulf %356, %360 : vector<8x32xf32>
    %362 = vector.extract_strided_slice %245 {offsets = [24, 0], sizes = [8, 128], strides = [1, 1]} : vector<64x128xf32> to vector<8x128xf32>
    %cst_63 = arith.constant dense<0.000000e+00> : vector<8x128xf32>
    %363 = tpu.matmul %361, %247, %cst_63 {dimension_numbers = #tpu.dot_dimension_numbers<[1], [0], [0], [1], [0, 0, 1, 1], [], []>} : vector<8x32xf32>, vector<32x128xf32>, vector<8x128xf32> -> vector<8x128xf32>
    %364 = arith.addf %362, %363 : vector<8x128xf32>
    %365 = vector.extract_strided_slice %364 {offsets = [0, 0], sizes = [8, 32], strides = [1, 1]} : vector<8x128xf32> to vector<8x32xf32>
    %366 = arith.negf %365 : vector<8x32xf32>
    %367 = math.exp %366 : vector<8x32xf32>
    %cst_64 = arith.constant 1.000000e+00 : f32
    %368 = vector.broadcast %cst_64 : f32 to vector<8x32xf32>
    %369 = arith.addf %368, %367 : vector<8x32xf32>
    %370 = arith.divf %368, %369 : vector<8x32xf32>
    %371 = vector.extract_strided_slice %364 {offsets = [0, 32], sizes = [8, 32], strides = [1, 1]} : vector<8x128xf32> to vector<8x32xf32>
    %372 = arith.negf %371 : vector<8x32xf32>
    %373 = math.exp %372 : vector<8x32xf32>
    %cst_65 = arith.constant 1.000000e+00 : f32
    %374 = vector.broadcast %cst_65 : f32 to vector<8x32xf32>
    %375 = arith.addf %374, %373 : vector<8x32xf32>
    %376 = arith.divf %374, %375 : vector<8x32xf32>
    %377 = vector.extract_strided_slice %364 {offsets = [0, 64], sizes = [8, 32], strides = [1, 1]} : vector<8x128xf32> to vector<8x32xf32>
    %378 = math.tanh %377 : vector<8x32xf32>
    %379 = vector.extract_strided_slice %364 {offsets = [0, 96], sizes = [8, 32], strides = [1, 1]} : vector<8x128xf32> to vector<8x32xf32>
    %380 = arith.negf %379 : vector<8x32xf32>
    %381 = math.exp %380 : vector<8x32xf32>
    %cst_66 = arith.constant 1.000000e+00 : f32
    %382 = vector.broadcast %cst_66 : f32 to vector<8x32xf32>
    %383 = arith.addf %382, %381 : vector<8x32xf32>
    %384 = arith.divf %382, %383 : vector<8x32xf32>
    %385 = arith.mulf %376, %359 : vector<8x32xf32>
    %386 = arith.mulf %370, %378 : vector<8x32xf32>
    %387 = arith.addf %385, %386 : vector<8x32xf32>
    %388 = math.tanh %387 : vector<8x32xf32>
    %389 = arith.mulf %384, %388 : vector<8x32xf32>
    %390 = vector.extract_strided_slice %245 {offsets = [16, 0], sizes = [8, 128], strides = [1, 1]} : vector<64x128xf32> to vector<8x128xf32>
    %cst_67 = arith.constant dense<0.000000e+00> : vector<8x128xf32>
    %391 = tpu.matmul %389, %247, %cst_67 {dimension_numbers = #tpu.dot_dimension_numbers<[1], [0], [0], [1], [0, 0, 1, 1], [], []>} : vector<8x32xf32>, vector<32x128xf32>, vector<8x128xf32> -> vector<8x128xf32>
    %392 = arith.addf %390, %391 : vector<8x128xf32>
    %393 = vector.extract_strided_slice %392 {offsets = [0, 0], sizes = [8, 32], strides = [1, 1]} : vector<8x128xf32> to vector<8x32xf32>
    %394 = arith.negf %393 : vector<8x32xf32>
    %395 = math.exp %394 : vector<8x32xf32>
    %cst_68 = arith.constant 1.000000e+00 : f32
    %396 = vector.broadcast %cst_68 : f32 to vector<8x32xf32>
    %397 = arith.addf %396, %395 : vector<8x32xf32>
    %398 = arith.divf %396, %397 : vector<8x32xf32>
    %399 = vector.extract_strided_slice %392 {offsets = [0, 32], sizes = [8, 32], strides = [1, 1]} : vector<8x128xf32> to vector<8x32xf32>
    %400 = arith.negf %399 : vector<8x32xf32>
    %401 = math.exp %400 : vector<8x32xf32>
    %cst_69 = arith.constant 1.000000e+00 : f32
    %402 = vector.broadcast %cst_69 : f32 to vector<8x32xf32>
    %403 = arith.addf %402, %401 : vector<8x32xf32>
    %404 = arith.divf %402, %403 : vector<8x32xf32>
    %405 = vector.extract_strided_slice %392 {offsets = [0, 64], sizes = [8, 32], strides = [1, 1]} : vector<8x128xf32> to vector<8x32xf32>
    %406 = math.tanh %405 : vector<8x32xf32>
    %407 = vector.extract_strided_slice %392 {offsets = [0, 96], sizes = [8, 32], strides = [1, 1]} : vector<8x128xf32> to vector<8x32xf32>
    %408 = arith.negf %407 : vector<8x32xf32>
    %409 = math.exp %408 : vector<8x32xf32>
    %cst_70 = arith.constant 1.000000e+00 : f32
    %410 = vector.broadcast %cst_70 : f32 to vector<8x32xf32>
    %411 = arith.addf %410, %409 : vector<8x32xf32>
    %412 = arith.divf %410, %411 : vector<8x32xf32>
    %413 = arith.mulf %404, %387 : vector<8x32xf32>
    %414 = arith.mulf %398, %406 : vector<8x32xf32>
    %415 = arith.addf %413, %414 : vector<8x32xf32>
    %416 = math.tanh %415 : vector<8x32xf32>
    %417 = arith.mulf %412, %416 : vector<8x32xf32>
    %418 = vector.extract_strided_slice %245 {offsets = [8, 0], sizes = [8, 128], strides = [1, 1]} : vector<64x128xf32> to vector<8x128xf32>
    %cst_71 = arith.constant dense<0.000000e+00> : vector<8x128xf32>
    %419 = tpu.matmul %417, %247, %cst_71 {dimension_numbers = #tpu.dot_dimension_numbers<[1], [0], [0], [1], [0, 0, 1, 1], [], []>} : vector<8x32xf32>, vector<32x128xf32>, vector<8x128xf32> -> vector<8x128xf32>
    %420 = arith.addf %418, %419 : vector<8x128xf32>
    %421 = vector.extract_strided_slice %420 {offsets = [0, 0], sizes = [8, 32], strides = [1, 1]} : vector<8x128xf32> to vector<8x32xf32>
    %422 = arith.negf %421 : vector<8x32xf32>
    %423 = math.exp %422 : vector<8x32xf32>
    %cst_72 = arith.constant 1.000000e+00 : f32
    %424 = vector.broadcast %cst_72 : f32 to vector<8x32xf32>
    %425 = arith.addf %424, %423 : vector<8x32xf32>
    %426 = arith.divf %424, %425 : vector<8x32xf32>
    %427 = vector.extract_strided_slice %420 {offsets = [0, 32], sizes = [8, 32], strides = [1, 1]} : vector<8x128xf32> to vector<8x32xf32>
    %428 = arith.negf %427 : vector<8x32xf32>
    %429 = math.exp %428 : vector<8x32xf32>
    %cst_73 = arith.constant 1.000000e+00 : f32
    %430 = vector.broadcast %cst_73 : f32 to vector<8x32xf32>
    %431 = arith.addf %430, %429 : vector<8x32xf32>
    %432 = arith.divf %430, %431 : vector<8x32xf32>
    %433 = vector.extract_strided_slice %420 {offsets = [0, 64], sizes = [8, 32], strides = [1, 1]} : vector<8x128xf32> to vector<8x32xf32>
    %434 = math.tanh %433 : vector<8x32xf32>
    %435 = vector.extract_strided_slice %420 {offsets = [0, 96], sizes = [8, 32], strides = [1, 1]} : vector<8x128xf32> to vector<8x32xf32>
    %436 = arith.negf %435 : vector<8x32xf32>
    %437 = math.exp %436 : vector<8x32xf32>
    %cst_74 = arith.constant 1.000000e+00 : f32
    %438 = vector.broadcast %cst_74 : f32 to vector<8x32xf32>
    %439 = arith.addf %438, %437 : vector<8x32xf32>
    %440 = arith.divf %438, %439 : vector<8x32xf32>
    %441 = arith.mulf %432, %415 : vector<8x32xf32>
    %442 = arith.mulf %426, %434 : vector<8x32xf32>
    %443 = arith.addf %441, %442 : vector<8x32xf32>
    %444 = math.tanh %443 : vector<8x32xf32>
    %445 = arith.mulf %440, %444 : vector<8x32xf32>
    %446 = vector.extract_strided_slice %245 {offsets = [0, 0], sizes = [8, 128], strides = [1, 1]} : vector<64x128xf32> to vector<8x128xf32>
    %cst_75 = arith.constant dense<0.000000e+00> : vector<8x128xf32>
    %447 = tpu.matmul %445, %247, %cst_75 {dimension_numbers = #tpu.dot_dimension_numbers<[1], [0], [0], [1], [0, 0, 1, 1], [], []>} : vector<8x32xf32>, vector<32x128xf32>, vector<8x128xf32> -> vector<8x128xf32>
    %448 = arith.addf %446, %447 : vector<8x128xf32>
    %449 = vector.extract_strided_slice %448 {offsets = [0, 0], sizes = [8, 32], strides = [1, 1]} : vector<8x128xf32> to vector<8x32xf32>
    %450 = arith.negf %449 : vector<8x32xf32>
    %451 = math.exp %450 : vector<8x32xf32>
    %cst_76 = arith.constant 1.000000e+00 : f32
    %452 = vector.broadcast %cst_76 : f32 to vector<8x32xf32>
    %453 = arith.addf %452, %451 : vector<8x32xf32>
    %454 = arith.divf %452, %453 : vector<8x32xf32>
    %455 = vector.extract_strided_slice %448 {offsets = [0, 32], sizes = [8, 32], strides = [1, 1]} : vector<8x128xf32> to vector<8x32xf32>
    %456 = arith.negf %455 : vector<8x32xf32>
    %457 = math.exp %456 : vector<8x32xf32>
    %cst_77 = arith.constant 1.000000e+00 : f32
    %458 = vector.broadcast %cst_77 : f32 to vector<8x32xf32>
    %459 = arith.addf %458, %457 : vector<8x32xf32>
    %460 = arith.divf %458, %459 : vector<8x32xf32>
    %461 = vector.extract_strided_slice %448 {offsets = [0, 64], sizes = [8, 32], strides = [1, 1]} : vector<8x128xf32> to vector<8x32xf32>
    %462 = math.tanh %461 : vector<8x32xf32>
    %463 = vector.extract_strided_slice %448 {offsets = [0, 96], sizes = [8, 32], strides = [1, 1]} : vector<8x128xf32> to vector<8x32xf32>
    %464 = arith.negf %463 : vector<8x32xf32>
    %465 = math.exp %464 : vector<8x32xf32>
    %cst_78 = arith.constant 1.000000e+00 : f32
    %466 = vector.broadcast %cst_78 : f32 to vector<8x32xf32>
    %467 = arith.addf %466, %465 : vector<8x32xf32>
    %468 = arith.divf %466, %467 : vector<8x32xf32>
    %469 = arith.mulf %460, %443 : vector<8x32xf32>
    %470 = arith.mulf %454, %462 : vector<8x32xf32>
    %471 = arith.addf %469, %470 : vector<8x32xf32>
    %472 = math.tanh %471 : vector<8x32xf32>
    %473 = arith.mulf %468, %472 : vector<8x32xf32>
    %474 = tpu.concatenate %42, %70, %98, %126, %154, %182, %210, %238 in 0 : vector<8x32xf32>, vector<8x32xf32>, vector<8x32xf32>, vector<8x32xf32>, vector<8x32xf32>, vector<8x32xf32>, vector<8x32xf32>, vector<8x32xf32> -> vector<64x32xf32>
    %475 = tpu.concatenate %473, %445, %417, %389, %361, %333, %305, %277 in 0 : vector<8x32xf32>, vector<8x32xf32>, vector<8x32xf32>, vector<8x32xf32>, vector<8x32xf32>, vector<8x32xf32>, vector<8x32xf32>, vector<8x32xf32> -> vector<64x32xf32>
    %c0_79 = arith.constant 0 : index
    %c0_80 = arith.constant 0 : index
    %c0_81 = arith.constant 0 : index
    %476 = vector.load %arg4[%c0_79, %c0_80, %c0_81] : memref<2x64x128xf32, #tpu.memory_space<vmem>>, vector<2x64x128xf32>
    %c0_82 = arith.constant 0 : index
    %c0_83 = arith.constant 0 : index
    %c0_84 = arith.constant 0 : index
    %477 = vector.load %arg5[%c0_82, %c0_83, %c0_84] : memref<2x32x128xf32, #tpu.memory_space<vmem>>, vector<2x32x128xf32>
    %c0_85 = arith.constant 0 : index
    %c0_86 = arith.constant 0 : index
    %c0_87 = arith.constant 0 : index
    %478 = vector.load %arg6[%c0_85, %c0_86, %c0_87] : memref<2x1x128xf32, #tpu.memory_space<vmem>>, vector<2x1x128xf32>
    %479 = vector.extract_strided_slice %476 {offsets = [0, 0, 0], sizes = [1, 64, 128], strides = [1, 1, 1]} : vector<2x64x128xf32> to vector<1x64x128xf32>
    %480 = vector.shape_cast %479 : vector<1x64x128xf32> to vector<64x128xf32>
    %481 = vector.extract_strided_slice %478 {offsets = [0, 0, 0], sizes = [1, 1, 128], strides = [1, 1, 1]} : vector<2x1x128xf32> to vector<1x1x128xf32>
    %482 = vector.shape_cast %481 : vector<1x1x128xf32> to vector<1x128xf32>
    %483 = vector.extract_strided_slice %480 {offsets = [0, 0], sizes = [32, 128], strides = [1, 1]} : vector<64x128xf32> to vector<32x128xf32>
    %cst_88 = arith.constant dense<0.000000e+00> : vector<64x128xf32>
    %484 = tpu.matmul %474, %483, %cst_88 {dimension_numbers = #tpu.dot_dimension_numbers<[1], [0], [0], [1], [0, 0, 1, 1], [], []>} : vector<64x32xf32>, vector<32x128xf32>, vector<64x128xf32> -> vector<64x128xf32>
    %485 = vector.broadcast %482 : vector<1x128xf32> to vector<64x128xf32>
    %486 = arith.addf %485, %484 : vector<64x128xf32>
    %487 = vector.extract_strided_slice %480 {offsets = [32, 0], sizes = [32, 128], strides = [1, 1]} : vector<64x128xf32> to vector<32x128xf32>
    %cst_89 = arith.constant dense<0.000000e+00> : vector<64x128xf32>
    %488 = tpu.matmul %475, %487, %cst_89 {dimension_numbers = #tpu.dot_dimension_numbers<[1], [0], [0], [1], [0, 0, 1, 1], [], []>} : vector<64x32xf32>, vector<32x128xf32>, vector<64x128xf32> -> vector<64x128xf32>
    %489 = arith.addf %486, %488 : vector<64x128xf32>
    %490 = vector.extract_strided_slice %477 {offsets = [0, 0, 0], sizes = [1, 32, 128], strides = [1, 1, 1]} : vector<2x32x128xf32> to vector<1x32x128xf32>
    %491 = vector.shape_cast %490 : vector<1x32x128xf32> to vector<32x128xf32>
    %cst_90 = arith.constant 0.000000e+00 : f32
    %492 = vector.broadcast %cst_90 : f32 to vector<8x32xf32>
    %cst_91 = arith.constant 0.000000e+00 : f32
    %493 = vector.broadcast %cst_91 : f32 to vector<8x32xf32>
    %494 = vector.extract_strided_slice %489 {offsets = [0, 0], sizes = [8, 128], strides = [1, 1]} : vector<64x128xf32> to vector<8x128xf32>
    %cst_92 = arith.constant dense<0.000000e+00> : vector<8x128xf32>
    %495 = tpu.matmul %492, %491, %cst_92 {dimension_numbers = #tpu.dot_dimension_numbers<[1], [0], [0], [1], [0, 0, 1, 1], [], []>} : vector<8x32xf32>, vector<32x128xf32>, vector<8x128xf32> -> vector<8x128xf32>
    %496 = arith.addf %494, %495 : vector<8x128xf32>
    %497 = vector.extract_strided_slice %496 {offsets = [0, 0], sizes = [8, 32], strides = [1, 1]} : vector<8x128xf32> to vector<8x32xf32>
    %498 = arith.negf %497 : vector<8x32xf32>
    %499 = math.exp %498 : vector<8x32xf32>
    %cst_93 = arith.constant 1.000000e+00 : f32
    %500 = vector.broadcast %cst_93 : f32 to vector<8x32xf32>
    %501 = arith.addf %500, %499 : vector<8x32xf32>
    %502 = arith.divf %500, %501 : vector<8x32xf32>
    %503 = vector.extract_strided_slice %496 {offsets = [0, 32], sizes = [8, 32], strides = [1, 1]} : vector<8x128xf32> to vector<8x32xf32>
    %504 = arith.negf %503 : vector<8x32xf32>
    %505 = math.exp %504 : vector<8x32xf32>
    %cst_94 = arith.constant 1.000000e+00 : f32
    %506 = vector.broadcast %cst_94 : f32 to vector<8x32xf32>
    %507 = arith.addf %506, %505 : vector<8x32xf32>
    %508 = arith.divf %506, %507 : vector<8x32xf32>
    %509 = vector.extract_strided_slice %496 {offsets = [0, 64], sizes = [8, 32], strides = [1, 1]} : vector<8x128xf32> to vector<8x32xf32>
    %510 = math.tanh %509 : vector<8x32xf32>
    %511 = vector.extract_strided_slice %496 {offsets = [0, 96], sizes = [8, 32], strides = [1, 1]} : vector<8x128xf32> to vector<8x32xf32>
    %512 = arith.negf %511 : vector<8x32xf32>
    %513 = math.exp %512 : vector<8x32xf32>
    %cst_95 = arith.constant 1.000000e+00 : f32
    %514 = vector.broadcast %cst_95 : f32 to vector<8x32xf32>
    %515 = arith.addf %514, %513 : vector<8x32xf32>
    %516 = arith.divf %514, %515 : vector<8x32xf32>
    %517 = arith.mulf %508, %493 : vector<8x32xf32>
    %518 = arith.mulf %502, %510 : vector<8x32xf32>
    %519 = arith.addf %517, %518 : vector<8x32xf32>
    %520 = math.tanh %519 : vector<8x32xf32>
    %521 = arith.mulf %516, %520 : vector<8x32xf32>
    %522 = vector.extract_strided_slice %489 {offsets = [8, 0], sizes = [8, 128], strides = [1, 1]} : vector<64x128xf32> to vector<8x128xf32>
    %cst_96 = arith.constant dense<0.000000e+00> : vector<8x128xf32>
    %523 = tpu.matmul %521, %491, %cst_96 {dimension_numbers = #tpu.dot_dimension_numbers<[1], [0], [0], [1], [0, 0, 1, 1], [], []>} : vector<8x32xf32>, vector<32x128xf32>, vector<8x128xf32> -> vector<8x128xf32>
    %524 = arith.addf %522, %523 : vector<8x128xf32>
    %525 = vector.extract_strided_slice %524 {offsets = [0, 0], sizes = [8, 32], strides = [1, 1]} : vector<8x128xf32> to vector<8x32xf32>
    %526 = arith.negf %525 : vector<8x32xf32>
    %527 = math.exp %526 : vector<8x32xf32>
    %cst_97 = arith.constant 1.000000e+00 : f32
    %528 = vector.broadcast %cst_97 : f32 to vector<8x32xf32>
    %529 = arith.addf %528, %527 : vector<8x32xf32>
    %530 = arith.divf %528, %529 : vector<8x32xf32>
    %531 = vector.extract_strided_slice %524 {offsets = [0, 32], sizes = [8, 32], strides = [1, 1]} : vector<8x128xf32> to vector<8x32xf32>
    %532 = arith.negf %531 : vector<8x32xf32>
    %533 = math.exp %532 : vector<8x32xf32>
    %cst_98 = arith.constant 1.000000e+00 : f32
    %534 = vector.broadcast %cst_98 : f32 to vector<8x32xf32>
    %535 = arith.addf %534, %533 : vector<8x32xf32>
    %536 = arith.divf %534, %535 : vector<8x32xf32>
    %537 = vector.extract_strided_slice %524 {offsets = [0, 64], sizes = [8, 32], strides = [1, 1]} : vector<8x128xf32> to vector<8x32xf32>
    %538 = math.tanh %537 : vector<8x32xf32>
    %539 = vector.extract_strided_slice %524 {offsets = [0, 96], sizes = [8, 32], strides = [1, 1]} : vector<8x128xf32> to vector<8x32xf32>
    %540 = arith.negf %539 : vector<8x32xf32>
    %541 = math.exp %540 : vector<8x32xf32>
    %cst_99 = arith.constant 1.000000e+00 : f32
    %542 = vector.broadcast %cst_99 : f32 to vector<8x32xf32>
    %543 = arith.addf %542, %541 : vector<8x32xf32>
    %544 = arith.divf %542, %543 : vector<8x32xf32>
    %545 = arith.mulf %536, %519 : vector<8x32xf32>
    %546 = arith.mulf %530, %538 : vector<8x32xf32>
    %547 = arith.addf %545, %546 : vector<8x32xf32>
    %548 = math.tanh %547 : vector<8x32xf32>
    %549 = arith.mulf %544, %548 : vector<8x32xf32>
    %550 = vector.extract_strided_slice %489 {offsets = [16, 0], sizes = [8, 128], strides = [1, 1]} : vector<64x128xf32> to vector<8x128xf32>
    %cst_100 = arith.constant dense<0.000000e+00> : vector<8x128xf32>
    %551 = tpu.matmul %549, %491, %cst_100 {dimension_numbers = #tpu.dot_dimension_numbers<[1], [0], [0], [1], [0, 0, 1, 1], [], []>} : vector<8x32xf32>, vector<32x128xf32>, vector<8x128xf32> -> vector<8x128xf32>
    %552 = arith.addf %550, %551 : vector<8x128xf32>
    %553 = vector.extract_strided_slice %552 {offsets = [0, 0], sizes = [8, 32], strides = [1, 1]} : vector<8x128xf32> to vector<8x32xf32>
    %554 = arith.negf %553 : vector<8x32xf32>
    %555 = math.exp %554 : vector<8x32xf32>
    %cst_101 = arith.constant 1.000000e+00 : f32
    %556 = vector.broadcast %cst_101 : f32 to vector<8x32xf32>
    %557 = arith.addf %556, %555 : vector<8x32xf32>
    %558 = arith.divf %556, %557 : vector<8x32xf32>
    %559 = vector.extract_strided_slice %552 {offsets = [0, 32], sizes = [8, 32], strides = [1, 1]} : vector<8x128xf32> to vector<8x32xf32>
    %560 = arith.negf %559 : vector<8x32xf32>
    %561 = math.exp %560 : vector<8x32xf32>
    %cst_102 = arith.constant 1.000000e+00 : f32
    %562 = vector.broadcast %cst_102 : f32 to vector<8x32xf32>
    %563 = arith.addf %562, %561 : vector<8x32xf32>
    %564 = arith.divf %562, %563 : vector<8x32xf32>
    %565 = vector.extract_strided_slice %552 {offsets = [0, 64], sizes = [8, 32], strides = [1, 1]} : vector<8x128xf32> to vector<8x32xf32>
    %566 = math.tanh %565 : vector<8x32xf32>
    %567 = vector.extract_strided_slice %552 {offsets = [0, 96], sizes = [8, 32], strides = [1, 1]} : vector<8x128xf32> to vector<8x32xf32>
    %568 = arith.negf %567 : vector<8x32xf32>
    %569 = math.exp %568 : vector<8x32xf32>
    %cst_103 = arith.constant 1.000000e+00 : f32
    %570 = vector.broadcast %cst_103 : f32 to vector<8x32xf32>
    %571 = arith.addf %570, %569 : vector<8x32xf32>
    %572 = arith.divf %570, %571 : vector<8x32xf32>
    %573 = arith.mulf %564, %547 : vector<8x32xf32>
    %574 = arith.mulf %558, %566 : vector<8x32xf32>
    %575 = arith.addf %573, %574 : vector<8x32xf32>
    %576 = math.tanh %575 : vector<8x32xf32>
    %577 = arith.mulf %572, %576 : vector<8x32xf32>
    %578 = vector.extract_strided_slice %489 {offsets = [24, 0], sizes = [8, 128], strides = [1, 1]} : vector<64x128xf32> to vector<8x128xf32>
    %cst_104 = arith.constant dense<0.000000e+00> : vector<8x128xf32>
    %579 = tpu.matmul %577, %491, %cst_104 {dimension_numbers = #tpu.dot_dimension_numbers<[1], [0], [0], [1], [0, 0, 1, 1], [], []>} : vector<8x32xf32>, vector<32x128xf32>, vector<8x128xf32> -> vector<8x128xf32>
    %580 = arith.addf %578, %579 : vector<8x128xf32>
    %581 = vector.extract_strided_slice %580 {offsets = [0, 0], sizes = [8, 32], strides = [1, 1]} : vector<8x128xf32> to vector<8x32xf32>
    %582 = arith.negf %581 : vector<8x32xf32>
    %583 = math.exp %582 : vector<8x32xf32>
    %cst_105 = arith.constant 1.000000e+00 : f32
    %584 = vector.broadcast %cst_105 : f32 to vector<8x32xf32>
    %585 = arith.addf %584, %583 : vector<8x32xf32>
    %586 = arith.divf %584, %585 : vector<8x32xf32>
    %587 = vector.extract_strided_slice %580 {offsets = [0, 32], sizes = [8, 32], strides = [1, 1]} : vector<8x128xf32> to vector<8x32xf32>
    %588 = arith.negf %587 : vector<8x32xf32>
    %589 = math.exp %588 : vector<8x32xf32>
    %cst_106 = arith.constant 1.000000e+00 : f32
    %590 = vector.broadcast %cst_106 : f32 to vector<8x32xf32>
    %591 = arith.addf %590, %589 : vector<8x32xf32>
    %592 = arith.divf %590, %591 : vector<8x32xf32>
    %593 = vector.extract_strided_slice %580 {offsets = [0, 64], sizes = [8, 32], strides = [1, 1]} : vector<8x128xf32> to vector<8x32xf32>
    %594 = math.tanh %593 : vector<8x32xf32>
    %595 = vector.extract_strided_slice %580 {offsets = [0, 96], sizes = [8, 32], strides = [1, 1]} : vector<8x128xf32> to vector<8x32xf32>
    %596 = arith.negf %595 : vector<8x32xf32>
    %597 = math.exp %596 : vector<8x32xf32>
    %cst_107 = arith.constant 1.000000e+00 : f32
    %598 = vector.broadcast %cst_107 : f32 to vector<8x32xf32>
    %599 = arith.addf %598, %597 : vector<8x32xf32>
    %600 = arith.divf %598, %599 : vector<8x32xf32>
    %601 = arith.mulf %592, %575 : vector<8x32xf32>
    %602 = arith.mulf %586, %594 : vector<8x32xf32>
    %603 = arith.addf %601, %602 : vector<8x32xf32>
    %604 = math.tanh %603 : vector<8x32xf32>
    %605 = arith.mulf %600, %604 : vector<8x32xf32>
    %606 = vector.extract_strided_slice %489 {offsets = [32, 0], sizes = [8, 128], strides = [1, 1]} : vector<64x128xf32> to vector<8x128xf32>
    %cst_108 = arith.constant dense<0.000000e+00> : vector<8x128xf32>
    %607 = tpu.matmul %605, %491, %cst_108 {dimension_numbers = #tpu.dot_dimension_numbers<[1], [0], [0], [1], [0, 0, 1, 1], [], []>} : vector<8x32xf32>, vector<32x128xf32>, vector<8x128xf32> -> vector<8x128xf32>
    %608 = arith.addf %606, %607 : vector<8x128xf32>
    %609 = vector.extract_strided_slice %608 {offsets = [0, 0], sizes = [8, 32], strides = [1, 1]} : vector<8x128xf32> to vector<8x32xf32>
    %610 = arith.negf %609 : vector<8x32xf32>
    %611 = math.exp %610 : vector<8x32xf32>
    %cst_109 = arith.constant 1.000000e+00 : f32
    %612 = vector.broadcast %cst_109 : f32 to vector<8x32xf32>
    %613 = arith.addf %612, %611 : vector<8x32xf32>
    %614 = arith.divf %612, %613 : vector<8x32xf32>
    %615 = vector.extract_strided_slice %608 {offsets = [0, 32], sizes = [8, 32], strides = [1, 1]} : vector<8x128xf32> to vector<8x32xf32>
    %616 = arith.negf %615 : vector<8x32xf32>
    %617 = math.exp %616 : vector<8x32xf32>
    %cst_110 = arith.constant 1.000000e+00 : f32
    %618 = vector.broadcast %cst_110 : f32 to vector<8x32xf32>
    %619 = arith.addf %618, %617 : vector<8x32xf32>
    %620 = arith.divf %618, %619 : vector<8x32xf32>
    %621 = vector.extract_strided_slice %608 {offsets = [0, 64], sizes = [8, 32], strides = [1, 1]} : vector<8x128xf32> to vector<8x32xf32>
    %622 = math.tanh %621 : vector<8x32xf32>
    %623 = vector.extract_strided_slice %608 {offsets = [0, 96], sizes = [8, 32], strides = [1, 1]} : vector<8x128xf32> to vector<8x32xf32>
    %624 = arith.negf %623 : vector<8x32xf32>
    %625 = math.exp %624 : vector<8x32xf32>
    %cst_111 = arith.constant 1.000000e+00 : f32
    %626 = vector.broadcast %cst_111 : f32 to vector<8x32xf32>
    %627 = arith.addf %626, %625 : vector<8x32xf32>
    %628 = arith.divf %626, %627 : vector<8x32xf32>
    %629 = arith.mulf %620, %603 : vector<8x32xf32>
    %630 = arith.mulf %614, %622 : vector<8x32xf32>
    %631 = arith.addf %629, %630 : vector<8x32xf32>
    %632 = math.tanh %631 : vector<8x32xf32>
    %633 = arith.mulf %628, %632 : vector<8x32xf32>
    %634 = vector.extract_strided_slice %489 {offsets = [40, 0], sizes = [8, 128], strides = [1, 1]} : vector<64x128xf32> to vector<8x128xf32>
    %cst_112 = arith.constant dense<0.000000e+00> : vector<8x128xf32>
    %635 = tpu.matmul %633, %491, %cst_112 {dimension_numbers = #tpu.dot_dimension_numbers<[1], [0], [0], [1], [0, 0, 1, 1], [], []>} : vector<8x32xf32>, vector<32x128xf32>, vector<8x128xf32> -> vector<8x128xf32>
    %636 = arith.addf %634, %635 : vector<8x128xf32>
    %637 = vector.extract_strided_slice %636 {offsets = [0, 0], sizes = [8, 32], strides = [1, 1]} : vector<8x128xf32> to vector<8x32xf32>
    %638 = arith.negf %637 : vector<8x32xf32>
    %639 = math.exp %638 : vector<8x32xf32>
    %cst_113 = arith.constant 1.000000e+00 : f32
    %640 = vector.broadcast %cst_113 : f32 to vector<8x32xf32>
    %641 = arith.addf %640, %639 : vector<8x32xf32>
    %642 = arith.divf %640, %641 : vector<8x32xf32>
    %643 = vector.extract_strided_slice %636 {offsets = [0, 32], sizes = [8, 32], strides = [1, 1]} : vector<8x128xf32> to vector<8x32xf32>
    %644 = arith.negf %643 : vector<8x32xf32>
    %645 = math.exp %644 : vector<8x32xf32>
    %cst_114 = arith.constant 1.000000e+00 : f32
    %646 = vector.broadcast %cst_114 : f32 to vector<8x32xf32>
    %647 = arith.addf %646, %645 : vector<8x32xf32>
    %648 = arith.divf %646, %647 : vector<8x32xf32>
    %649 = vector.extract_strided_slice %636 {offsets = [0, 64], sizes = [8, 32], strides = [1, 1]} : vector<8x128xf32> to vector<8x32xf32>
    %650 = math.tanh %649 : vector<8x32xf32>
    %651 = vector.extract_strided_slice %636 {offsets = [0, 96], sizes = [8, 32], strides = [1, 1]} : vector<8x128xf32> to vector<8x32xf32>
    %652 = arith.negf %651 : vector<8x32xf32>
    %653 = math.exp %652 : vector<8x32xf32>
    %cst_115 = arith.constant 1.000000e+00 : f32
    %654 = vector.broadcast %cst_115 : f32 to vector<8x32xf32>
    %655 = arith.addf %654, %653 : vector<8x32xf32>
    %656 = arith.divf %654, %655 : vector<8x32xf32>
    %657 = arith.mulf %648, %631 : vector<8x32xf32>
    %658 = arith.mulf %642, %650 : vector<8x32xf32>
    %659 = arith.addf %657, %658 : vector<8x32xf32>
    %660 = math.tanh %659 : vector<8x32xf32>
    %661 = arith.mulf %656, %660 : vector<8x32xf32>
    %662 = vector.extract_strided_slice %489 {offsets = [48, 0], sizes = [8, 128], strides = [1, 1]} : vector<64x128xf32> to vector<8x128xf32>
    %cst_116 = arith.constant dense<0.000000e+00> : vector<8x128xf32>
    %663 = tpu.matmul %661, %491, %cst_116 {dimension_numbers = #tpu.dot_dimension_numbers<[1], [0], [0], [1], [0, 0, 1, 1], [], []>} : vector<8x32xf32>, vector<32x128xf32>, vector<8x128xf32> -> vector<8x128xf32>
    %664 = arith.addf %662, %663 : vector<8x128xf32>
    %665 = vector.extract_strided_slice %664 {offsets = [0, 0], sizes = [8, 32], strides = [1, 1]} : vector<8x128xf32> to vector<8x32xf32>
    %666 = arith.negf %665 : vector<8x32xf32>
    %667 = math.exp %666 : vector<8x32xf32>
    %cst_117 = arith.constant 1.000000e+00 : f32
    %668 = vector.broadcast %cst_117 : f32 to vector<8x32xf32>
    %669 = arith.addf %668, %667 : vector<8x32xf32>
    %670 = arith.divf %668, %669 : vector<8x32xf32>
    %671 = vector.extract_strided_slice %664 {offsets = [0, 32], sizes = [8, 32], strides = [1, 1]} : vector<8x128xf32> to vector<8x32xf32>
    %672 = arith.negf %671 : vector<8x32xf32>
    %673 = math.exp %672 : vector<8x32xf32>
    %cst_118 = arith.constant 1.000000e+00 : f32
    %674 = vector.broadcast %cst_118 : f32 to vector<8x32xf32>
    %675 = arith.addf %674, %673 : vector<8x32xf32>
    %676 = arith.divf %674, %675 : vector<8x32xf32>
    %677 = vector.extract_strided_slice %664 {offsets = [0, 64], sizes = [8, 32], strides = [1, 1]} : vector<8x128xf32> to vector<8x32xf32>
    %678 = math.tanh %677 : vector<8x32xf32>
    %679 = vector.extract_strided_slice %664 {offsets = [0, 96], sizes = [8, 32], strides = [1, 1]} : vector<8x128xf32> to vector<8x32xf32>
    %680 = arith.negf %679 : vector<8x32xf32>
    %681 = math.exp %680 : vector<8x32xf32>
    %cst_119 = arith.constant 1.000000e+00 : f32
    %682 = vector.broadcast %cst_119 : f32 to vector<8x32xf32>
    %683 = arith.addf %682, %681 : vector<8x32xf32>
    %684 = arith.divf %682, %683 : vector<8x32xf32>
    %685 = arith.mulf %676, %659 : vector<8x32xf32>
    %686 = arith.mulf %670, %678 : vector<8x32xf32>
    %687 = arith.addf %685, %686 : vector<8x32xf32>
    %688 = math.tanh %687 : vector<8x32xf32>
    %689 = arith.mulf %684, %688 : vector<8x32xf32>
    %690 = vector.extract_strided_slice %489 {offsets = [56, 0], sizes = [8, 128], strides = [1, 1]} : vector<64x128xf32> to vector<8x128xf32>
    %cst_120 = arith.constant dense<0.000000e+00> : vector<8x128xf32>
    %691 = tpu.matmul %689, %491, %cst_120 {dimension_numbers = #tpu.dot_dimension_numbers<[1], [0], [0], [1], [0, 0, 1, 1], [], []>} : vector<8x32xf32>, vector<32x128xf32>, vector<8x128xf32> -> vector<8x128xf32>
    %692 = arith.addf %690, %691 : vector<8x128xf32>
    %693 = vector.extract_strided_slice %692 {offsets = [0, 0], sizes = [8, 32], strides = [1, 1]} : vector<8x128xf32> to vector<8x32xf32>
    %694 = arith.negf %693 : vector<8x32xf32>
    %695 = math.exp %694 : vector<8x32xf32>
    %cst_121 = arith.constant 1.000000e+00 : f32
    %696 = vector.broadcast %cst_121 : f32 to vector<8x32xf32>
    %697 = arith.addf %696, %695 : vector<8x32xf32>
    %698 = arith.divf %696, %697 : vector<8x32xf32>
    %699 = vector.extract_strided_slice %692 {offsets = [0, 32], sizes = [8, 32], strides = [1, 1]} : vector<8x128xf32> to vector<8x32xf32>
    %700 = arith.negf %699 : vector<8x32xf32>
    %701 = math.exp %700 : vector<8x32xf32>
    %cst_122 = arith.constant 1.000000e+00 : f32
    %702 = vector.broadcast %cst_122 : f32 to vector<8x32xf32>
    %703 = arith.addf %702, %701 : vector<8x32xf32>
    %704 = arith.divf %702, %703 : vector<8x32xf32>
    %705 = vector.extract_strided_slice %692 {offsets = [0, 64], sizes = [8, 32], strides = [1, 1]} : vector<8x128xf32> to vector<8x32xf32>
    %706 = math.tanh %705 : vector<8x32xf32>
    %707 = vector.extract_strided_slice %692 {offsets = [0, 96], sizes = [8, 32], strides = [1, 1]} : vector<8x128xf32> to vector<8x32xf32>
    %708 = arith.negf %707 : vector<8x32xf32>
    %709 = math.exp %708 : vector<8x32xf32>
    %cst_123 = arith.constant 1.000000e+00 : f32
    %710 = vector.broadcast %cst_123 : f32 to vector<8x32xf32>
    %711 = arith.addf %710, %709 : vector<8x32xf32>
    %712 = arith.divf %710, %711 : vector<8x32xf32>
    %713 = arith.mulf %704, %687 : vector<8x32xf32>
    %714 = arith.mulf %698, %706 : vector<8x32xf32>
    %715 = arith.addf %713, %714 : vector<8x32xf32>
    %716 = math.tanh %715 : vector<8x32xf32>
    %717 = arith.mulf %712, %716 : vector<8x32xf32>
    %718 = vector.extract_strided_slice %474 {offsets = [56, 0], sizes = [8, 32], strides = [1, 1]} : vector<64x32xf32> to vector<8x32xf32>
    %719 = vector.extract_strided_slice %475 {offsets = [56, 0], sizes = [8, 32], strides = [1, 1]} : vector<64x32xf32> to vector<8x32xf32>
    %720 = vector.extract_strided_slice %476 {offsets = [1, 0, 0], sizes = [1, 64, 128], strides = [1, 1, 1]} : vector<2x64x128xf32> to vector<1x64x128xf32>
    %721 = vector.shape_cast %720 : vector<1x64x128xf32> to vector<64x128xf32>
    %722 = vector.extract_strided_slice %478 {offsets = [1, 0, 0], sizes = [1, 1, 128], strides = [1, 1, 1]} : vector<2x1x128xf32> to vector<1x1x128xf32>
    %723 = vector.shape_cast %722 : vector<1x1x128xf32> to vector<1x128xf32>
    %724 = vector.extract_strided_slice %721 {offsets = [0, 0], sizes = [32, 128], strides = [1, 1]} : vector<64x128xf32> to vector<32x128xf32>
    %cst_124 = arith.constant dense<0.000000e+00> : vector<8x128xf32>
    %725 = tpu.matmul %718, %724, %cst_124 {dimension_numbers = #tpu.dot_dimension_numbers<[1], [0], [0], [1], [0, 0, 1, 1], [], []>} : vector<8x32xf32>, vector<32x128xf32>, vector<8x128xf32> -> vector<8x128xf32>
    %726 = vector.broadcast %723 : vector<1x128xf32> to vector<8x128xf32>
    %727 = arith.addf %726, %725 : vector<8x128xf32>
    %728 = vector.extract_strided_slice %721 {offsets = [32, 0], sizes = [32, 128], strides = [1, 1]} : vector<64x128xf32> to vector<32x128xf32>
    %cst_125 = arith.constant dense<0.000000e+00> : vector<8x128xf32>
    %729 = tpu.matmul %719, %728, %cst_125 {dimension_numbers = #tpu.dot_dimension_numbers<[1], [0], [0], [1], [0, 0, 1, 1], [], []>} : vector<8x32xf32>, vector<32x128xf32>, vector<8x128xf32> -> vector<8x128xf32>
    %730 = arith.addf %727, %729 : vector<8x128xf32>
    %cst_126 = arith.constant 0.000000e+00 : f32
    %731 = vector.broadcast %cst_126 : f32 to vector<8x32xf32>
    %732 = vector.extract_strided_slice %730 {offsets = [0, 0], sizes = [8, 32], strides = [1, 1]} : vector<8x128xf32> to vector<8x32xf32>
    %733 = arith.negf %732 : vector<8x32xf32>
    %734 = math.exp %733 : vector<8x32xf32>
    %cst_127 = arith.constant 1.000000e+00 : f32
    %735 = vector.broadcast %cst_127 : f32 to vector<8x32xf32>
    %736 = arith.addf %735, %734 : vector<8x32xf32>
    %737 = arith.divf %735, %736 : vector<8x32xf32>
    %738 = vector.extract_strided_slice %730 {offsets = [0, 32], sizes = [8, 32], strides = [1, 1]} : vector<8x128xf32> to vector<8x32xf32>
    %739 = arith.negf %738 : vector<8x32xf32>
    %740 = math.exp %739 : vector<8x32xf32>
    %cst_128 = arith.constant 1.000000e+00 : f32
    %741 = vector.broadcast %cst_128 : f32 to vector<8x32xf32>
    %742 = arith.addf %741, %740 : vector<8x32xf32>
    %743 = arith.divf %741, %742 : vector<8x32xf32>
    %744 = vector.extract_strided_slice %730 {offsets = [0, 64], sizes = [8, 32], strides = [1, 1]} : vector<8x128xf32> to vector<8x32xf32>
    %745 = math.tanh %744 : vector<8x32xf32>
    %746 = vector.extract_strided_slice %730 {offsets = [0, 96], sizes = [8, 32], strides = [1, 1]} : vector<8x128xf32> to vector<8x32xf32>
    %747 = arith.negf %746 : vector<8x32xf32>
    %748 = math.exp %747 : vector<8x32xf32>
    %cst_129 = arith.constant 1.000000e+00 : f32
    %749 = vector.broadcast %cst_129 : f32 to vector<8x32xf32>
    %750 = arith.addf %749, %748 : vector<8x32xf32>
    %751 = arith.divf %749, %750 : vector<8x32xf32>
    %752 = arith.mulf %743, %731 : vector<8x32xf32>
    %753 = arith.mulf %737, %745 : vector<8x32xf32>
    %754 = arith.addf %752, %753 : vector<8x32xf32>
    %755 = math.tanh %754 : vector<8x32xf32>
    %756 = arith.mulf %751, %755 : vector<8x32xf32>
    %c0_130 = arith.constant 0 : index
    %c0_131 = arith.constant 0 : index
    %757 = vector.load %arg7[%c0_130, %c0_131] : memref<64x10xf32, #tpu.memory_space<vmem>>, vector<64x10xf32>
    %758 = vector.extract_strided_slice %757 {offsets = [0, 0], sizes = [32, 10], strides = [1, 1]} : vector<64x10xf32> to vector<32x10xf32>
    %cst_132 = arith.constant dense<0.000000e+00> : vector<8x10xf32>
    %759 = tpu.matmul %717, %758, %cst_132 {dimension_numbers = #tpu.dot_dimension_numbers<[1], [0], [0], [1], [0, 0, 1, 1], [], []>} : vector<8x32xf32>, vector<32x10xf32>, vector<8x10xf32> -> vector<8x10xf32>
    %760 = vector.extract_strided_slice %757 {offsets = [32, 0], sizes = [32, 10], strides = [1, 1]} : vector<64x10xf32> to vector<32x10xf32>
    %cst_133 = arith.constant dense<0.000000e+00> : vector<8x10xf32>
    %761 = tpu.matmul %756, %760, %cst_133 {dimension_numbers = #tpu.dot_dimension_numbers<[1], [0], [0], [1], [0, 0, 1, 1], [], []>} : vector<8x32xf32>, vector<32x10xf32>, vector<8x10xf32> -> vector<8x10xf32>
    %762 = arith.addf %759, %761 : vector<8x10xf32>
    %c0_134 = arith.constant 0 : index
    %c0_135 = arith.constant 0 : index
    %763 = vector.load %arg8[%c0_134, %c0_135] : memref<1x10xf32, #tpu.memory_space<vmem>>, vector<1x10xf32>
    %764 = vector.broadcast %763 : vector<1x10xf32> to vector<8x10xf32>
    %765 = arith.addf %762, %764 : vector<8x10xf32>
    %c0_136 = arith.constant 0 : index
    %c0_137 = arith.constant 0 : index
    %766 = vector.load %arg9[%c0_136, %c0_137] : memref<8x10xf32, #tpu.memory_space<vmem>>, vector<8x10xf32>
    tpu.vector_store %arg9[%c0_136, %c0_137], %765 {strides = array<i32>} : memref<8x10xf32, #tpu.memory_space<vmem>>, vector<8x10xf32>,
    return
  }
}

</mosaic_0001>

<llo_original>
// kernel: tpu_custom_call.1
$region0: #{tpu_custom_call.1}
  #allocation0 [shape = 'u32[]', space=smem, size = 0x4, offset = 0x4, fixed_abs, tag = 'smem constant byte address 0x4 - core index']
  #allocation1 [shape = 'u32[144,128]{1,0:T(1,128)}', space=vmem, size = 0x12000, scoped, tag = 'internal scratch']
  %s0 = inlined_call_operand.vmem [shape: f32[64,28], index: 0, kind: input, shape index: {}]
  %s1 = inlined_call_operand.vmem [shape: f32[2,28,128], index: 1, kind: input, shape index: {}]
  %s2 = inlined_call_operand.vmem [shape: f32[2,32,128], index: 2, kind: input, shape index: {}]
  %s3 = inlined_call_operand.vmem [shape: f32[2,1,128], index: 3, kind: input, shape index: {}]
  %s4 = inlined_call_operand.vmem [shape: f32[2,64,128], index: 4, kind: input, shape index: {}]
  %s5 = inlined_call_operand.vmem [shape: f32[2,32,128], index: 5, kind: input, shape index: {}]
  %s6 = inlined_call_operand.vmem [shape: f32[2,1,128], index: 6, kind: input, shape index: {}]
  %s7 = inlined_call_operand.vmem [shape: f32[64,10], index: 7, kind: input, shape index: {}]
  %s8 = inlined_call_operand.vmem [shape: f32[1,10], index: 8, kind: input, shape index: {}]
  %s9 = inlined_call_operand.hbm [shape: f32[8,10], index: 9, kind: output, shape index: {}]
  %s10 = sld [smem:[#allocation0]]
  $region46: #{tpu_custom_call.1} parent=0
    _
  %s12 = ssub.s32 1, %s10
  %s13 = scalar_select 0, %s12, %s10
  $region1: #{tpu_custom_call.1} parent=0
    #allocation2 [shape = 'u8[4096]{0}', space=vmem, size = 0x1000, scoped, tag = 'output window, operand 0, single buffered']
    #allocation3 [shape = 's32[1]{0}', space=sflag, size = 0x4, scoped, tag = 'scoped memory for tpu_custom_call.1']
    %14 = vsyncpa [#allocation3], 0
    // Predicated region
    $region2: #{tpu_custom_call.1} parent=1 // pred_check
      _
    $region3: #{tpu_custom_call.1} parent=1 // pred_check_branch
      %16 = sbr.rel (0) target = $region5
    $region4: #{tpu_custom_call.1} parent=1 // pred_region
      _
    $region5: #{tpu_custom_call.1} parent=1 // pred_fallthru
      _
    // Predicated region
    $region6: #{tpu_custom_call.1} parent=1 // pred_check
      _
    $region7: #{tpu_custom_call.1} parent=1 // pred_check_branch
      %18 = sbr.rel (0) target = $region9
    $region8: #{tpu_custom_call.1} parent=1 // pred_region
      _
    $region9: #{tpu_custom_call.1} parent=1 // pred_fallthru
      _
    // Predicated region
    $region10: #{tpu_custom_call.1} parent=1 // pred_check
      _
    $region11: #{tpu_custom_call.1} parent=1 // pred_check_branch
      %20 = sbr.rel (0) target = $region13
    $region12: #{tpu_custom_call.1} parent=1 // pred_region
      _
    $region13: #{tpu_custom_call.1} parent=1 // pred_fallthru
      _
    // Predicated region
    $region14: #{tpu_custom_call.1} parent=1 // pred_check
      _
    $region15: #{tpu_custom_call.1} parent=1 // pred_check_branch
      %22 = sbr.rel (0) target = $region17
    $region16: #{tpu_custom_call.1} parent=1 // pred_region
      _
    $region17: #{tpu_custom_call.1} parent=1 // pred_fallthru
      _
    // Predicated region
    $region18: #{tpu_custom_call.1} parent=1 // pred_check
      _
    $region19: #{tpu_custom_call.1} parent=1 // pred_check_branch
      %24 = sbr.rel (0) target = $region21
    $region20: #{tpu_custom_call.1} parent=1 // pred_region
      _
    $region21: #{tpu_custom_call.1} parent=1 // pred_fallthru
      _
    // Predicated region
    $region22: #{tpu_custom_call.1} parent=1 // pred_check
      _
    $region23: #{tpu_custom_call.1} parent=1 // pred_check_branch
      %26 = sbr.rel (0) target = $region25
    $region24: #{tpu_custom_call.1} parent=1 // pred_region
      _
    $region25: #{tpu_custom_call.1} parent=1 // pred_fallthru
      _
    // Predicated region
    $region26: #{tpu_custom_call.1} parent=1 // pred_check
      _
    $region27: #{tpu_custom_call.1} parent=1 // pred_check_branch
      %28 = sbr.rel (0) target = $region29
    $region28: #{tpu_custom_call.1} parent=1 // pred_region
      _
    $region29: #{tpu_custom_call.1} parent=1 // pred_fallthru
      _
    // Predicated region
    $region30: #{tpu_custom_call.1} parent=1 // pred_check
      _
    $region31: #{tpu_custom_call.1} parent=1 // pred_check_branch
      %30 = sbr.rel (0) target = $region33
    $region32: #{tpu_custom_call.1} parent=1 // pred_region
      _
    $region33: #{tpu_custom_call.1} parent=1 // pred_fallthru
      _
    // Predicated region
    $region34: #{tpu_custom_call.1} parent=1 // pred_check
      _
    $region35: #{tpu_custom_call.1} parent=1 // pred_check_branch
      %32 = sbr.rel (0) target = $region37
    $region36: #{tpu_custom_call.1} parent=1 // pred_region
      _
    $region37: #{tpu_custom_call.1} parent=1 // pred_fallthru
      _
    %v33 = vld [vmem:[%s0] sm:$0xff]
    %v34 = vld [vmem:[%s0 + $0x8] sm:$0xff]
    %v35 = vld [vmem:[%s0 + $0x10] sm:$0xff]
    %v36 = vld [vmem:[%s0 + $0x18] sm:$0xff]
    %v37 = vld [vmem:[%s0 + $0x20] sm:$0xff]
    %v38 = vld [vmem:[%s0 + $0x28] sm:$0xff]
    %v39 = vld [vmem:[%s0 + $0x30] sm:$0xff]
    %v40 = vld [vmem:[%s0 + $0x38] sm:$0xff]
    %v41 = vld [vmem:[%s1] sm:$0xff]
    %v42 = vld [vmem:[%s1 + $0x8] sm:$0xff]
    %v43 = vld [vmem:[%s1 + $0x10] sm:$0xff]
    %v44 = vld [vmem:[%s1 + $0x18] sm:$0xf]
    %v45 = vld [vmem:[%s1 + $0x20] sm:$0xff]
    %v46 = vld [vmem:[%s1 + $0x28] sm:$0xff]
    %v47 = vld [vmem:[%s1 + $0x30] sm:$0xff]
    %v48 = vld [vmem:[%s1 + $0x38] sm:$0xf]
    %v49 = vld [vmem:[%s2] sm:$0xff]
    %v50 = vld [vmem:[%s2 + $0x8] sm:$0xff]
    %v51 = vld [vmem:[%s2 + $0x10] sm:$0xff]
    %v52 = vld [vmem:[%s2 + $0x18] sm:$0xff]
    %v53 = vld [vmem:[%s2 + $0x20] sm:$0xff]
    %v54 = vld [vmem:[%s2 + $0x28] sm:$0xff]
    %v55 = vld [vmem:[%s2 + $0x30] sm:$0xff]
    %v56 = vld [vmem:[%s2 + $0x38] sm:$0xff]
    %v57 = vld [vmem:[%s3] sm:$0x1]
    %v58 = vld [vmem:[%s3 + $0x1] sm:$0x1]
    %vm59 = vcmask 228352
    %v61 = vsel %vm59, %v33, 0
    %v64 = vsel %vm59, %v34, 0
    %v67 = vsel %vm59, %v35, 0
    %v70 = vsel %vm59, %v36, 0
    %v73 = vsel %vm59, %v37, 0
    %v76 = vsel %vm59, %v38, 0
    %v79 = vsel %vm59, %v39, 0
    %v82 = vsel %vm59, %v40, 0
    %vm84 = vcmask 1043456
    %v86 = vsel %vm84, %v44, 0
    %88 = vmatprep.subr.mxu0 0.0
    %89 = vmatpush1.msra.mxu0 0.0
    %90 = vmatprep.subr.mxu0 0.0
    %91 = vmatpush1.msra.mxu0 0.0
    %92 = vmatprep.subr.mxu0 0.0
    %93 = vmatpush1.msra.mxu0 0.0
    %94 = vmatprep.subr.mxu0 0.0
    %95 = vmatpush1.msra.mxu0 0.0
    %96 = vmatprep.subr.mxu0 0.0
    %97 = vmatpush1.msra.mxu0 0.0
    %98 = vmatprep.subr.mxu0 0.0
    %99 = vmatpush1.msra.mxu0 0.0
    %100 = vmatprep.subr.mxu0 0.0
    %101 = vmatpush1.msra.mxu0 0.0
    %102 = vmatprep.subr.mxu0 0.0
    %103 = vmatpush1.msra.mxu0 0.0
    %104 = vmatprep.subr.mxu0 0.0
    %105 = vmatpush1.msra.mxu0 0.0
    %106 = vmatprep.subr.mxu0 0.0
    %107 = vmatpush1.msra.mxu0 0.0
    %108 = vmatprep.subr.mxu0 0.0
    %109 = vmatpush1.msra.mxu0 0.0
    %110 = vmatprep.subr.mxu0 0.0
    %111 = vmatpush1.msra.mxu0 0.0
    %112 = vmatprep.subr.mxu0 0.0
    %113 = vmatpush1.msra.mxu0 %v86
    %114 = vmatprep.subr.mxu0 0.0
    %115 = vmatpush1.msra.mxu0 %v43
    %116 = vmatprep.subr.mxu0 0.0
    %117 = vmatpush1.msra.mxu0 %v42
    %118 = vmatprep.subr.mxu0 0.0
    %119 = vmatpush1.msra.mxu0 %v41
    %120 = vmatprep.subr.mxu0 0.0
    %121 = vmatpush2.msra.mxu0 0.0
    %122 = vmatprep.subr.mxu0 0.0
    %123 = vmatpush2.msra.mxu0 0.0
    %124 = vmatprep.subr.mxu0 0.0
    %125 = vmatpush2.msra.mxu0 0.0
    %126 = vmatprep.subr.mxu0 0.0
    %127 = vmatpush2.msra.mxu0 0.0
    %128 = vmatprep.subr.mxu0 0.0
    %129 = vmatpush2.msra.mxu0 0.0
    %130 = vmatprep.subr.mxu0 0.0
    %131 = vmatpush2.msra.mxu0 0.0
    %132 = vmatprep.subr.mxu0 0.0
    %133 = vmatpush2.msra.mxu0 0.0
    %134 = vmatprep.subr.mxu0 0.0
    %135 = vmatpush2.msra.mxu0 0.0
    %136 = vmatprep.subr.mxu0 0.0
    %137 = vmatpush2.msra.mxu0 0.0
    %138 = vmatprep.subr.mxu0 0.0
    %139 = vmatpush2.msra.mxu0 0.0
    %140 = vmatprep.subr.mxu0 0.0
    %141 = vmatpush2.msra.mxu0 0.0
    %142 = vmatprep.subr.mxu0 0.0
    %143 = vmatpush2.msra.mxu0 0.0
    %144 = vmatprep.subr.mxu0 0.0
    %145 = vmatpush2.msra.mxu0 0.0
    %146 = vmatprep.subr.mxu0 0.0
    %147 = vmatpush2.msra.mxu0 0.0
    %148 = vmatprep.subr.mxu0 0.0
    %149 = vmatpush2.msra.mxu0 0.0
    %150 = vmatprep.subr.mxu0 0.0
    %151 = vmatpush2.msra.mxu0 0.0
    %152 = vmatprep.mubr.f32.mxu0 0.0
    %153 = vmatmul.mubr.f32.gmra.mxu0 %v61
    %v154 = vpop.f32.mrf.mxu0
    %v155 = vadd.f32 0.0, %v154
    %v156 = vpop.f32.mrf.mxu0
    %157 = vmatprep.mubr.f32.mxu0 0.0
    %158 = vmatmul.mubr.f32.gmra.mxu0 %v64
    %v159 = vpop.f32.mrf.mxu0
    %v160 = vadd.f32 0.0, %v159
    %v161 = vpop.f32.mrf.mxu0
    %162 = vmatprep.mubr.f32.mxu0 0.0
    %163 = vmatmul.mubr.f32.gmra.mxu0 %v67
    %v164 = vpop.f32.mrf.mxu0
    %v165 = vadd.f32 0.0, %v164
    %v166 = vpop.f32.mrf.mxu0
    %167 = vmatprep.mubr.f32.mxu0 0.0
    %168 = vmatmul.mubr.f32.gmra.mxu0 %v70
    %v169 = vpop.f32.mrf.mxu0
    %v170 = vadd.f32 0.0, %v169
    %v171 = vpop.f32.mrf.mxu0
    %172 = vmatprep.mubr.f32.mxu0 0.0
    %173 = vmatmul.mubr.f32.gmra.mxu0 %v73
    %v174 = vpop.f32.mrf.mxu0
    %v175 = vadd.f32 0.0, %v174
    %v176 = vpop.f32.mrf.mxu0
    %177 = vmatprep.mubr.f32.mxu0 0.0
    %178 = vmatmul.mubr.f32.gmra.mxu0 %v76
    %v179 = vpop.f32.mrf.mxu0
    %v180 = vadd.f32 0.0, %v179
    %v181 = vpop.f32.mrf.mxu0
    %182 = vmatprep.mubr.f32.mxu0 0.0
    %183 = vmatmul.mubr.f32.gmra.mxu0 %v79
    %v184 = vpop.f32.mrf.mxu0
    %v185 = vadd.f32 0.0, %v184
    %v186 = vpop.f32.mrf.mxu0
    %187 = vmatprep.mubr.f32.mxu0 0.0
    %188 = vmatmul.mubr.f32.gmra.mxu0 %v82
    %v189 = vpop.f32.mrf.mxu0
    %v190 = vadd.f32 0.0, %v189
    %v191 = vpop.f32.mrf.mxu0
    %192 = vdwg.mxu0
    %v194 = vlaneseq
    %v195 = vshrl.u32 %v194, 7
    %v196 = vsub.s32 0, %v195
    %v197 = vrot.slane %v57, %v196
    %v199 = vadd.f32 %v197, %v155
    %v200 = vadd.f32 %v197, %v160
    %v201 = vadd.f32 %v197, %v165
    %v202 = vadd.f32 %v197, %v170
    %v203 = vadd.f32 %v197, %v175
    %v204 = vadd.f32 %v197, %v180
    %v205 = vadd.f32 %v197, %v185
    %v206 = vadd.f32 %v197, %v190
    %vm207 = vcmask 261120
    %v209 = vsel %vm207, 0.0, 0
    %211 = vmatprep.subr.mxu0 0.0
    %212 = vmatpush1.msra.mxu0 0.0
    %213 = vmatprep.subr.mxu0 0.0
    %214 = vmatpush1.msra.mxu0 0.0
    %215 = vmatprep.subr.mxu0 0.0
    %216 = vmatpush1.msra.mxu0 0.0
    %217 = vmatprep.subr.mxu0 0.0
    %218 = vmatpush1.msra.mxu0 0.0
    %219 = vmatprep.subr.mxu0 0.0
    %220 = vmatpush1.msra.mxu0 0.0
    %221 = vmatprep.subr.mxu0 0.0
    %222 = vmatpush1.msra.mxu0 0.0
    %223 = vmatprep.subr.mxu0 0.0
    %224 = vmatpush1.msra.mxu0 0.0
    %225 = vmatprep.subr.mxu0 0.0
    %226 = vmatpush1.msra.mxu0 0.0
    %227 = vmatprep.subr.mxu0 0.0
    %228 = vmatpush1.msra.mxu0 0.0
    %229 = vmatprep.subr.mxu0 0.0
    %230 = vmatpush1.msra.mxu0 0.0
    %231 = vmatprep.subr.mxu0 0.0
    %232 = vmatpush1.msra.mxu0 0.0
    %233 = vmatprep.subr.mxu0 0.0
    %234 = vmatpush1.msra.mxu0 0.0
    %235 = vmatprep.subr.mxu0 0.0
    %236 = vmatpush1.msra.mxu0 %v52
    %237 = vmatprep.subr.mxu0 0.0
    %238 = vmatpush1.msra.mxu0 %v51
    %239 = vmatprep.subr.mxu0 0.0
    %240 = vmatpush1.msra.mxu0 %v50
    %241 = vmatprep.subr.mxu0 0.0
    %242 = vmatpush1.msra.mxu0 %v49
    %243 = vmatprep.subr.mxu0 0.0
    %244 = vmatpush2.msra.mxu0 0.0
    %245 = vmatprep.subr.mxu0 0.0
    %246 = vmatpush2.msra.mxu0 0.0
    %247 = vmatprep.subr.mxu0 0.0
    %248 = vmatpush2.msra.mxu0 0.0
    %249 = vmatprep.subr.mxu0 0.0
    %250 = vmatpush2.msra.mxu0 0.0
    %251 = vmatprep.subr.mxu0 0.0
    %252 = vmatpush2.msra.mxu0 0.0
    %253 = vmatprep.subr.mxu0 0.0
    %254 = vmatpush2.msra.mxu0 0.0
    %255 = vmatprep.subr.mxu0 0.0
    %256 = vmatpush2.msra.mxu0 0.0
    %257 = vmatprep.subr.mxu0 0.0
    %258 = vmatpush2.msra.mxu0 0.0
    %259 = vmatprep.subr.mxu0 0.0
    %260 = vmatpush2.msra.mxu0 0.0
    %261 = vmatprep.subr.mxu0 0.0
    %262 = vmatpush2.msra.mxu0 0.0
    %263 = vmatprep.subr.mxu0 0.0
    %264 = vmatpush2.msra.mxu0 0.0
    %265 = vmatprep.subr.mxu0 0.0
    %266 = vmatpush2.msra.mxu0 0.0
    %267 = vmatprep.subr.mxu0 0.0
    %268 = vmatpush2.msra.mxu0 0.0
    %269 = vmatprep.subr.mxu0 0.0
    %270 = vmatpush2.msra.mxu0 0.0
    %271 = vmatprep.subr.mxu0 0.0
    %272 = vmatpush2.msra.mxu0 0.0
    %273 = vmatprep.subr.mxu0 0.0
    %274 = vmatpush2.msra.mxu0 0.0
    %275 = vmatprep.mubr.f32.mxu0 0.0
    %276 = vmatmul.mubr.f32.gmra.mxu0 %v209
    %v277 = vpop.f32.mrf.mxu0
    %v278 = vadd.f32 0.0, %v277
    %v279 = vpop.f32.mrf.mxu0
    %280 = vdwg.mxu0
    %v281 = vadd.f32 %v199, %v278
    %v282 = vxor.u32 %v281, 2147483648
    %v283 = vmul.f32 %v282, 1.442695
    %v284 = vpow.pop %v283
    %v285 = vadd.f32 %v284, 1.0
    %v286 = vrcp.pop %v285
    %v287 = vmul.f32 1.0, %v286
    %v288 = vtanh.pop %v281
    %v289 = vmul.f32 %v287, 0.0
    %291 = vrot.lane.b32.xlu0 %v288, 64
    %v292 = vpop.permute.xlu0 %291
    %v294 = vmul.f32 %v287, %v292
    %296 = vrot.lane.b32.xlu0 %v294, 32
    %v297 = vpop.permute.xlu0 %296
    %v299 = vadd.f32 %v289, %v297
    %v300 = vtanh.pop %v299
    %302 = vrot.lane.b32.xlu0 %v300, 64
    %v303 = vpop.permute.xlu0 %302
    %v305 = vmul.f32 %v287, %v303
    %307 = vrot.lane.b32.xlu0 %v305, 32
    %v308 = vpop.permute.xlu0 %307
    %v309 = vsel %vm207, %v308, 0
    %311 = vmatprep.subr.mxu0 0.0
    %312 = vmatpush1.msra.mxu0 0.0
    %313 = vmatprep.subr.mxu0 0.0
    %314 = vmatpush1.msra.mxu0 0.0
    %315 = vmatprep.subr.mxu0 0.0
    %316 = vmatpush1.msra.mxu0 0.0
    %317 = vmatprep.subr.mxu0 0.0
    %318 = vmatpush1.msra.mxu0 0.0
    %319 = vmatprep.subr.mxu0 0.0
    %320 = vmatpush1.msra.mxu0 0.0
    %321 = vmatprep.subr.mxu0 0.0
    %322 = vmatpush1.msra.mxu0 0.0
    %323 = vmatprep.subr.mxu0 0.0
    %324 = vmatpush1.msra.mxu0 0.0
    %325 = vmatprep.subr.mxu0 0.0
    %326 = vmatpush1.msra.mxu0 0.0
    %327 = vmatprep.subr.mxu0 0.0
    %328 = vmatpush1.msra.mxu0 0.0
    %329 = vmatprep.subr.mxu0 0.0
    %330 = vmatpush1.msra.mxu0 0.0
    %331 = vmatprep.subr.mxu0 0.0
    %332 = vmatpush1.msra.mxu0 0.0
    %333 = vmatprep.subr.mxu0 0.0
    %334 = vmatpush1.msra.mxu0 0.0
    %335 = vmatprep.subr.mxu0 0.0
    %336 = vmatpush1.msra.mxu0 %v52
    %337 = vmatprep.subr.mxu0 0.0
    %338 = vmatpush1.msra.mxu0 %v51
    %339 = vmatprep.subr.mxu0 0.0
    %340 = vmatpush1.msra.mxu0 %v50
    %341 = vmatprep.subr.mxu0 0.0
    %342 = vmatpush1.msra.mxu0 %v49
    %343 = vmatprep.subr.mxu0 0.0
    %344 = vmatpush2.msra.mxu0 0.0
    %345 = vmatprep.subr.mxu0 0.0
    %346 = vmatpush2.msra.mxu0 0.0
    %347 = vmatprep.subr.mxu0 0.0
    %348 = vmatpush2.msra.mxu0 0.0
    %349 = vmatprep.subr.mxu0 0.0
    %350 = vmatpush2.msra.mxu0 0.0
    %351 = vmatprep.subr.mxu0 0.0
    %352 = vmatpush2.msra.mxu0 0.0
    %353 = vmatprep.subr.mxu0 0.0
    %354 = vmatpush2.msra.mxu0 0.0
    %355 = vmatprep.subr.mxu0 0.0
    %356 = vmatpush2.msra.mxu0 0.0
    %357 = vmatprep.subr.mxu0 0.0
    %358 = vmatpush2.msra.mxu0 0.0
    %359 = vmatprep.subr.mxu0 0.0
    %360 = vmatpush2.msra.mxu0 0.0
    %361 = vmatprep.subr.mxu0 0.0
    %362 = vmatpush2.msra.mxu0 0.0
    %363 = vmatprep.subr.mxu0 0.0
    %364 = vmatpush2.msra.mxu0 0.0
    %365 = vmatprep.subr.mxu0 0.0
    %366 = vmatpush2.msra.mxu0 0.0
    %367 = vmatprep.subr.mxu0 0.0
    %368 = vmatpush2.msra.mxu0 0.0
    %369 = vmatprep.subr.mxu0 0.0
    %370 = vmatpush2.msra.mxu0 0.0
    %371 = vmatprep.subr.mxu0 0.0
    %372 = vmatpush2.msra.mxu0 0.0
    %373 = vmatprep.subr.mxu0 0.0
    %374 = vmatpush2.msra.mxu0 0.0
    %375 = vmatprep.mubr.f32.mxu0 0.0
    %376 = vmatmul.mubr.f32.gmra.mxu0 %v309
    %v377 = vpop.f32.mrf.mxu0
    %v378 = vadd.f32 0.0, %v377
    %v379 = vpop.f32.mrf.mxu0
    %380 = vdwg.mxu0
    %v381 = vadd.f32 %v200, %v378
    %v382 = vxor.u32 %v381, 2147483648
    %v383 = vmul.f32 %v382, 1.442695
    %v384 = vpow.pop %v383
    %v385 = vadd.f32 %v384, 1.0
    %v386 = vrcp.pop %v385
    %v387 = vmul.f32 1.0, %v386
    %v388 = vtanh.pop %v381
    %v389 = vmul.f32 %v387, %v299
    %391 = vrot.lane.b32.xlu0 %v388, 64
    %v392 = vpop.permute.xlu0 %391
    %v394 = vmul.f32 %v387, %v392
    %396 = vrot.lane.b32.xlu0 %v394, 32
    %v397 = vpop.permute.xlu0 %396
    %v399 = vadd.f32 %v389, %v397
    %v400 = vtanh.pop %v399
    %402 = vrot.lane.b32.xlu0 %v400, 64
    %v403 = vpop.permute.xlu0 %402
    %v405 = vmul.f32 %v387, %v403
    %407 = vrot.lane.b32.xlu0 %v405, 32
    %v408 = vpop.permute.xlu0 %407
    %v409 = vsel %vm207, %v408, 0
    %411 = vmatprep.subr.mxu0 0.0
    %412 = vmatpush1.msra.mxu0 0.0
    %413 = vmatprep.subr.mxu0 0.0
    %414 = vmatpush1.msra.mxu0 0.0
    %415 = vmatprep.subr.mxu0 0.0
    %416 = vmatpush1.msra.mxu0 0.0
    %417 = vmatprep.subr.mxu0 0.0
    %418 = vmatpush1.msra.mxu0 0.0
    %419 = vmatprep.subr.mxu0 0.0
    %420 = vmatpush1.msra.mxu0 0.0
    %421 = vmatprep.subr.mxu0 0.0
    %422 = vmatpush1.msra.mxu0 0.0
    %423 = vmatprep.subr.mxu0 0.0
    %424 = vmatpush1.msra.mxu0 0.0
    %425 = vmatprep.subr.mxu0 0.0
    %426 = vmatpush1.msra.mxu0 0.0
    %427 = vmatprep.subr.mxu0 0.0
    %428 = vmatpush1.msra.mxu0 0.0
    %429 = vmatprep.subr.mxu0 0.0
    %430 = vmatpush1.msra.mxu0 0.0
    %431 = vmatprep.subr.mxu0 0.0
    %432 = vmatpush1.msra.mxu0 0.0
    %433 = vmatprep.subr.mxu0 0.0
    %434 = vmatpush1.msra.mxu0 0.0
    %435 = vmatprep.subr.mxu0 0.0
    %436 = vmatpush1.msra.mxu0 %v52
    %437 = vmatprep.subr.mxu0 0.0
    %438 = vmatpush1.msra.mxu0 %v51
    %439 = vmatprep.subr.mxu0 0.0
    %440 = vmatpush1.msra.mxu0 %v50
    %441 = vmatprep.subr.mxu0 0.0
    %442 = vmatpush1.msra.mxu0 %v49
    %443 = vmatprep.subr.mxu0 0.0
    %444 = vmatpush2.msra.mxu0 0.0
    %445 = vmatprep.subr.mxu0 0.0
    %446 = vmatpush2.msra.mxu0 0.0
    %447 = vmatprep.subr.mxu0 0.0
    %448 = vmatpush2.msra.mxu0 0.0
    %449 = vmatprep.subr.mxu0 0.0
    %450 = vmatpush2.msra.mxu0 0.0
    %451 = vmatprep.subr.mxu0 0.0
    %452 = vmatpush2.msra.mxu0 0.0
    %453 = vmatprep.subr.mxu0 0.0
    %454 = vmatpush2.msra.mxu0 0.0
    %455 = vmatprep.subr.mxu0 0.0
    %456 = vmatpush2.msra.mxu0 0.0
    %457 = vmatprep.subr.mxu0 0.0
    %458 = vmatpush2.msra.mxu0 0.0
    %459 = vmatprep.subr.mxu0 0.0
    %460 = vmatpush2.msra.mxu0 0.0
    %461 = vmatprep.subr.mxu0 0.0
    %462 = vmatpush2.msra.mxu0 0.0
    %463 = vmatprep.subr.mxu0 0.0
    %464 = vmatpush2.msra.mxu0 0.0
    %465 = vmatprep.subr.mxu0 0.0
    %466 = vmatpush2.msra.mxu0 0.0
    %467 = vmatprep.subr.mxu0 0.0
    %468 = vmatpush2.msra.mxu0 0.0
    %469 = vmatprep.subr.mxu0 0.0
    %470 = vmatpush2.msra.mxu0 0.0
    %471 = vmatprep.subr.mxu0 0.0
    %472 = vmatpush2.msra.mxu0 0.0
    %473 = vmatprep.subr.mxu0 0.0
    %474 = vmatpush2.msra.mxu0 0.0
    %475 = vmatprep.mubr.f32.mxu0 0.0
    %476 = vmatmul.mubr.f32.gmra.mxu0 %v409
    %v477 = vpop.f32.mrf.mxu0
    %v478 = vadd.f32 0.0, %v477
    %v479 = vpop.f32.mrf.mxu0
    %480 = vdwg.mxu0
    %v481 = vadd.f32 %v201, %v478
    %v482 = vxor.u32 %v481, 2147483648
    %v483 = vmul.f32 %v482, 1.442695
    %v484 = vpow.pop %v483
    %v485 = vadd.f32 %v484, 1.0
    %v486 = vrcp.pop %v485
    %v487 = vmul.f32 1.0, %v486
    %v488 = vtanh.pop %v481
    %v489 = vmul.f32 %v487, %v399
    %491 = vrot.lane.b32.xlu0 %v488, 64
    %v492 = vpop.permute.xlu0 %491
    %v494 = vmul.f32 %v487, %v492
    %496 = vrot.lane.b32.xlu0 %v494, 32
    %v497 = vpop.permute.xlu0 %496
    %v499 = vadd.f32 %v489, %v497
    %v500 = vtanh.pop %v499
    %502 = vrot.lane.b32.xlu0 %v500, 64
    %v503 = vpop.permute.xlu0 %502
    %v505 = vmul.f32 %v487, %v503
    %507 = vrot.lane.b32.xlu0 %v505, 32
    %v508 = vpop.permute.xlu0 %507
    %v509 = vsel %vm207, %v508, 0
    %511 = vmatprep.subr.mxu0 0.0
    %512 = vmatpush1.msra.mxu0 0.0
    %513 = vmatprep.subr.mxu0 0.0
    %514 = vmatpush1.msra.mxu0 0.0
    %515 = vmatprep.subr.mxu0 0.0
    %516 = vmatpush1.msra.mxu0 0.0
    %517 = vmatprep.subr.mxu0 0.0
    %518 = vmatpush1.msra.mxu0 0.0
    %519 = vmatprep.subr.mxu0 0.0
    %520 = vmatpush1.msra.mxu0 0.0
    %521 = vmatprep.subr.mxu0 0.0
    %522 = vmatpush1.msra.mxu0 0.0
    %523 = vmatprep.subr.mxu0 0.0
    %524 = vmatpush1.msra.mxu0 0.0
    %525 = vmatprep.subr.mxu0 0.0
    %526 = vmatpush1.msra.mxu0 0.0
    %527 = vmatprep.subr.mxu0 0.0
    %528 = vmatpush1.msra.mxu0 0.0
    %529 = vmatprep.subr.mxu0 0.0
    %530 = vmatpush1.msra.mxu0 0.0
    %531 = vmatprep.subr.mxu0 0.0
    %532 = vmatpush1.msra.mxu0 0.0
    %533 = vmatprep.subr.mxu0 0.0
    %534 = vmatpush1.msra.mxu0 0.0
    %535 = vmatprep.subr.mxu0 0.0
    %536 = vmatpush1.msra.mxu0 %v52
    %537 = vmatprep.subr.mxu0 0.0
    %538 = vmatpush1.msra.mxu0 %v51
    %539 = vmatprep.subr.mxu0 0.0
    %540 = vmatpush1.msra.mxu0 %v50
    %541 = vmatprep.subr.mxu0 0.0
    %542 = vmatpush1.msra.mxu0 %v49
    %543 = vmatprep.subr.mxu0 0.0
    %544 = vmatpush2.msra.mxu0 0.0
    %545 = vmatprep.subr.mxu0 0.0
    %546 = vmatpush2.msra.mxu0 0.0
    %547 = vmatprep.subr.mxu0 0.0
    %548 = vmatpush2.msra.mxu0 0.0
    %549 = vmatprep.subr.mxu0 0.0
    %550 = vmatpush2.msra.mxu0 0.0
    %551 = vmatprep.subr.mxu0 0.0
    %552 = vmatpush2.msra.mxu0 0.0
    %553 = vmatprep.subr.mxu0 0.0
    %554 = vmatpush2.msra.mxu0 0.0
    %555 = vmatprep.subr.mxu0 0.0
    %556 = vmatpush2.msra.mxu0 0.0
    %557 = vmatprep.subr.mxu0 0.0
    %558 = vmatpush2.msra.mxu0 0.0
    %559 = vmatprep.subr.mxu0 0.0
    %560 = vmatpush2.msra.mxu0 0.0
    %561 = vmatprep.subr.mxu0 0.0
    %562 = vmatpush2.msra.mxu0 0.0
    %563 = vmatprep.subr.mxu0 0.0
    %564 = vmatpush2.msra.mxu0 0.0
    %565 = vmatprep.subr.mxu0 0.0
    %566 = vmatpush2.msra.mxu0 0.0
    %567 = vmatprep.subr.mxu0 0.0
    %568 = vmatpush2.msra.mxu0 0.0
    %569 = vmatprep.subr.mxu0 0.0
    %570 = vmatpush2.msra.mxu0 0.0
    %571 = vmatprep.subr.mxu0 0.0
    %572 = vmatpush2.msra.mxu0 0.0
    %573 = vmatprep.subr.mxu0 0.0
    %574 = vmatpush2.msra.mxu0 0.0
    %575 = vmatprep.mubr.f32.mxu0 0.0
    %576 = vmatmul.mubr.f32.gmra.mxu0 %v509
    %v577 = vpop.f32.mrf.mxu0
    %v578 = vadd.f32 0.0, %v577
    %v579 = vpop.f32.mrf.mxu0
    %580 = vdwg.mxu0
    %v581 = vadd.f32 %v202, %v578
    %v582 = vxor.u32 %v581, 2147483648
    %v583 = vmul.f32 %v582, 1.442695
    %v584 = vpow.pop %v583
    %v585 = vadd.f32 %v584, 1.0
    %v586 = vrcp.pop %v585
    %v587 = vmul.f32 1.0, %v586
    %v588 = vtanh.pop %v581
    %v589 = vmul.f32 %v587, %v499
    %591 = vrot.lane.b32.xlu0 %v588, 64
    %v592 = vpop.permute.xlu0 %591
    %v594 = vmul.f32 %v587, %v592
    %596 = vrot.lane.b32.xlu0 %v594, 32
    %v597 = vpop.permute.xlu0 %596
    %v599 = vadd.f32 %v589, %v597
    %v600 = vtanh.pop %v599
    %602 = vrot.lane.b32.xlu0 %v600, 64
    %v603 = vpop.permute.xlu0 %602
    %v605 = vmul.f32 %v587, %v603
    %607 = vrot.lane.b32.xlu0 %v605, 32
    %v608 = vpop.permute.xlu0 %607
    %v609 = vsel %vm207, %v608, 0
    %611 = vmatprep.subr.mxu0 0.0
    %612 = vmatpush1.msra.mxu0 0.0
    %613 = vmatprep.subr.mxu0 0.0
    %614 = vmatpush1.msra.mxu0 0.0
    %615 = vmatprep.subr.mxu0 0.0
    %616 = vmatpush1.msra.mxu0 0.0
    %617 = vmatprep.subr.mxu0 0.0
    %618 = vmatpush1.msra.mxu0 0.0
    %619 = vmatprep.subr.mxu0 0.0
    %620 = vmatpush1.msra.mxu0 0.0
    %621 = vmatprep.subr.mxu0 0.0
    %622 = vmatpush1.msra.mxu0 0.0
    %623 = vmatprep.subr.mxu0 0.0
    %624 = vmatpush1.msra.mxu0 0.0
    %625 = vmatprep.subr.mxu0 0.0
    %626 = vmatpush1.msra.mxu0 0.0
    %627 = vmatprep.subr.mxu0 0.0
    %628 = vmatpush1.msra.mxu0 0.0
    %629 = vmatprep.subr.mxu0 0.0
    %630 = vmatpush1.msra.mxu0 0.0
    %631 = vmatprep.subr.mxu0 0.0
    %632 = vmatpush1.msra.mxu0 0.0
    %633 = vmatprep.subr.mxu0 0.0
    %634 = vmatpush1.msra.mxu0 0.0
    %635 = vmatprep.subr.mxu0 0.0
    %636 = vmatpush1.msra.mxu0 %v52
    %637 = vmatprep.subr.mxu0 0.0
    %638 = vmatpush1.msra.mxu0 %v51
    %639 = vmatprep.subr.mxu0 0.0
    %640 = vmatpush1.msra.mxu0 %v50
    %641 = vmatprep.subr.mxu0 0.0
    %642 = vmatpush1.msra.mxu0 %v49
    %643 = vmatprep.subr.mxu0 0.0
    %644 = vmatpush2.msra.mxu0 0.0
    %645 = vmatprep.subr.mxu0 0.0
    %646 = vmatpush2.msra.mxu0 0.0
    %647 = vmatprep.subr.mxu0 0.0
    %648 = vmatpush2.msra.mxu0 0.0
    %649 = vmatprep.subr.mxu0 0.0
    %650 = vmatpush2.msra.mxu0 0.0
    %651 = vmatprep.subr.mxu0 0.0
    %652 = vmatpush2.msra.mxu0 0.0
    %653 = vmatprep.subr.mxu0 0.0
    %654 = vmatpush2.msra.mxu0 0.0
    %655 = vmatprep.subr.mxu0 0.0
    %656 = vmatpush2.msra.mxu0 0.0
    %657 = vmatprep.subr.mxu0 0.0
    %658 = vmatpush2.msra.mxu0 0.0
    %659 = vmatprep.subr.mxu0 0.0
    %660 = vmatpush2.msra.mxu0 0.0
    %661 = vmatprep.subr.mxu0 0.0
    %662 = vmatpush2.msra.mxu0 0.0
    %663 = vmatprep.subr.mxu0 0.0
    %664 = vmatpush2.msra.mxu0 0.0
    %665 = vmatprep.subr.mxu0 0.0
    %666 = vmatpush2.msra.mxu0 0.0
    %667 = vmatprep.subr.mxu0 0.0
    %668 = vmatpush2.msra.mxu0 0.0
    %669 = vmatprep.subr.mxu0 0.0
    %670 = vmatpush2.msra.mxu0 0.0
    %671 = vmatprep.subr.mxu0 0.0
    %672 = vmatpush2.msra.mxu0 0.0
    %673 = vmatprep.subr.mxu0 0.0
    %674 = vmatpush2.msra.mxu0 0.0
    %675 = vmatprep.mubr.f32.mxu0 0.0
    %676 = vmatmul.mubr.f32.gmra.mxu0 %v609
    %v677 = vpop.f32.mrf.mxu0
    %v678 = vadd.f32 0.0, %v677
    %v679 = vpop.f32.mrf.mxu0
    %680 = vdwg.mxu0
    %v681 = vadd.f32 %v203, %v678
    %v682 = vxor.u32 %v681, 2147483648
    %v683 = vmul.f32 %v682, 1.442695
    %v684 = vpow.pop %v683
    %v685 = vadd.f32 %v684, 1.0
    %v686 = vrcp.pop %v685
    %v687 = vmul.f32 1.0, %v686
    %v688 = vtanh.pop %v681
    %v689 = vmul.f32 %v687, %v599
    %691 = vrot.lane.b32.xlu0 %v688, 64
    %v692 = vpop.permute.xlu0 %691
    %v694 = vmul.f32 %v687, %v692
    %696 = vrot.lane.b32.xlu0 %v694, 32
    %v697 = vpop.permute.xlu0 %696
    %v699 = vadd.f32 %v689, %v697
    %v700 = vtanh.pop %v699
    %702 = vrot.lane.b32.xlu0 %v700, 64
    %v703 = vpop.permute.xlu0 %702
    %v705 = vmul.f32 %v687, %v703
    %707 = vrot.lane.b32.xlu0 %v705, 32
    %v708 = vpop.permute.xlu0 %707
    %v709 = vsel %vm207, %v708, 0
    %711 = vmatprep.subr.mxu0 0.0
    %712 = vmatpush1.msra.mxu0 0.0
    %713 = vmatprep.subr.mxu0 0.0
    %714 = vmatpush1.msra.mxu0 0.0
    %715 = vmatprep.subr.mxu0 0.0
    %716 = vmatpush1.msra.mxu0 0.0
    %717 = vmatprep.subr.mxu0 0.0
    %718 = vmatpush1.msra.mxu0 0.0
    %719 = vmatprep.subr.mxu0 0.0
    %720 = vmatpush1.msra.mxu0 0.0
    %721 = vmatprep.subr.mxu0 0.0
    %722 = vmatpush1.msra.mxu0 0.0
    %723 = vmatprep.subr.mxu0 0.0
    %724 = vmatpush1.msra.mxu0 0.0
    %725 = vmatprep.subr.mxu0 0.0
    %726 = vmatpush1.msra.mxu0 0.0
    %727 = vmatprep.subr.mxu0 0.0
    %728 = vmatpush1.msra.mxu0 0.0
    %729 = vmatprep.subr.mxu0 0.0
    %730 = vmatpush1.msra.mxu0 0.0
    %731 = vmatprep.subr.mxu0 0.0
    %732 = vmatpush1.msra.mxu0 0.0
    %733 = vmatprep.subr.mxu0 0.0
    %734 = vmatpush1.msra.mxu0 0.0
    %735 = vmatprep.subr.mxu0 0.0
    %736 = vmatpush1.msra.mxu0 %v52
    %737 = vmatprep.subr.mxu0 0.0
    %738 = vmatpush1.msra.mxu0 %v51
    %739 = vmatprep.subr.mxu0 0.0
    %740 = vmatpush1.msra.mxu0 %v50
    %741 = vmatprep.subr.mxu0 0.0
    %742 = vmatpush1.msra.mxu0 %v49
    %743 = vmatprep.subr.mxu0 0.0
    %744 = vmatpush2.msra.mxu0 0.0
    %745 = vmatprep.subr.mxu0 0.0
    %746 = vmatpush2.msra.mxu0 0.0
    %747 = vmatprep.subr.mxu0 0.0
    %748 = vmatpush2.msra.mxu0 0.0
    %749 = vmatprep.subr.mxu0 0.0
    %750 = vmatpush2.msra.mxu0 0.0
    %751 = vmatprep.subr.mxu0 0.0
    %752 = vmatpush2.msra.mxu0 0.0
    %753 = vmatprep.subr.mxu0 0.0
    %754 = vmatpush2.msra.mxu0 0.0
    %755 = vmatprep.subr.mxu0 0.0
    %756 = vmatpush2.msra.mxu0 0.0
    %757 = vmatprep.subr.mxu0 0.0
    %758 = vmatpush2.msra.mxu0 0.0
    %759 = vmatprep.subr.mxu0 0.0
    %760 = vmatpush2.msra.mxu0 0.0
    %761 = vmatprep.subr.mxu0 0.0
    %762 = vmatpush2.msra.mxu0 0.0
    %763 = vmatprep.subr.mxu0 0.0
    %764 = vmatpush2.msra.mxu0 0.0
    %765 = vmatprep.subr.mxu0 0.0
    %766 = vmatpush2.msra.mxu0 0.0
    %767 = vmatprep.subr.mxu0 0.0
    %768 = vmatpush2.msra.mxu0 0.0
    %769 = vmatprep.subr.mxu0 0.0
    %770 = vmatpush2.msra.mxu0 0.0
    %771 = vmatprep.subr.mxu0 0.0
    %772 = vmatpush2.msra.mxu0 0.0
    %773 = vmatprep.subr.mxu0 0.0
    %774 = vmatpush2.msra.mxu0 0.0
    %775 = vmatprep.mubr.f32.mxu0 0.0
    %776 = vmatmul.mubr.f32.gmra.mxu0 %v709
    %v777 = vpop.f32.mrf.mxu0
    %v778 = vadd.f32 0.0, %v777
    %v779 = vpop.f32.mrf.mxu0
    %780 = vdwg.mxu0
    %v781 = vadd.f32 %v204, %v778
    %v782 = vxor.u32 %v781, 2147483648
    %v783 = vmul.f32 %v782, 1.442695
    %v784 = vpow.pop %v783
    %v785 = vadd.f32 %v784, 1.0
    %v786 = vrcp.pop %v785
    %v787 = vmul.f32 1.0, %v786
    %v788 = vtanh.pop %v781
    %v789 = vmul.f32 %v787, %v699
    %791 = vrot.lane.b32.xlu0 %v788, 64
    %v792 = vpop.permute.xlu0 %791
    %v794 = vmul.f32 %v787, %v792
    %796 = vrot.lane.b32.xlu0 %v794, 32
    %v797 = vpop.permute.xlu0 %796
    %v799 = vadd.f32 %v789, %v797
    %v800 = vtanh.pop %v799
    %802 = vrot.lane.b32.xlu0 %v800, 64
    %v803 = vpop.permute.xlu0 %802
    %v805 = vmul.f32 %v787, %v803
    %807 = vrot.lane.b32.xlu0 %v805, 32
    %v808 = vpop.permute.xlu0 %807
    %v809 = vsel %vm207, %v808, 0
    %811 = vmatprep.subr.mxu0 0.0
    %812 = vmatpush1.msra.mxu0 0.0
    %813 = vmatprep.subr.mxu0 0.0
    %814 = vmatpush1.msra.mxu0 0.0
    %815 = vmatprep.subr.mxu0 0.0
    %816 = vmatpush1.msra.mxu0 0.0
    %817 = vmatprep.subr.mxu0 0.0
    %818 = vmatpush1.msra.mxu0 0.0
    %819 = vmatprep.subr.mxu0 0.0
    %820 = vmatpush1.msra.mxu0 0.0
    %821 = vmatprep.subr.mxu0 0.0
    %822 = vmatpush1.msra.mxu0 0.0
    %823 = vmatprep.subr.mxu0 0.0
    %824 = vmatpush1.msra.mxu0 0.0
    %825 = vmatprep.subr.mxu0 0.0
    %826 = vmatpush1.msra.mxu0 0.0
    %827 = vmatprep.subr.mxu0 0.0
    %828 = vmatpush1.msra.mxu0 0.0
    %829 = vmatprep.subr.mxu0 0.0
    %830 = vmatpush1.msra.mxu0 0.0
    %831 = vmatprep.subr.mxu0 0.0
    %832 = vmatpush1.msra.mxu0 0.0
    %833 = vmatprep.subr.mxu0 0.0
    %834 = vmatpush1.msra.mxu0 0.0
    %835 = vmatprep.subr.mxu0 0.0
    %836 = vmatpush1.msra.mxu0 %v52
    %837 = vmatprep.subr.mxu0 0.0
    %838 = vmatpush1.msra.mxu0 %v51
    %839 = vmatprep.subr.mxu0 0.0
    %840 = vmatpush1.msra.mxu0 %v50
    %841 = vmatprep.subr.mxu0 0.0
    %842 = vmatpush1.msra.mxu0 %v49
    %843 = vmatprep.subr.mxu0 0.0
    %844 = vmatpush2.msra.mxu0 0.0
    %845 = vmatprep.subr.mxu0 0.0
    %846 = vmatpush2.msra.mxu0 0.0
    %847 = vmatprep.subr.mxu0 0.0
    %848 = vmatpush2.msra.mxu0 0.0
    %849 = vmatprep.subr.mxu0 0.0
    %850 = vmatpush2.msra.mxu0 0.0
    %851 = vmatprep.subr.mxu0 0.0
    %852 = vmatpush2.msra.mxu0 0.0
    %853 = vmatprep.subr.mxu0 0.0
    %854 = vmatpush2.msra.mxu0 0.0
    %855 = vmatprep.subr.mxu0 0.0
    %856 = vmatpush2.msra.mxu0 0.0
    %857 = vmatprep.subr.mxu0 0.0
    %858 = vmatpush2.msra.mxu0 0.0
    %859 = vmatprep.subr.mxu0 0.0
    %860 = vmatpush2.msra.mxu0 0.0
    %861 = vmatprep.subr.mxu0 0.0
    %862 = vmatpush2.msra.mxu0 0.0
    %863 = vmatprep.subr.mxu0 0.0
    %864 = vmatpush2.msra.mxu0 0.0
    %865 = vmatprep.subr.mxu0 0.0
    %866 = vmatpush2.msra.mxu0 0.0
    %867 = vmatprep.subr.mxu0 0.0
    %868 = vmatpush2.msra.mxu0 0.0
    %869 = vmatprep.subr.mxu0 0.0
    %870 = vmatpush2.msra.mxu0 0.0
    %871 = vmatprep.subr.mxu0 0.0
    %872 = vmatpush2.msra.mxu0 0.0
    %873 = vmatprep.subr.mxu0 0.0
    %874 = vmatpush2.msra.mxu0 0.0
    %875 = vmatprep.mubr.f32.mxu0 0.0
    %876 = vmatmul.mubr.f32.gmra.mxu0 %v809
    %v877 = vpop.f32.mrf.mxu0
    %v878 = vadd.f32 0.0, %v877
    %v879 = vpop.f32.mrf.mxu0
    %880 = vdwg.mxu0
    %v881 = vadd.f32 %v205, %v878
    %v882 = vxor.u32 %v881, 2147483648
    %v883 = vmul.f32 %v882, 1.442695
    %v884 = vpow.pop %v883
    %v885 = vadd.f32 %v884, 1.0
    %v886 = vrcp.pop %v885
    %v887 = vmul.f32 1.0, %v886
    %v888 = vtanh.pop %v881
    %v889 = vmul.f32 %v887, %v799
    %891 = vrot.lane.b32.xlu0 %v888, 64
    %v892 = vpop.permute.xlu0 %891
    %v894 = vmul.f32 %v887, %v892
    %896 = vrot.lane.b32.xlu0 %v894, 32
    %v897 = vpop.permute.xlu0 %896
    %v899 = vadd.f32 %v889, %v897
    %v900 = vtanh.pop %v899
    %902 = vrot.lane.b32.xlu0 %v900, 64
    %v903 = vpop.permute.xlu0 %902
    %v905 = vmul.f32 %v887, %v903
    %907 = vrot.lane.b32.xlu0 %v905, 32
    %v908 = vpop.permute.xlu0 %907
    %v909 = vsel %vm207, %v908, 0
    %911 = vmatprep.subr.mxu0 0.0
    %912 = vmatpush1.msra.mxu0 0.0
    %913 = vmatprep.subr.mxu0 0.0
    %914 = vmatpush1.msra.mxu0 0.0
    %915 = vmatprep.subr.mxu0 0.0
    %916 = vmatpush1.msra.mxu0 0.0
    %917 = vmatprep.subr.mxu0 0.0
    %918 = vmatpush1.msra.mxu0 0.0
    %919 = vmatprep.subr.mxu0 0.0
    %920 = vmatpush1.msra.mxu0 0.0
    %921 = vmatprep.subr.mxu0 0.0
    %922 = vmatpush1.msra.mxu0 0.0
    %923 = vmatprep.subr.mxu0 0.0
    %924 = vmatpush1.msra.mxu0 0.0
    %925 = vmatprep.subr.mxu0 0.0
    %926 = vmatpush1.msra.mxu0 0.0
    %927 = vmatprep.subr.mxu0 0.0
    %928 = vmatpush1.msra.mxu0 0.0
    %929 = vmatprep.subr.mxu0 0.0
    %930 = vmatpush1.msra.mxu0 0.0
    %931 = vmatprep.subr.mxu0 0.0
    %932 = vmatpush1.msra.mxu0 0.0
    %933 = vmatprep.subr.mxu0 0.0
    %934 = vmatpush1.msra.mxu0 0.0
    %935 = vmatprep.subr.mxu0 0.0
    %936 = vmatpush1.msra.mxu0 %v52
    %937 = vmatprep.subr.mxu0 0.0
    %938 = vmatpush1.msra.mxu0 %v51
    %939 = vmatprep.subr.mxu0 0.0
    %940 = vmatpush1.msra.mxu0 %v50
    %941 = vmatprep.subr.mxu0 0.0
    %942 = vmatpush1.msra.mxu0 %v49
    %943 = vmatprep.subr.mxu0 0.0
    %944 = vmatpush2.msra.mxu0 0.0
    %945 = vmatprep.subr.mxu0 0.0
    %946 = vmatpush2.msra.mxu0 0.0
    %947 = vmatprep.subr.mxu0 0.0
    %948 = vmatpush2.msra.mxu0 0.0
    %949 = vmatprep.subr.mxu0 0.0
    %950 = vmatpush2.msra.mxu0 0.0
    %951 = vmatprep.subr.mxu0 0.0
    %952 = vmatpush2.msra.mxu0 0.0
    %953 = vmatprep.subr.mxu0 0.0
    %954 = vmatpush2.msra.mxu0 0.0
    %955 = vmatprep.subr.mxu0 0.0
    %956 = vmatpush2.msra.mxu0 0.0
    %957 = vmatprep.subr.mxu0 0.0
    %958 = vmatpush2.msra.mxu0 0.0
    %959 = vmatprep.subr.mxu0 0.0
    %960 = vmatpush2.msra.mxu0 0.0
    %961 = vmatprep.subr.mxu0 0.0
    %962 = vmatpush2.msra.mxu0 0.0
    %963 = vmatprep.subr.mxu0 0.0
    %964 = vmatpush2.msra.mxu0 0.0
    %965 = vmatprep.subr.mxu0 0.0
    %966 = vmatpush2.msra.mxu0 0.0
    %967 = vmatprep.subr.mxu0 0.0
    %968 = vmatpush2.msra.mxu0 0.0
    %969 = vmatprep.subr.mxu0 0.0
    %970 = vmatpush2.msra.mxu0 0.0
    %971 = vmatprep.subr.mxu0 0.0
    %972 = vmatpush2.msra.mxu0 0.0
    %973 = vmatprep.subr.mxu0 0.0
    %974 = vmatpush2.msra.mxu0 0.0
    %975 = vmatprep.mubr.f32.mxu0 0.0
    %976 = vmatmul.mubr.f32.gmra.mxu0 %v909
    %v977 = vpop.f32.mrf.mxu0
    %v978 = vadd.f32 0.0, %v977
    %v979 = vpop.f32.mrf.mxu0
    %980 = vdwg.mxu0
    %v981 = vadd.f32 %v206, %v978
    %v982 = vxor.u32 %v981, 2147483648
    %v983 = vmul.f32 %v982, 1.442695
    %v984 = vpow.pop %v983
    %v985 = vadd.f32 %v984, 1.0
    %v986 = vrcp.pop %v985
    %v987 = vmul.f32 1.0, %v986
    %v988 = vtanh.pop %v981
    %v989 = vmul.f32 %v987, %v899
    %991 = vrot.lane.b32.xlu0 %v988, 64
    %v992 = vpop.permute.xlu0 %991
    %v994 = vmul.f32 %v987, %v992
    %996 = vrot.lane.b32.xlu0 %v994, 32
    %v997 = vpop.permute.xlu0 %996
    %v999 = vadd.f32 %v989, %v997
    %v1000 = vtanh.pop %v999
    %1002 = vrot.lane.b32.xlu0 %v1000, 64
    %v1003 = vpop.permute.xlu0 %1002
    %v1005 = vmul.f32 %v987, %v1003
    %v1007 = vsel %vm84, %v48, 0
    %1009 = vmatprep.subr.mxu0 0.0
    %1010 = vmatpush1.msra.mxu0 0.0
    %1011 = vmatprep.subr.mxu0 0.0
    %1012 = vmatpush1.msra.mxu0 0.0
    %1013 = vmatprep.subr.mxu0 0.0
    %1014 = vmatpush1.msra.mxu0 0.0
    %1015 = vmatprep.subr.mxu0 0.0
    %1016 = vmatpush1.msra.mxu0 0.0
    %1017 = vmatprep.subr.mxu0 0.0
    %1018 = vmatpush1.msra.mxu0 0.0
    %1019 = vmatprep.subr.mxu0 0.0
    %1020 = vmatpush1.msra.mxu0 0.0
    %1021 = vmatprep.subr.mxu0 0.0
    %1022 = vmatpush1.msra.mxu0 0.0
    %1023 = vmatprep.subr.mxu0 0.0
    %1024 = vmatpush1.msra.mxu0 0.0
    %1025 = vmatprep.subr.mxu0 0.0
    %1026 = vmatpush1.msra.mxu0 0.0
    %1027 = vmatprep.subr.mxu0 0.0
    %1028 = vmatpush1.msra.mxu0 0.0
    %1029 = vmatprep.subr.mxu0 0.0
    %1030 = vmatpush1.msra.mxu0 0.0
    %1031 = vmatprep.subr.mxu0 0.0
    %1032 = vmatpush1.msra.mxu0 0.0
    %1033 = vmatprep.subr.mxu0 0.0
    %1034 = vmatpush1.msra.mxu0 %v1007
    %1035 = vmatprep.subr.mxu0 0.0
    %1036 = vmatpush1.msra.mxu0 %v47
    %1037 = vmatprep.subr.mxu0 0.0
    %1038 = vmatpush1.msra.mxu0 %v46
    %1039 = vmatprep.subr.mxu0 0.0
    %1040 = vmatpush1.msra.mxu0 %v45
    %1041 = vmatprep.subr.mxu0 0.0
    %1042 = vmatpush2.msra.mxu0 0.0
    %1043 = vmatprep.subr.mxu0 0.0
    %1044 = vmatpush2.msra.mxu0 0.0
    %1045 = vmatprep.subr.mxu0 0.0
    %1046 = vmatpush2.msra.mxu0 0.0
    %1047 = vmatprep.subr.mxu0 0.0
    %1048 = vmatpush2.msra.mxu0 0.0
    %1049 = vmatprep.subr.mxu0 0.0
    %1050 = vmatpush2.msra.mxu0 0.0
    %1051 = vmatprep.subr.mxu0 0.0
    %1052 = vmatpush2.msra.mxu0 0.0
    %1053 = vmatprep.subr.mxu0 0.0
    %1054 = vmatpush2.msra.mxu0 0.0
    %1055 = vmatprep.subr.mxu0 0.0
    %1056 = vmatpush2.msra.mxu0 0.0
    %1057 = vmatprep.subr.mxu0 0.0
    %1058 = vmatpush2.msra.mxu0 0.0
    %1059 = vmatprep.subr.mxu0 0.0
    %1060 = vmatpush2.msra.mxu0 0.0
    %1061 = vmatprep.subr.mxu0 0.0
    %1062 = vmatpush2.msra.mxu0 0.0
    %1063 = vmatprep.subr.mxu0 0.0
    %1064 = vmatpush2.msra.mxu0 0.0
    %1065 = vmatprep.subr.mxu0 0.0
    %1066 = vmatpush2.msra.mxu0 0.0
    %1067 = vmatprep.subr.mxu0 0.0
    %1068 = vmatpush2.msra.mxu0 0.0
    %1069 = vmatprep.subr.mxu0 0.0
    %1070 = vmatpush2.msra.mxu0 0.0
    %1071 = vmatprep.subr.mxu0 0.0
    %1072 = vmatpush2.msra.mxu0 0.0
    %1073 = vmatprep.mubr.f32.mxu0 0.0
    %1074 = vmatmul.mubr.f32.gmra.mxu0 %v61
    %v1075 = vpop.f32.mrf.mxu0
    %v1076 = vadd.f32 0.0, %v1075
    %v1077 = vpop.f32.mrf.mxu0
    %1078 = vmatprep.mubr.f32.mxu0 0.0
    %1079 = vmatmul.mubr.f32.gmra.mxu0 %v64
    %v1080 = vpop.f32.mrf.mxu0
    %v1081 = vadd.f32 0.0, %v1080
    %v1082 = vpop.f32.mrf.mxu0
    %1083 = vmatprep.mubr.f32.mxu0 0.0
    %1084 = vmatmul.mubr.f32.gmra.mxu0 %v67
    %v1085 = vpop.f32.mrf.mxu0
    %v1086 = vadd.f32 0.0, %v1085
    %v1087 = vpop.f32.mrf.mxu0
    %1088 = vmatprep.mubr.f32.mxu0 0.0
    %1089 = vmatmul.mubr.f32.gmra.mxu0 %v70
    %v1090 = vpop.f32.mrf.mxu0
    %v1091 = vadd.f32 0.0, %v1090
    %v1092 = vpop.f32.mrf.mxu0
    %1093 = vmatprep.mubr.f32.mxu0 0.0
    %1094 = vmatmul.mubr.f32.gmra.mxu0 %v73
    %v1095 = vpop.f32.mrf.mxu0
    %v1096 = vadd.f32 0.0, %v1095
    %v1097 = vpop.f32.mrf.mxu0
    %1098 = vmatprep.mubr.f32.mxu0 0.0
    %1099 = vmatmul.mubr.f32.gmra.mxu0 %v76
    %v1100 = vpop.f32.mrf.mxu0
    %v1101 = vadd.f32 0.0, %v1100
    %v1102 = vpop.f32.mrf.mxu0
    %1103 = vmatprep.mubr.f32.mxu0 0.0
    %1104 = vmatmul.mubr.f32.gmra.mxu0 %v79
    %v1105 = vpop.f32.mrf.mxu0
    %v1106 = vadd.f32 0.0, %v1105
    %v1107 = vpop.f32.mrf.mxu0
    %1108 = vmatprep.mubr.f32.mxu0 0.0
    %1109 = vmatmul.mubr.f32.gmra.mxu0 %v82
    %v1110 = vpop.f32.mrf.mxu0
    %v1111 = vadd.f32 0.0, %v1110
    %v1112 = vpop.f32.mrf.mxu0
    %1113 = vdwg.mxu0
    %v1115 = vlaneseq
    %v1116 = vshrl.u32 %v1115, 7
    %v1117 = vsub.s32 0, %v1116
    %v1118 = vrot.slane %v58, %v1117
    %v1120 = vadd.f32 %v1118, %v1076
    %v1121 = vadd.f32 %v1118, %v1081
    %v1122 = vadd.f32 %v1118, %v1086
    %v1123 = vadd.f32 %v1118, %v1091
    %v1124 = vadd.f32 %v1118, %v1096
    %v1125 = vadd.f32 %v1118, %v1101
    %v1126 = vadd.f32 %v1118, %v1106
    %v1127 = vadd.f32 %v1118, %v1111
    %1128 = vmatprep.subr.mxu0 0.0
    %1129 = vmatpush1.msra.mxu0 0.0
    %1130 = vmatprep.subr.mxu0 0.0
    %1131 = vmatpush1.msra.mxu0 0.0
    %1132 = vmatprep.subr.mxu0 0.0
    %1133 = vmatpush1.msra.mxu0 0.0
    %1134 = vmatprep.subr.mxu0 0.0
    %1135 = vmatpush1.msra.mxu0 0.0
    %1136 = vmatprep.subr.mxu0 0.0
    %1137 = vmatpush1.msra.mxu0 0.0
    %1138 = vmatprep.subr.mxu0 0.0
    %1139 = vmatpush1.msra.mxu0 0.0
    %1140 = vmatprep.subr.mxu0 0.0
    %1141 = vmatpush1.msra.mxu0 0.0
    %1142 = vmatprep.subr.mxu0 0.0
    %1143 = vmatpush1.msra.mxu0 0.0
    %1144 = vmatprep.subr.mxu0 0.0
    %1145 = vmatpush1.msra.mxu0 0.0
    %1146 = vmatprep.subr.mxu0 0.0
    %1147 = vmatpush1.msra.mxu0 0.0
    %1148 = vmatprep.subr.mxu0 0.0
    %1149 = vmatpush1.msra.mxu0 0.0
    %1150 = vmatprep.subr.mxu0 0.0
    %1151 = vmatpush1.msra.mxu0 0.0
    %1152 = vmatprep.subr.mxu0 0.0
    %1153 = vmatpush1.msra.mxu0 %v56
    %1154 = vmatprep.subr.mxu0 0.0
    %1155 = vmatpush1.msra.mxu0 %v55
    %1156 = vmatprep.subr.mxu0 0.0
    %1157 = vmatpush1.msra.mxu0 %v54
    %1158 = vmatprep.subr.mxu0 0.0
    %1159 = vmatpush1.msra.mxu0 %v53
    %1160 = vmatprep.subr.mxu0 0.0
    %1161 = vmatpush2.msra.mxu0 0.0
    %1162 = vmatprep.subr.mxu0 0.0
    %1163 = vmatpush2.msra.mxu0 0.0
    %1164 = vmatprep.subr.mxu0 0.0
    %1165 = vmatpush2.msra.mxu0 0.0
    %1166 = vmatprep.subr.mxu0 0.0
    %1167 = vmatpush2.msra.mxu0 0.0
    %1168 = vmatprep.subr.mxu0 0.0
    %1169 = vmatpush2.msra.mxu0 0.0
    %1170 = vmatprep.subr.mxu0 0.0
    %1171 = vmatpush2.msra.mxu0 0.0
    %1172 = vmatprep.subr.mxu0 0.0
    %1173 = vmatpush2.msra.mxu0 0.0
    %1174 = vmatprep.subr.mxu0 0.0
    %1175 = vmatpush2.msra.mxu0 0.0
    %1176 = vmatprep.subr.mxu0 0.0
    %1177 = vmatpush2.msra.mxu0 0.0
    %1178 = vmatprep.subr.mxu0 0.0
    %1179 = vmatpush2.msra.mxu0 0.0
    %1180 = vmatprep.subr.mxu0 0.0
    %1181 = vmatpush2.msra.mxu0 0.0
    %1182 = vmatprep.subr.mxu0 0.0
    %1183 = vmatpush2.msra.mxu0 0.0
    %1184 = vmatprep.subr.mxu0 0.0
    %1185 = vmatpush2.msra.mxu0 0.0
    %1186 = vmatprep.subr.mxu0 0.0
    %1187 = vmatpush2.msra.mxu0 0.0
    %1188 = vmatprep.subr.mxu0 0.0
    %1189 = vmatpush2.msra.mxu0 0.0
    %1190 = vmatprep.subr.mxu0 0.0
    %1191 = vmatpush2.msra.mxu0 0.0
    %1192 = vmatprep.mubr.f32.mxu0 0.0
    %1193 = vmatmul.mubr.f32.gmra.mxu0 %v209
    %v1194 = vpop.f32.mrf.mxu0
    %v1195 = vadd.f32 0.0, %v1194
    %v1196 = vpop.f32.mrf.mxu0
    %1197 = vdwg.mxu0
    %v1198 = vadd.f32 %v1127, %v1195
    %v1199 = vxor.u32 %v1198, 2147483648
    %v1200 = vmul.f32 %v1199, 1.442695
    %v1201 = vpow.pop %v1200
    %v1202 = vadd.f32 %v1201, 1.0
    %v1203 = vrcp.pop %v1202
    %v1204 = vmul.f32 1.0, %v1203
    %v1205 = vtanh.pop %v1198
    %v1206 = vmul.f32 %v1204, 0.0
    %1208 = vrot.lane.b32.xlu0 %v1205, 64
    %v1209 = vpop.permute.xlu0 %1208
    %v1211 = vmul.f32 %v1204, %v1209
    %1213 = vrot.lane.b32.xlu0 %v1211, 32
    %v1214 = vpop.permute.xlu0 %1213
    %v1216 = vadd.f32 %v1206, %v1214
    %v1217 = vtanh.pop %v1216
    %1219 = vrot.lane.b32.xlu0 %v1217, 64
    %v1220 = vpop.permute.xlu0 %1219
    %v1222 = vmul.f32 %v1204, %v1220
    %1224 = vrot.lane.b32.xlu0 %v1222, 32
    %v1225 = vpop.permute.xlu0 %1224
    %v1226 = vsel %vm207, %v1225, 0
    %1228 = vmatprep.subr.mxu0 0.0
    %1229 = vmatpush1.msra.mxu0 0.0
    %1230 = vmatprep.subr.mxu0 0.0
    %1231 = vmatpush1.msra.mxu0 0.0
    %1232 = vmatprep.subr.mxu0 0.0
    %1233 = vmatpush1.msra.mxu0 0.0
    %1234 = vmatprep.subr.mxu0 0.0
    %1235 = vmatpush1.msra.mxu0 0.0
    %1236 = vmatprep.subr.mxu0 0.0
    %1237 = vmatpush1.msra.mxu0 0.0
    %1238 = vmatprep.subr.mxu0 0.0
    %1239 = vmatpush1.msra.mxu0 0.0
    %1240 = vmatprep.subr.mxu0 0.0
    %1241 = vmatpush1.msra.mxu0 0.0
    %1242 = vmatprep.subr.mxu0 0.0
    %1243 = vmatpush1.msra.mxu0 0.0
    %1244 = vmatprep.subr.mxu0 0.0
    %1245 = vmatpush1.msra.mxu0 0.0
    %1246 = vmatprep.subr.mxu0 0.0
    %1247 = vmatpush1.msra.mxu0 0.0
    %1248 = vmatprep.subr.mxu0 0.0
    %1249 = vmatpush1.msra.mxu0 0.0
    %1250 = vmatprep.subr.mxu0 0.0
    %1251 = vmatpush1.msra.mxu0 0.0
    %1252 = vmatprep.subr.mxu0 0.0
    %1253 = vmatpush1.msra.mxu0 %v56
    %1254 = vmatprep.subr.mxu0 0.0
    %1255 = vmatpush1.msra.mxu0 %v55
    %1256 = vmatprep.subr.mxu0 0.0
    %1257 = vmatpush1.msra.mxu0 %v54
    %1258 = vmatprep.subr.mxu0 0.0
    %1259 = vmatpush1.msra.mxu0 %v53
    %1260 = vmatprep.subr.mxu0 0.0
    %1261 = vmatpush2.msra.mxu0 0.0
    %1262 = vmatprep.subr.mxu0 0.0
    %1263 = vmatpush2.msra.mxu0 0.0
    %1264 = vmatprep.subr.mxu0 0.0
    %1265 = vmatpush2.msra.mxu0 0.0
    %1266 = vmatprep.subr.mxu0 0.0
    %1267 = vmatpush2.msra.mxu0 0.0
    %1268 = vmatprep.subr.mxu0 0.0
    %1269 = vmatpush2.msra.mxu0 0.0
    %1270 = vmatprep.subr.mxu0 0.0
    %1271 = vmatpush2.msra.mxu0 0.0
    %1272 = vmatprep.subr.mxu0 0.0
    %1273 = vmatpush2.msra.mxu0 0.0
    %1274 = vmatprep.subr.mxu0 0.0
    %1275 = vmatpush2.msra.mxu0 0.0
    %1276 = vmatprep.subr.mxu0 0.0
    %1277 = vmatpush2.msra.mxu0 0.0
    %1278 = vmatprep.subr.mxu0 0.0
    %1279 = vmatpush2.msra.mxu0 0.0
    %1280 = vmatprep.subr.mxu0 0.0
    %1281 = vmatpush2.msra.mxu0 0.0
    %1282 = vmatprep.subr.mxu0 0.0
    %1283 = vmatpush2.msra.mxu0 0.0
    %1284 = vmatprep.subr.mxu0 0.0
    %1285 = vmatpush2.msra.mxu0 0.0
    %1286 = vmatprep.subr.mxu0 0.0
    %1287 = vmatpush2.msra.mxu0 0.0
    %1288 = vmatprep.subr.mxu0 0.0
    %1289 = vmatpush2.msra.mxu0 0.0
    %1290 = vmatprep.subr.mxu0 0.0
    %1291 = vmatpush2.msra.mxu0 0.0
    %1292 = vmatprep.mubr.f32.mxu0 0.0
    %1293 = vmatmul.mubr.f32.gmra.mxu0 %v1226
    %v1294 = vpop.f32.mrf.mxu0
    %v1295 = vadd.f32 0.0, %v1294
    %v1296 = vpop.f32.mrf.mxu0
    %1297 = vdwg.mxu0
    %v1298 = vadd.f32 %v1126, %v1295
    %v1299 = vxor.u32 %v1298, 2147483648
    %v1300 = vmul.f32 %v1299, 1.442695
    %v1301 = vpow.pop %v1300
    %v1302 = vadd.f32 %v1301, 1.0
    %v1303 = vrcp.pop %v1302
    %v1304 = vmul.f32 1.0, %v1303
    %v1305 = vtanh.pop %v1298
    %v1306 = vmul.f32 %v1304, %v1216
    %1308 = vrot.lane.b32.xlu0 %v1305, 64
    %v1309 = vpop.permute.xlu0 %1308
    %v1311 = vmul.f32 %v1304, %v1309
    %1313 = vrot.lane.b32.xlu0 %v1311, 32
    %v1314 = vpop.permute.xlu0 %1313
    %v1316 = vadd.f32 %v1306, %v1314
    %v1317 = vtanh.pop %v1316
    %1319 = vrot.lane.b32.xlu0 %v1317, 64
    %v1320 = vpop.permute.xlu0 %1319
    %v1322 = vmul.f32 %v1304, %v1320
    %1324 = vrot.lane.b32.xlu0 %v1322, 32
    %v1325 = vpop.permute.xlu0 %1324
    %v1326 = vsel %vm207, %v1325, 0
    %1328 = vmatprep.subr.mxu0 0.0
    %1329 = vmatpush1.msra.mxu0 0.0
    %1330 = vmatprep.subr.mxu0 0.0
    %1331 = vmatpush1.msra.mxu0 0.0
    %1332 = vmatprep.subr.mxu0 0.0
    %1333 = vmatpush1.msra.mxu0 0.0
    %1334 = vmatprep.subr.mxu0 0.0
    %1335 = vmatpush1.msra.mxu0 0.0
    %1336 = vmatprep.subr.mxu0 0.0
    %1337 = vmatpush1.msra.mxu0 0.0
    %1338 = vmatprep.subr.mxu0 0.0
    %1339 = vmatpush1.msra.mxu0 0.0
    %1340 = vmatprep.subr.mxu0 0.0
    %1341 = vmatpush1.msra.mxu0 0.0
    %1342 = vmatprep.subr.mxu0 0.0
    %1343 = vmatpush1.msra.mxu0 0.0
    %1344 = vmatprep.subr.mxu0 0.0
    %1345 = vmatpush1.msra.mxu0 0.0
    %1346 = vmatprep.subr.mxu0 0.0
    %1347 = vmatpush1.msra.mxu0 0.0
    %1348 = vmatprep.subr.mxu0 0.0
    %1349 = vmatpush1.msra.mxu0 0.0
    %1350 = vmatprep.subr.mxu0 0.0
    %1351 = vmatpush1.msra.mxu0 0.0
    %1352 = vmatprep.subr.mxu0 0.0
    %1353 = vmatpush1.msra.mxu0 %v56
    %1354 = vmatprep.subr.mxu0 0.0
    %1355 = vmatpush1.msra.mxu0 %v55
    %1356 = vmatprep.subr.mxu0 0.0
    %1357 = vmatpush1.msra.mxu0 %v54
    %1358 = vmatprep.subr.mxu0 0.0
    %1359 = vmatpush1.msra.mxu0 %v53
    %1360 = vmatprep.subr.mxu0 0.0
    %1361 = vmatpush2.msra.mxu0 0.0
    %1362 = vmatprep.subr.mxu0 0.0
    %1363 = vmatpush2.msra.mxu0 0.0
    %1364 = vmatprep.subr.mxu0 0.0
    %1365 = vmatpush2.msra.mxu0 0.0
    %1366 = vmatprep.subr.mxu0 0.0
    %1367 = vmatpush2.msra.mxu0 0.0
    %1368 = vmatprep.subr.mxu0 0.0
    %1369 = vmatpush2.msra.mxu0 0.0
    %1370 = vmatprep.subr.mxu0 0.0
    %1371 = vmatpush2.msra.mxu0 0.0
    %1372 = vmatprep.subr.mxu0 0.0
    %1373 = vmatpush2.msra.mxu0 0.0
    %1374 = vmatprep.subr.mxu0 0.0
    %1375 = vmatpush2.msra.mxu0 0.0
    %1376 = vmatprep.subr.mxu0 0.0
    %1377 = vmatpush2.msra.mxu0 0.0
    %1378 = vmatprep.subr.mxu0 0.0
    %1379 = vmatpush2.msra.mxu0 0.0
    %1380 = vmatprep.subr.mxu0 0.0
    %1381 = vmatpush2.msra.mxu0 0.0
    %1382 = vmatprep.subr.mxu0 0.0
    %1383 = vmatpush2.msra.mxu0 0.0
    %1384 = vmatprep.subr.mxu0 0.0
    %1385 = vmatpush2.msra.mxu0 0.0
    %1386 = vmatprep.subr.mxu0 0.0
    %1387 = vmatpush2.msra.mxu0 0.0
    %1388 = vmatprep.subr.mxu0 0.0
    %1389 = vmatpush2.msra.mxu0 0.0
    %1390 = vmatprep.subr.mxu0 0.0
    %1391 = vmatpush2.msra.mxu0 0.0
    %1392 = vmatprep.mubr.f32.mxu0 0.0
    %1393 = vmatmul.mubr.f32.gmra.mxu0 %v1326
    %v1394 = vpop.f32.mrf.mxu0
    %v1395 = vadd.f32 0.0, %v1394
    %v1396 = vpop.f32.mrf.mxu0
    %1397 = vdwg.mxu0
    %v1398 = vadd.f32 %v1125, %v1395
    %v1399 = vxor.u32 %v1398, 2147483648
    %v1400 = vmul.f32 %v1399, 1.442695
    %v1401 = vpow.pop %v1400
    %v1402 = vadd.f32 %v1401, 1.0
    %v1403 = vrcp.pop %v1402
    %v1404 = vmul.f32 1.0, %v1403
    %v1405 = vtanh.pop %v1398
    %v1406 = vmul.f32 %v1404, %v1316
    %1408 = vrot.lane.b32.xlu0 %v1405, 64
    %v1409 = vpop.permute.xlu0 %1408
    %v1411 = vmul.f32 %v1404, %v1409
    %1413 = vrot.lane.b32.xlu0 %v1411, 32
    %v1414 = vpop.permute.xlu0 %1413
    %v1416 = vadd.f32 %v1406, %v1414
    %v1417 = vtanh.pop %v1416
    %1419 = vrot.lane.b32.xlu0 %v1417, 64
    %v1420 = vpop.permute.xlu0 %1419
    %v1422 = vmul.f32 %v1404, %v1420
    %1424 = vrot.lane.b32.xlu0 %v1422, 32
    %v1425 = vpop.permute.xlu0 %1424
    %v1426 = vsel %vm207, %v1425, 0
    %1428 = vmatprep.subr.mxu0 0.0
    %1429 = vmatpush1.msra.mxu0 0.0
    %1430 = vmatprep.subr.mxu0 0.0
    %1431 = vmatpush1.msra.mxu0 0.0
    %1432 = vmatprep.subr.mxu0 0.0
    %1433 = vmatpush1.msra.mxu0 0.0
    %1434 = vmatprep.subr.mxu0 0.0
    %1435 = vmatpush1.msra.mxu0 0.0
    %1436 = vmatprep.subr.mxu0 0.0
    %1437 = vmatpush1.msra.mxu0 0.0
    %1438 = vmatprep.subr.mxu0 0.0
    %1439 = vmatpush1.msra.mxu0 0.0
    %1440 = vmatprep.subr.mxu0 0.0
    %1441 = vmatpush1.msra.mxu0 0.0
    %1442 = vmatprep.subr.mxu0 0.0
    %1443 = vmatpush1.msra.mxu0 0.0
    %1444 = vmatprep.subr.mxu0 0.0
    %1445 = vmatpush1.msra.mxu0 0.0
    %1446 = vmatprep.subr.mxu0 0.0
    %1447 = vmatpush1.msra.mxu0 0.0
    %1448 = vmatprep.subr.mxu0 0.0
    %1449 = vmatpush1.msra.mxu0 0.0
    %1450 = vmatprep.subr.mxu0 0.0
    %1451 = vmatpush1.msra.mxu0 0.0
    %1452 = vmatprep.subr.mxu0 0.0
    %1453 = vmatpush1.msra.mxu0 %v56
    %1454 = vmatprep.subr.mxu0 0.0
    %1455 = vmatpush1.msra.mxu0 %v55
    %1456 = vmatprep.subr.mxu0 0.0
    %1457 = vmatpush1.msra.mxu0 %v54
    %1458 = vmatprep.subr.mxu0 0.0
    %1459 = vmatpush1.msra.mxu0 %v53
    %1460 = vmatprep.subr.mxu0 0.0
    %1461 = vmatpush2.msra.mxu0 0.0
    %1462 = vmatprep.subr.mxu0 0.0
    %1463 = vmatpush2.msra.mxu0 0.0
    %1464 = vmatprep.subr.mxu0 0.0
    %1465 = vmatpush2.msra.mxu0 0.0
    %1466 = vmatprep.subr.mxu0 0.0
    %1467 = vmatpush2.msra.mxu0 0.0
    %1468 = vmatprep.subr.mxu0 0.0
    %1469 = vmatpush2.msra.mxu0 0.0
    %1470 = vmatprep.subr.mxu0 0.0
    %1471 = vmatpush2.msra.mxu0 0.0
    %1472 = vmatprep.subr.mxu0 0.0
    %1473 = vmatpush2.msra.mxu0 0.0
    %1474 = vmatprep.subr.mxu0 0.0
    %1475 = vmatpush2.msra.mxu0 0.0
    %1476 = vmatprep.subr.mxu0 0.0
    %1477 = vmatpush2.msra.mxu0 0.0
    %1478 = vmatprep.subr.mxu0 0.0
    %1479 = vmatpush2.msra.mxu0 0.0
    %1480 = vmatprep.subr.mxu0 0.0
    %1481 = vmatpush2.msra.mxu0 0.0
    %1482 = vmatprep.subr.mxu0 0.0
    %1483 = vmatpush2.msra.mxu0 0.0
    %1484 = vmatprep.subr.mxu0 0.0
    %1485 = vmatpush2.msra.mxu0 0.0
    %1486 = vmatprep.subr.mxu0 0.0
    %1487 = vmatpush2.msra.mxu0 0.0
    %1488 = vmatprep.subr.mxu0 0.0
    %1489 = vmatpush2.msra.mxu0 0.0
    %1490 = vmatprep.subr.mxu0 0.0
    %1491 = vmatpush2.msra.mxu0 0.0
    %1492 = vmatprep.mubr.f32.mxu0 0.0
    %1493 = vmatmul.mubr.f32.gmra.mxu0 %v1426
    %v1494 = vpop.f32.mrf.mxu0
    %v1495 = vadd.f32 0.0, %v1494
    %v1496 = vpop.f32.mrf.mxu0
    %1497 = vdwg.mxu0
    %v1498 = vadd.f32 %v1124, %v1495
    %v1499 = vxor.u32 %v1498, 2147483648
    %v1500 = vmul.f32 %v1499, 1.442695
    %v1501 = vpow.pop %v1500
    %v1502 = vadd.f32 %v1501, 1.0
    %v1503 = vrcp.pop %v1502
    %v1504 = vmul.f32 1.0, %v1503
    %v1505 = vtanh.pop %v1498
    %v1506 = vmul.f32 %v1504, %v1416
    %1508 = vrot.lane.b32.xlu0 %v1505, 64
    %v1509 = vpop.permute.xlu0 %1508
    %v1511 = vmul.f32 %v1504, %v1509
    %1513 = vrot.lane.b32.xlu0 %v1511, 32
    %v1514 = vpop.permute.xlu0 %1513
    %v1516 = vadd.f32 %v1506, %v1514
    %v1517 = vtanh.pop %v1516
    %1519 = vrot.lane.b32.xlu0 %v1517, 64
    %v1520 = vpop.permute.xlu0 %1519
    %v1522 = vmul.f32 %v1504, %v1520
    %1524 = vrot.lane.b32.xlu0 %v1522, 32
    %v1525 = vpop.permute.xlu0 %1524
    %v1526 = vsel %vm207, %v1525, 0
    %1528 = vmatprep.subr.mxu0 0.0
    %1529 = vmatpush1.msra.mxu0 0.0
    %1530 = vmatprep.subr.mxu0 0.0
    %1531 = vmatpush1.msra.mxu0 0.0
    %1532 = vmatprep.subr.mxu0 0.0
    %1533 = vmatpush1.msra.mxu0 0.0
    %1534 = vmatprep.subr.mxu0 0.0
    %1535 = vmatpush1.msra.mxu0 0.0
    %1536 = vmatprep.subr.mxu0 0.0
    %1537 = vmatpush1.msra.mxu0 0.0
    %1538 = vmatprep.subr.mxu0 0.0
    %1539 = vmatpush1.msra.mxu0 0.0
    %1540 = vmatprep.subr.mxu0 0.0
    %1541 = vmatpush1.msra.mxu0 0.0
    %1542 = vmatprep.subr.mxu0 0.0
    %1543 = vmatpush1.msra.mxu0 0.0
    %1544 = vmatprep.subr.mxu0 0.0
    %1545 = vmatpush1.msra.mxu0 0.0
    %1546 = vmatprep.subr.mxu0 0.0
    %1547 = vmatpush1.msra.mxu0 0.0
    %1548 = vmatprep.subr.mxu0 0.0
    %1549 = vmatpush1.msra.mxu0 0.0
    %1550 = vmatprep.subr.mxu0 0.0
    %1551 = vmatpush1.msra.mxu0 0.0
    %1552 = vmatprep.subr.mxu0 0.0
    %1553 = vmatpush1.msra.mxu0 %v56
    %1554 = vmatprep.subr.mxu0 0.0
    %1555 = vmatpush1.msra.mxu0 %v55
    %1556 = vmatprep.subr.mxu0 0.0
    %1557 = vmatpush1.msra.mxu0 %v54
    %1558 = vmatprep.subr.mxu0 0.0
    %1559 = vmatpush1.msra.mxu0 %v53
    %1560 = vmatprep.subr.mxu0 0.0
    %1561 = vmatpush2.msra.mxu0 0.0
    %1562 = vmatprep.subr.mxu0 0.0
    %1563 = vmatpush2.msra.mxu0 0.0
    %1564 = vmatprep.subr.mxu0 0.0
    %1565 = vmatpush2.msra.mxu0 0.0
    %1566 = vmatprep.subr.mxu0 0.0
    %1567 = vmatpush2.msra.mxu0 0.0
    %1568 = vmatprep.subr.mxu0 0.0
    %1569 = vmatpush2.msra.mxu0 0.0
    %1570 = vmatprep.subr.mxu0 0.0
    %1571 = vmatpush2.msra.mxu0 0.0
    %1572 = vmatprep.subr.mxu0 0.0
    %1573 = vmatpush2.msra.mxu0 0.0
    %1574 = vmatprep.subr.mxu0 0.0
    %1575 = vmatpush2.msra.mxu0 0.0
    %1576 = vmatprep.subr.mxu0 0.0
    %1577 = vmatpush2.msra.mxu0 0.0
    %1578 = vmatprep.subr.mxu0 0.0
    %1579 = vmatpush2.msra.mxu0 0.0
    %1580 = vmatprep.subr.mxu0 0.0
    %1581 = vmatpush2.msra.mxu0 0.0
    %1582 = vmatprep.subr.mxu0 0.0
    %1583 = vmatpush2.msra.mxu0 0.0
    %1584 = vmatprep.subr.mxu0 0.0
    %1585 = vmatpush2.msra.mxu0 0.0
    %1586 = vmatprep.subr.mxu0 0.0
    %1587 = vmatpush2.msra.mxu0 0.0
    %1588 = vmatprep.subr.mxu0 0.0
    %1589 = vmatpush2.msra.mxu0 0.0
    %1590 = vmatprep.subr.mxu0 0.0
    %1591 = vmatpush2.msra.mxu0 0.0
    %1592 = vmatprep.mubr.f32.mxu0 0.0
    %1593 = vmatmul.mubr.f32.gmra.mxu0 %v1526
    %v1594 = vpop.f32.mrf.mxu0
    %v1595 = vadd.f32 0.0, %v1594
    %v1596 = vpop.f32.mrf.mxu0
    %1597 = vdwg.mxu0
    %v1598 = vadd.f32 %v1123, %v1595
    %v1599 = vxor.u32 %v1598, 2147483648
    %v1600 = vmul.f32 %v1599, 1.442695
    %v1601 = vpow.pop %v1600
    %v1602 = vadd.f32 %v1601, 1.0
    %v1603 = vrcp.pop %v1602
    %v1604 = vmul.f32 1.0, %v1603
    %v1605 = vtanh.pop %v1598
    %v1606 = vmul.f32 %v1604, %v1516
    %1608 = vrot.lane.b32.xlu0 %v1605, 64
    %v1609 = vpop.permute.xlu0 %1608
    %v1611 = vmul.f32 %v1604, %v1609
    %1613 = vrot.lane.b32.xlu0 %v1611, 32
    %v1614 = vpop.permute.xlu0 %1613
    %v1616 = vadd.f32 %v1606, %v1614
    %v1617 = vtanh.pop %v1616
    %1619 = vrot.lane.b32.xlu0 %v1617, 64
    %v1620 = vpop.permute.xlu0 %1619
    %v1622 = vmul.f32 %v1604, %v1620
    %1624 = vrot.lane.b32.xlu0 %v1622, 32
    %v1625 = vpop.permute.xlu0 %1624
    %v1626 = vsel %vm207, %v1625, 0
    %1628 = vmatprep.subr.mxu0 0.0
    %1629 = vmatpush1.msra.mxu0 0.0
    %1630 = vmatprep.subr.mxu0 0.0
    %1631 = vmatpush1.msra.mxu0 0.0
    %1632 = vmatprep.subr.mxu0 0.0
    %1633 = vmatpush1.msra.mxu0 0.0
    %1634 = vmatprep.subr.mxu0 0.0
    %1635 = vmatpush1.msra.mxu0 0.0
    %1636 = vmatprep.subr.mxu0 0.0
    %1637 = vmatpush1.msra.mxu0 0.0
    %1638 = vmatprep.subr.mxu0 0.0
    %1639 = vmatpush1.msra.mxu0 0.0
    %1640 = vmatprep.subr.mxu0 0.0
    %1641 = vmatpush1.msra.mxu0 0.0
    %1642 = vmatprep.subr.mxu0 0.0
    %1643 = vmatpush1.msra.mxu0 0.0
    %1644 = vmatprep.subr.mxu0 0.0
    %1645 = vmatpush1.msra.mxu0 0.0
    %1646 = vmatprep.subr.mxu0 0.0
    %1647 = vmatpush1.msra.mxu0 0.0
    %1648 = vmatprep.subr.mxu0 0.0
    %1649 = vmatpush1.msra.mxu0 0.0
    %1650 = vmatprep.subr.mxu0 0.0
    %1651 = vmatpush1.msra.mxu0 0.0
    %1652 = vmatprep.subr.mxu0 0.0
    %1653 = vmatpush1.msra.mxu0 %v56
    %1654 = vmatprep.subr.mxu0 0.0
    %1655 = vmatpush1.msra.mxu0 %v55
    %1656 = vmatprep.subr.mxu0 0.0
    %1657 = vmatpush1.msra.mxu0 %v54
    %1658 = vmatprep.subr.mxu0 0.0
    %1659 = vmatpush1.msra.mxu0 %v53
    %1660 = vmatprep.subr.mxu0 0.0
    %1661 = vmatpush2.msra.mxu0 0.0
    %1662 = vmatprep.subr.mxu0 0.0
    %1663 = vmatpush2.msra.mxu0 0.0
    %1664 = vmatprep.subr.mxu0 0.0
    %1665 = vmatpush2.msra.mxu0 0.0
    %1666 = vmatprep.subr.mxu0 0.0
    %1667 = vmatpush2.msra.mxu0 0.0
    %1668 = vmatprep.subr.mxu0 0.0
    %1669 = vmatpush2.msra.mxu0 0.0
    %1670 = vmatprep.subr.mxu0 0.0
    %1671 = vmatpush2.msra.mxu0 0.0
    %1672 = vmatprep.subr.mxu0 0.0
    %1673 = vmatpush2.msra.mxu0 0.0
    %1674 = vmatprep.subr.mxu0 0.0
    %1675 = vmatpush2.msra.mxu0 0.0
    %1676 = vmatprep.subr.mxu0 0.0
    %1677 = vmatpush2.msra.mxu0 0.0
    %1678 = vmatprep.subr.mxu0 0.0
    %1679 = vmatpush2.msra.mxu0 0.0
    %1680 = vmatprep.subr.mxu0 0.0
    %1681 = vmatpush2.msra.mxu0 0.0
    %1682 = vmatprep.subr.mxu0 0.0
    %1683 = vmatpush2.msra.mxu0 0.0
    %1684 = vmatprep.subr.mxu0 0.0
    %1685 = vmatpush2.msra.mxu0 0.0
    %1686 = vmatprep.subr.mxu0 0.0
    %1687 = vmatpush2.msra.mxu0 0.0
    %1688 = vmatprep.subr.mxu0 0.0
    %1689 = vmatpush2.msra.mxu0 0.0
    %1690 = vmatprep.subr.mxu0 0.0
    %1691 = vmatpush2.msra.mxu0 0.0
    %1692 = vmatprep.mubr.f32.mxu0 0.0
    %1693 = vmatmul.mubr.f32.gmra.mxu0 %v1626
    %v1694 = vpop.f32.mrf.mxu0
    %v1695 = vadd.f32 0.0, %v1694
    %v1696 = vpop.f32.mrf.mxu0
    %1697 = vdwg.mxu0
    %v1698 = vadd.f32 %v1122, %v1695
    %v1699 = vxor.u32 %v1698, 2147483648
    %v1700 = vmul.f32 %v1699, 1.442695
    %v1701 = vpow.pop %v1700
    %v1702 = vadd.f32 %v1701, 1.0
    %v1703 = vrcp.pop %v1702
    %v1704 = vmul.f32 1.0, %v1703
    %v1705 = vtanh.pop %v1698
    %v1706 = vmul.f32 %v1704, %v1616
    %1708 = vrot.lane.b32.xlu0 %v1705, 64
    %v1709 = vpop.permute.xlu0 %1708
    %v1711 = vmul.f32 %v1704, %v1709
    %1713 = vrot.lane.b32.xlu0 %v1711, 32
    %v1714 = vpop.permute.xlu0 %1713
    %v1716 = vadd.f32 %v1706, %v1714
    %v1717 = vtanh.pop %v1716
    %1719 = vrot.lane.b32.xlu0 %v1717, 64
    %v1720 = vpop.permute.xlu0 %1719
    %v1722 = vmul.f32 %v1704, %v1720
    %1724 = vrot.lane.b32.xlu0 %v1722, 32
    %v1725 = vpop.permute.xlu0 %1724
    %v1726 = vsel %vm207, %v1725, 0
    %1728 = vmatprep.subr.mxu0 0.0
    %1729 = vmatpush1.msra.mxu0 0.0
    %1730 = vmatprep.subr.mxu0 0.0
    %1731 = vmatpush1.msra.mxu0 0.0
    %1732 = vmatprep.subr.mxu0 0.0
    %1733 = vmatpush1.msra.mxu0 0.0
    %1734 = vmatprep.subr.mxu0 0.0
    %1735 = vmatpush1.msra.mxu0 0.0
    %1736 = vmatprep.subr.mxu0 0.0
    %1737 = vmatpush1.msra.mxu0 0.0
    %1738 = vmatprep.subr.mxu0 0.0
    %1739 = vmatpush1.msra.mxu0 0.0
    %1740 = vmatprep.subr.mxu0 0.0
    %1741 = vmatpush1.msra.mxu0 0.0
    %1742 = vmatprep.subr.mxu0 0.0
    %1743 = vmatpush1.msra.mxu0 0.0
    %1744 = vmatprep.subr.mxu0 0.0
    %1745 = vmatpush1.msra.mxu0 0.0
    %1746 = vmatprep.subr.mxu0 0.0
    %1747 = vmatpush1.msra.mxu0 0.0
    %1748 = vmatprep.subr.mxu0 0.0
    %1749 = vmatpush1.msra.mxu0 0.0
    %1750 = vmatprep.subr.mxu0 0.0
    %1751 = vmatpush1.msra.mxu0 0.0
    %1752 = vmatprep.subr.mxu0 0.0
    %1753 = vmatpush1.msra.mxu0 %v56
    %1754 = vmatprep.subr.mxu0 0.0
    %1755 = vmatpush1.msra.mxu0 %v55
    %1756 = vmatprep.subr.mxu0 0.0
    %1757 = vmatpush1.msra.mxu0 %v54
    %1758 = vmatprep.subr.mxu0 0.0
    %1759 = vmatpush1.msra.mxu0 %v53
    %1760 = vmatprep.subr.mxu0 0.0
    %1761 = vmatpush2.msra.mxu0 0.0
    %1762 = vmatprep.subr.mxu0 0.0
    %1763 = vmatpush2.msra.mxu0 0.0
    %1764 = vmatprep.subr.mxu0 0.0
    %1765 = vmatpush2.msra.mxu0 0.0
    %1766 = vmatprep.subr.mxu0 0.0
    %1767 = vmatpush2.msra.mxu0 0.0
    %1768 = vmatprep.subr.mxu0 0.0
    %1769 = vmatpush2.msra.mxu0 0.0
    %1770 = vmatprep.subr.mxu0 0.0
    %1771 = vmatpush2.msra.mxu0 0.0
    %1772 = vmatprep.subr.mxu0 0.0
    %1773 = vmatpush2.msra.mxu0 0.0
    %1774 = vmatprep.subr.mxu0 0.0
    %1775 = vmatpush2.msra.mxu0 0.0
    %1776 = vmatprep.subr.mxu0 0.0
    %1777 = vmatpush2.msra.mxu0 0.0
    %1778 = vmatprep.subr.mxu0 0.0
    %1779 = vmatpush2.msra.mxu0 0.0
    %1780 = vmatprep.subr.mxu0 0.0
    %1781 = vmatpush2.msra.mxu0 0.0
    %1782 = vmatprep.subr.mxu0 0.0
    %1783 = vmatpush2.msra.mxu0 0.0
    %1784 = vmatprep.subr.mxu0 0.0
    %1785 = vmatpush2.msra.mxu0 0.0
    %1786 = vmatprep.subr.mxu0 0.0
    %1787 = vmatpush2.msra.mxu0 0.0
    %1788 = vmatprep.subr.mxu0 0.0
    %1789 = vmatpush2.msra.mxu0 0.0
    %1790 = vmatprep.subr.mxu0 0.0
    %1791 = vmatpush2.msra.mxu0 0.0
    %1792 = vmatprep.mubr.f32.mxu0 0.0
    %1793 = vmatmul.mubr.f32.gmra.mxu0 %v1726
    %v1794 = vpop.f32.mrf.mxu0
    %v1795 = vadd.f32 0.0, %v1794
    %v1796 = vpop.f32.mrf.mxu0
    %1797 = vdwg.mxu0
    %v1798 = vadd.f32 %v1121, %v1795
    %v1799 = vxor.u32 %v1798, 2147483648
    %v1800 = vmul.f32 %v1799, 1.442695
    %v1801 = vpow.pop %v1800
    %v1802 = vadd.f32 %v1801, 1.0
    %v1803 = vrcp.pop %v1802
    %v1804 = vmul.f32 1.0, %v1803
    %v1805 = vtanh.pop %v1798
    %v1806 = vmul.f32 %v1804, %v1716
    %1808 = vrot.lane.b32.xlu0 %v1805, 64
    %v1809 = vpop.permute.xlu0 %1808
    %v1811 = vmul.f32 %v1804, %v1809
    %1813 = vrot.lane.b32.xlu0 %v1811, 32
    %v1814 = vpop.permute.xlu0 %1813
    %v1816 = vadd.f32 %v1806, %v1814
    %v1817 = vtanh.pop %v1816
    %1819 = vrot.lane.b32.xlu0 %v1817, 64
    %v1820 = vpop.permute.xlu0 %1819
    %v1822 = vmul.f32 %v1804, %v1820
    %1824 = vrot.lane.b32.xlu0 %v1822, 32
    %v1825 = vpop.permute.xlu0 %1824
    %v1826 = vsel %vm207, %v1825, 0
    %1828 = vmatprep.subr.mxu0 0.0
    %1829 = vmatpush1.msra.mxu0 0.0
    %1830 = vmatprep.subr.mxu0 0.0
    %1831 = vmatpush1.msra.mxu0 0.0
    %1832 = vmatprep.subr.mxu0 0.0
    %1833 = vmatpush1.msra.mxu0 0.0
    %1834 = vmatprep.subr.mxu0 0.0
    %1835 = vmatpush1.msra.mxu0 0.0
    %1836 = vmatprep.subr.mxu0 0.0
    %1837 = vmatpush1.msra.mxu0 0.0
    %1838 = vmatprep.subr.mxu0 0.0
    %1839 = vmatpush1.msra.mxu0 0.0
    %1840 = vmatprep.subr.mxu0 0.0
    %1841 = vmatpush1.msra.mxu0 0.0
    %1842 = vmatprep.subr.mxu0 0.0
    %1843 = vmatpush1.msra.mxu0 0.0
    %1844 = vmatprep.subr.mxu0 0.0
    %1845 = vmatpush1.msra.mxu0 0.0
    %1846 = vmatprep.subr.mxu0 0.0
    %1847 = vmatpush1.msra.mxu0 0.0
    %1848 = vmatprep.subr.mxu0 0.0
    %1849 = vmatpush1.msra.mxu0 0.0
    %1850 = vmatprep.subr.mxu0 0.0
    %1851 = vmatpush1.msra.mxu0 0.0
    %1852 = vmatprep.subr.mxu0 0.0
    %1853 = vmatpush1.msra.mxu0 %v56
    %1854 = vmatprep.subr.mxu0 0.0
    %1855 = vmatpush1.msra.mxu0 %v55
    %1856 = vmatprep.subr.mxu0 0.0
    %1857 = vmatpush1.msra.mxu0 %v54
    %1858 = vmatprep.subr.mxu0 0.0
    %1859 = vmatpush1.msra.mxu0 %v53
    %1860 = vmatprep.subr.mxu0 0.0
    %1861 = vmatpush2.msra.mxu0 0.0
    %1862 = vmatprep.subr.mxu0 0.0
    %1863 = vmatpush2.msra.mxu0 0.0
    %1864 = vmatprep.subr.mxu0 0.0
    %1865 = vmatpush2.msra.mxu0 0.0
    %1866 = vmatprep.subr.mxu0 0.0
    %1867 = vmatpush2.msra.mxu0 0.0
    %1868 = vmatprep.subr.mxu0 0.0
    %1869 = vmatpush2.msra.mxu0 0.0
    %1870 = vmatprep.subr.mxu0 0.0
    %1871 = vmatpush2.msra.mxu0 0.0
    %1872 = vmatprep.subr.mxu0 0.0
    %1873 = vmatpush2.msra.mxu0 0.0
    %1874 = vmatprep.subr.mxu0 0.0
    %1875 = vmatpush2.msra.mxu0 0.0
    %1876 = vmatprep.subr.mxu0 0.0
    %1877 = vmatpush2.msra.mxu0 0.0
    %1878 = vmatprep.subr.mxu0 0.0
    %1879 = vmatpush2.msra.mxu0 0.0
    %1880 = vmatprep.subr.mxu0 0.0
    %1881 = vmatpush2.msra.mxu0 0.0
    %1882 = vmatprep.subr.mxu0 0.0
    %1883 = vmatpush2.msra.mxu0 0.0
    %1884 = vmatprep.subr.mxu0 0.0
    %1885 = vmatpush2.msra.mxu0 0.0
    %1886 = vmatprep.subr.mxu0 0.0
    %1887 = vmatpush2.msra.mxu0 0.0
    %1888 = vmatprep.subr.mxu0 0.0
    %1889 = vmatpush2.msra.mxu0 0.0
    %1890 = vmatprep.subr.mxu0 0.0
    %1891 = vmatpush2.msra.mxu0 0.0
    %1892 = vmatprep.mubr.f32.mxu0 0.0
    %1893 = vmatmul.mubr.f32.gmra.mxu0 %v1826
    %v1894 = vpop.f32.mrf.mxu0
    %v1895 = vadd.f32 0.0, %v1894
    %v1896 = vpop.f32.mrf.mxu0
    %1897 = vdwg.mxu0
    %v1898 = vadd.f32 %v1120, %v1895
    %v1899 = vxor.u32 %v1898, 2147483648
    %v1900 = vmul.f32 %v1899, 1.442695
    %v1901 = vpow.pop %v1900
    %v1902 = vadd.f32 %v1901, 1.0
    %v1903 = vrcp.pop %v1902
    %v1904 = vmul.f32 1.0, %v1903
    %v1905 = vtanh.pop %v1898
    %v1906 = vmul.f32 %v1904, %v1816
    %1908 = vrot.lane.b32.xlu0 %v1905, 64
    %v1909 = vpop.permute.xlu0 %1908
    %v1911 = vmul.f32 %v1904, %v1909
    %1913 = vrot.lane.b32.xlu0 %v1911, 32
    %v1914 = vpop.permute.xlu0 %1913
    %v1916 = vadd.f32 %v1906, %v1914
    %v1917 = vtanh.pop %v1916
    %1919 = vrot.lane.b32.xlu0 %v1917, 64
    %v1920 = vpop.permute.xlu0 %1919
    %v1922 = vmul.f32 %v1904, %v1920
    %v1923 = vld [vmem:[%s4] sm:$0xff]
    %v1924 = vld [vmem:[%s4 + $0x8] sm:$0xff]
    %v1925 = vld [vmem:[%s4 + $0x10] sm:$0xff]
    %v1926 = vld [vmem:[%s4 + $0x18] sm:$0xff]
    %v1927 = vld [vmem:[%s4 + $0x20] sm:$0xff]
    %v1928 = vld [vmem:[%s4 + $0x28] sm:$0xff]
    %v1929 = vld [vmem:[%s4 + $0x30] sm:$0xff]
    %v1930 = vld [vmem:[%s4 + $0x38] sm:$0xff]
    %v1931 = vld [vmem:[%s4 + $0x40] sm:$0xff]
    %v1932 = vld [vmem:[%s4 + $0x48] sm:$0xff]
    %v1933 = vld [vmem:[%s4 + $0x50] sm:$0xff]
    %v1934 = vld [vmem:[%s4 + $0x58] sm:$0xff]
    %v1935 = vld [vmem:[%s4 + $0x60] sm:$0xff]
    %v1936 = vld [vmem:[%s4 + $0x68] sm:$0xff]
    %v1937 = vld [vmem:[%s4 + $0x70] sm:$0xff]
    %v1938 = vld [vmem:[%s4 + $0x78] sm:$0xff]
    %v1939 = vld [vmem:[%s5] sm:$0xff]
    %v1940 = vld [vmem:[%s5 + $0x8] sm:$0xff]
    %v1941 = vld [vmem:[%s5 + $0x10] sm:$0xff]
    %v1942 = vld [vmem:[%s5 + $0x18] sm:$0xff]
    %v1943 = vld [vmem:[%s6] sm:$0x1]
    %v1944 = vld [vmem:[%s6 + $0x1] sm:$0x1]
    %1946 = vrot.lane.b32.xlu0 %v1005, 32
    %v1947 = vpop.permute.xlu0 %1946
    %v1948 = vsel %vm207, %v1947, 0
    %1950 = vmatprep.subr.mxu0 0.0
    %1951 = vmatpush1.msra.mxu0 0.0
    %1952 = vmatprep.subr.mxu0 0.0
    %1953 = vmatpush1.msra.mxu0 0.0
    %1954 = vmatprep.subr.mxu0 0.0
    %1955 = vmatpush1.msra.mxu0 0.0
    %1956 = vmatprep.subr.mxu0 0.0
    %1957 = vmatpush1.msra.mxu0 0.0
    %1958 = vmatprep.subr.mxu0 0.0
    %1959 = vmatpush1.msra.mxu0 0.0
    %1960 = vmatprep.subr.mxu0 0.0
    %1961 = vmatpush1.msra.mxu0 0.0
    %1962 = vmatprep.subr.mxu0 0.0
    %1963 = vmatpush1.msra.mxu0 0.0
    %1964 = vmatprep.subr.mxu0 0.0
    %1965 = vmatpush1.msra.mxu0 0.0
    %1966 = vmatprep.subr.mxu0 0.0
    %1967 = vmatpush1.msra.mxu0 0.0
    %1968 = vmatprep.subr.mxu0 0.0
    %1969 = vmatpush1.msra.mxu0 0.0
    %1970 = vmatprep.subr.mxu0 0.0
    %1971 = vmatpush1.msra.mxu0 0.0
    %1972 = vmatprep.subr.mxu0 0.0
    %1973 = vmatpush1.msra.mxu0 0.0
    %1974 = vmatprep.subr.mxu0 0.0
    %1975 = vmatpush1.msra.mxu0 %v1926
    %1976 = vmatprep.subr.mxu0 0.0
    %1977 = vmatpush1.msra.mxu0 %v1925
    %1978 = vmatprep.subr.mxu0 0.0
    %1979 = vmatpush1.msra.mxu0 %v1924
    %1980 = vmatprep.subr.mxu0 0.0
    %1981 = vmatpush1.msra.mxu0 %v1923
    %1982 = vmatprep.subr.mxu0 0.0
    %1983 = vmatpush2.msra.mxu0 0.0
    %1984 = vmatprep.subr.mxu0 0.0
    %1985 = vmatpush2.msra.mxu0 0.0
    %1986 = vmatprep.subr.mxu0 0.0
    %1987 = vmatpush2.msra.mxu0 0.0
    %1988 = vmatprep.subr.mxu0 0.0
    %1989 = vmatpush2.msra.mxu0 0.0
    %1990 = vmatprep.subr.mxu0 0.0
    %1991 = vmatpush2.msra.mxu0 0.0
    %1992 = vmatprep.subr.mxu0 0.0
    %1993 = vmatpush2.msra.mxu0 0.0
    %1994 = vmatprep.subr.mxu0 0.0
    %1995 = vmatpush2.msra.mxu0 0.0
    %1996 = vmatprep.subr.mxu0 0.0
    %1997 = vmatpush2.msra.mxu0 0.0
    %1998 = vmatprep.subr.mxu0 0.0
    %1999 = vmatpush2.msra.mxu0 0.0
    %2000 = vmatprep.subr.mxu0 0.0
    %2001 = vmatpush2.msra.mxu0 0.0
    %2002 = vmatprep.subr.mxu0 0.0
    %2003 = vmatpush2.msra.mxu0 0.0
    %2004 = vmatprep.subr.mxu0 0.0
    %2005 = vmatpush2.msra.mxu0 0.0
    %2006 = vmatprep.subr.mxu0 0.0
    %2007 = vmatpush2.msra.mxu0 0.0
    %2008 = vmatprep.subr.mxu0 0.0
    %2009 = vmatpush2.msra.mxu0 0.0
    %2010 = vmatprep.subr.mxu0 0.0
    %2011 = vmatpush2.msra.mxu0 0.0
    %2012 = vmatprep.subr.mxu0 0.0
    %2013 = vmatpush2.msra.mxu0 0.0
    %2014 = vmatprep.mubr.f32.mxu0 0.0
    %2015 = vmatmul.mubr.f32.gmra.mxu0 %v309
    %v2016 = vpop.f32.mrf.mxu0
    %v2017 = vadd.f32 0.0, %v2016
    %v2018 = vpop.f32.mrf.mxu0
    %2019 = vmatprep.mubr.f32.mxu0 0.0
    %2020 = vmatmul.mubr.f32.gmra.mxu0 %v409
    %v2021 = vpop.f32.mrf.mxu0
    %v2022 = vadd.f32 0.0, %v2021
    %v2023 = vpop.f32.mrf.mxu0
    %2024 = vmatprep.mubr.f32.mxu0 0.0
    %2025 = vmatmul.mubr.f32.gmra.mxu0 %v509
    %v2026 = vpop.f32.mrf.mxu0
    %v2027 = vadd.f32 0.0, %v2026
    %v2028 = vpop.f32.mrf.mxu0
    %2029 = vmatprep.mubr.f32.mxu0 0.0
    %2030 = vmatmul.mubr.f32.gmra.mxu0 %v609
    %v2031 = vpop.f32.mrf.mxu0
    %v2032 = vadd.f32 0.0, %v2031
    %v2033 = vpop.f32.mrf.mxu0
    %2034 = vmatprep.mubr.f32.mxu0 0.0
    %2035 = vmatmul.mubr.f32.gmra.mxu0 %v709
    %v2036 = vpop.f32.mrf.mxu0
    %v2037 = vadd.f32 0.0, %v2036
    %v2038 = vpop.f32.mrf.mxu0
    %2039 = vmatprep.mubr.f32.mxu0 0.0
    %2040 = vmatmul.mubr.f32.gmra.mxu0 %v809
    %v2041 = vpop.f32.mrf.mxu0
    %v2042 = vadd.f32 0.0, %v2041
    %v2043 = vpop.f32.mrf.mxu0
    %2044 = vmatprep.mubr.f32.mxu0 0.0
    %2045 = vmatmul.mubr.f32.gmra.mxu0 %v909
    %v2046 = vpop.f32.mrf.mxu0
    %v2047 = vadd.f32 0.0, %v2046
    %v2048 = vpop.f32.mrf.mxu0
    %2049 = vmatprep.mubr.f32.mxu0 0.0
    %2050 = vmatmul.mubr.f32.gmra.mxu0 %v1948
    %v2051 = vpop.f32.mrf.mxu0
    %v2052 = vadd.f32 0.0, %v2051
    %v2053 = vpop.f32.mrf.mxu0
    %2054 = vdwg.mxu0
    %v2056 = vlaneseq
    %v2057 = vshrl.u32 %v2056, 7
    %v2058 = vsub.s32 0, %v2057
    %v2059 = vrot.slane %v1943, %v2058
    %v2061 = vadd.f32 %v2059, %v2017
    %v2062 = vadd.f32 %v2059, %v2022
    %v2063 = vadd.f32 %v2059, %v2027
    %v2064 = vadd.f32 %v2059, %v2032
    %v2065 = vadd.f32 %v2059, %v2037
    %v2066 = vadd.f32 %v2059, %v2042
    %v2067 = vadd.f32 %v2059, %v2047
    %v2068 = vadd.f32 %v2059, %v2052
    %2070 = vrot.lane.b32.xlu0 %v1922, 32
    %v2071 = vpop.permute.xlu0 %2070
    %v2072 = vsel %vm207, %v2071, 0
    %2074 = vmatprep.subr.mxu0 0.0
    %2075 = vmatpush1.msra.mxu0 0.0
    %2076 = vmatprep.subr.mxu0 0.0
    %2077 = vmatpush1.msra.mxu0 0.0
    %2078 = vmatprep.subr.mxu0 0.0
    %2079 = vmatpush1.msra.mxu0 0.0
    %2080 = vmatprep.subr.mxu0 0.0
    %2081 = vmatpush1.msra.mxu0 0.0
    %2082 = vmatprep.subr.mxu0 0.0
    %2083 = vmatpush1.msra.mxu0 0.0
    %2084 = vmatprep.subr.mxu0 0.0
    %2085 = vmatpush1.msra.mxu0 0.0
    %2086 = vmatprep.subr.mxu0 0.0
    %2087 = vmatpush1.msra.mxu0 0.0
    %2088 = vmatprep.subr.mxu0 0.0
    %2089 = vmatpush1.msra.mxu0 0.0
    %2090 = vmatprep.subr.mxu0 0.0
    %2091 = vmatpush1.msra.mxu0 0.0
    %2092 = vmatprep.subr.mxu0 0.0
    %2093 = vmatpush1.msra.mxu0 0.0
    %2094 = vmatprep.subr.mxu0 0.0
    %2095 = vmatpush1.msra.mxu0 0.0
    %2096 = vmatprep.subr.mxu0 0.0
    %2097 = vmatpush1.msra.mxu0 0.0
    %2098 = vmatprep.subr.mxu0 0.0
    %2099 = vmatpush1.msra.mxu0 %v1930
    %2100 = vmatprep.subr.mxu0 0.0
    %2101 = vmatpush1.msra.mxu0 %v1929
    %2102 = vmatprep.subr.mxu0 0.0
    %2103 = vmatpush1.msra.mxu0 %v1928
    %2104 = vmatprep.subr.mxu0 0.0
    %2105 = vmatpush1.msra.mxu0 %v1927
    %2106 = vmatprep.subr.mxu0 0.0
    %2107 = vmatpush2.msra.mxu0 0.0
    %2108 = vmatprep.subr.mxu0 0.0
    %2109 = vmatpush2.msra.mxu0 0.0
    %2110 = vmatprep.subr.mxu0 0.0
    %2111 = vmatpush2.msra.mxu0 0.0
    %2112 = vmatprep.subr.mxu0 0.0
    %2113 = vmatpush2.msra.mxu0 0.0
    %2114 = vmatprep.subr.mxu0 0.0
    %2115 = vmatpush2.msra.mxu0 0.0
    %2116 = vmatprep.subr.mxu0 0.0
    %2117 = vmatpush2.msra.mxu0 0.0
    %2118 = vmatprep.subr.mxu0 0.0
    %2119 = vmatpush2.msra.mxu0 0.0
    %2120 = vmatprep.subr.mxu0 0.0
    %2121 = vmatpush2.msra.mxu0 0.0
    %2122 = vmatprep.subr.mxu0 0.0
    %2123 = vmatpush2.msra.mxu0 0.0
    %2124 = vmatprep.subr.mxu0 0.0
    %2125 = vmatpush2.msra.mxu0 0.0
    %2126 = vmatprep.subr.mxu0 0.0
    %2127 = vmatpush2.msra.mxu0 0.0
    %2128 = vmatprep.subr.mxu0 0.0
    %2129 = vmatpush2.msra.mxu0 0.0
    %2130 = vmatprep.subr.mxu0 0.0
    %2131 = vmatpush2.msra.mxu0 0.0
    %2132 = vmatprep.subr.mxu0 0.0
    %2133 = vmatpush2.msra.mxu0 0.0
    %2134 = vmatprep.subr.mxu0 0.0
    %2135 = vmatpush2.msra.mxu0 0.0
    %2136 = vmatprep.subr.mxu0 0.0
    %2137 = vmatpush2.msra.mxu0 0.0
    %2138 = vmatprep.mubr.f32.mxu0 0.0
    %2139 = vmatmul.mubr.f32.gmra.mxu0 %v2072
    %v2140 = vpop.f32.mrf.mxu0
    %v2141 = vadd.f32 0.0, %v2140
    %v2142 = vpop.f32.mrf.mxu0
    %2143 = vmatprep.mubr.f32.mxu0 0.0
    %2144 = vmatmul.mubr.f32.gmra.mxu0 %v1826
    %v2145 = vpop.f32.mrf.mxu0
    %v2146 = vadd.f32 0.0, %v2145
    %v2147 = vpop.f32.mrf.mxu0
    %2148 = vmatprep.mubr.f32.mxu0 0.0
    %2149 = vmatmul.mubr.f32.gmra.mxu0 %v1726
    %v2150 = vpop.f32.mrf.mxu0
    %v2151 = vadd.f32 0.0, %v2150
    %v2152 = vpop.f32.mrf.mxu0
    %2153 = vmatprep.mubr.f32.mxu0 0.0
    %2154 = vmatmul.mubr.f32.gmra.mxu0 %v1626
    %v2155 = vpop.f32.mrf.mxu0
    %v2156 = vadd.f32 0.0, %v2155
    %v2157 = vpop.f32.mrf.mxu0
    %2158 = vmatprep.mubr.f32.mxu0 0.0
    %2159 = vmatmul.mubr.f32.gmra.mxu0 %v1526
    %v2160 = vpop.f32.mrf.mxu0
    %v2161 = vadd.f32 0.0, %v2160
    %v2162 = vpop.f32.mrf.mxu0
    %2163 = vmatprep.mubr.f32.mxu0 0.0
    %2164 = vmatmul.mubr.f32.gmra.mxu0 %v1426
    %v2165 = vpop.f32.mrf.mxu0
    %v2166 = vadd.f32 0.0, %v2165
    %v2167 = vpop.f32.mrf.mxu0
    %2168 = vmatprep.mubr.f32.mxu0 0.0
    %2169 = vmatmul.mubr.f32.gmra.mxu0 %v1326
    %v2170 = vpop.f32.mrf.mxu0
    %v2171 = vadd.f32 0.0, %v2170
    %v2172 = vpop.f32.mrf.mxu0
    %2173 = vmatprep.mubr.f32.mxu0 0.0
    %2174 = vmatmul.mubr.f32.gmra.mxu0 %v1226
    %v2175 = vpop.f32.mrf.mxu0
    %v2176 = vadd.f32 0.0, %v2175
    %v2177 = vpop.f32.mrf.mxu0
    %2178 = vdwg.mxu0
    %v2179 = vadd.f32 %v2061, %v2141
    %v2180 = vadd.f32 %v2062, %v2146
    %v2181 = vadd.f32 %v2063, %v2151
    %v2182 = vadd.f32 %v2064, %v2156
    %v2183 = vadd.f32 %v2065, %v2161
    %v2184 = vadd.f32 %v2066, %v2166
    %v2185 = vadd.f32 %v2067, %v2171
    %v2186 = vadd.f32 %v2068, %v2176
    %2187 = vmatprep.subr.mxu0 0.0
    %2188 = vmatpush1.msra.mxu0 0.0
    %2189 = vmatprep.subr.mxu0 0.0
    %2190 = vmatpush1.msra.mxu0 0.0
    %2191 = vmatprep.subr.mxu0 0.0
    %2192 = vmatpush1.msra.mxu0 0.0
    %2193 = vmatprep.subr.mxu0 0.0
    %2194 = vmatpush1.msra.mxu0 0.0
    %2195 = vmatprep.subr.mxu0 0.0
    %2196 = vmatpush1.msra.mxu0 0.0
    %2197 = vmatprep.subr.mxu0 0.0
    %2198 = vmatpush1.msra.mxu0 0.0
    %2199 = vmatprep.subr.mxu0 0.0
    %2200 = vmatpush1.msra.mxu0 0.0
    %2201 = vmatprep.subr.mxu0 0.0
    %2202 = vmatpush1.msra.mxu0 0.0
    %2203 = vmatprep.subr.mxu0 0.0
    %2204 = vmatpush1.msra.mxu0 0.0
    %2205 = vmatprep.subr.mxu0 0.0
    %2206 = vmatpush1.msra.mxu0 0.0
    %2207 = vmatprep.subr.mxu0 0.0
    %2208 = vmatpush1.msra.mxu0 0.0
    %2209 = vmatprep.subr.mxu0 0.0
    %2210 = vmatpush1.msra.mxu0 0.0
    %2211 = vmatprep.subr.mxu0 0.0
    %2212 = vmatpush1.msra.mxu0 %v1942
    %2213 = vmatprep.subr.mxu0 0.0
    %2214 = vmatpush1.msra.mxu0 %v1941
    %2215 = vmatprep.subr.mxu0 0.0
    %2216 = vmatpush1.msra.mxu0 %v1940
    %2217 = vmatprep.subr.mxu0 0.0
    %2218 = vmatpush1.msra.mxu0 %v1939
    %2219 = vmatprep.subr.mxu0 0.0
    %2220 = vmatpush2.msra.mxu0 0.0
    %2221 = vmatprep.subr.mxu0 0.0
    %2222 = vmatpush2.msra.mxu0 0.0
    %2223 = vmatprep.subr.mxu0 0.0
    %2224 = vmatpush2.msra.mxu0 0.0
    %2225 = vmatprep.subr.mxu0 0.0
    %2226 = vmatpush2.msra.mxu0 0.0
    %2227 = vmatprep.subr.mxu0 0.0
    %2228 = vmatpush2.msra.mxu0 0.0
    %2229 = vmatprep.subr.mxu0 0.0
    %2230 = vmatpush2.msra.mxu0 0.0
    %2231 = vmatprep.subr.mxu0 0.0
    %2232 = vmatpush2.msra.mxu0 0.0
    %2233 = vmatprep.subr.mxu0 0.0
    %2234 = vmatpush2.msra.mxu0 0.0
    %2235 = vmatprep.subr.mxu0 0.0
    %2236 = vmatpush2.msra.mxu0 0.0
    %2237 = vmatprep.subr.mxu0 0.0
    %2238 = vmatpush2.msra.mxu0 0.0
    %2239 = vmatprep.subr.mxu0 0.0
    %2240 = vmatpush2.msra.mxu0 0.0
    %2241 = vmatprep.subr.mxu0 0.0
    %2242 = vmatpush2.msra.mxu0 0.0
    %2243 = vmatprep.subr.mxu0 0.0
    %2244 = vmatpush2.msra.mxu0 0.0
    %2245 = vmatprep.subr.mxu0 0.0
    %2246 = vmatpush2.msra.mxu0 0.0
    %2247 = vmatprep.subr.mxu0 0.0
    %2248 = vmatpush2.msra.mxu0 0.0
    %2249 = vmatprep.subr.mxu0 0.0
    %2250 = vmatpush2.msra.mxu0 0.0
    %2251 = vmatprep.mubr.f32.mxu0 0.0
    %2252 = vmatmul.mubr.f32.gmra.mxu0 %v209
    %v2253 = vpop.f32.mrf.mxu0
    %v2254 = vadd.f32 0.0, %v2253
    %v2255 = vpop.f32.mrf.mxu0
    %2256 = vdwg.mxu0
    %v2257 = vadd.f32 %v2179, %v2254
    %v2258 = vxor.u32 %v2257, 2147483648
    %v2259 = vmul.f32 %v2258, 1.442695
    %v2260 = vpow.pop %v2259
    %v2261 = vadd.f32 %v2260, 1.0
    %v2262 = vrcp.pop %v2261
    %v2263 = vmul.f32 1.0, %v2262
    %v2264 = vtanh.pop %v2257
    %v2265 = vmul.f32 %v2263, 0.0
    %2267 = vrot.lane.b32.xlu0 %v2264, 64
    %v2268 = vpop.permute.xlu0 %2267
    %v2270 = vmul.f32 %v2263, %v2268
    %2272 = vrot.lane.b32.xlu0 %v2270, 32
    %v2273 = vpop.permute.xlu0 %2272
    %v2275 = vadd.f32 %v2265, %v2273
    %v2276 = vtanh.pop %v2275
    %2278 = vrot.lane.b32.xlu0 %v2276, 64
    %v2279 = vpop.permute.xlu0 %2278
    %v2281 = vmul.f32 %v2263, %v2279
    %2283 = vrot.lane.b32.xlu0 %v2281, 32
    %v2284 = vpop.permute.xlu0 %2283
    %v2285 = vsel %vm207, %v2284, 0
    %2287 = vmatprep.subr.mxu0 0.0
    %2288 = vmatpush1.msra.mxu0 0.0
    %2289 = vmatprep.subr.mxu0 0.0
    %2290 = vmatpush1.msra.mxu0 0.0
    %2291 = vmatprep.subr.mxu0 0.0
    %2292 = vmatpush1.msra.mxu0 0.0
    %2293 = vmatprep.subr.mxu0 0.0
    %2294 = vmatpush1.msra.mxu0 0.0
    %2295 = vmatprep.subr.mxu0 0.0
    %2296 = vmatpush1.msra.mxu0 0.0
    %2297 = vmatprep.subr.mxu0 0.0
    %2298 = vmatpush1.msra.mxu0 0.0
    %2299 = vmatprep.subr.mxu0 0.0
    %2300 = vmatpush1.msra.mxu0 0.0
    %2301 = vmatprep.subr.mxu0 0.0
    %2302 = vmatpush1.msra.mxu0 0.0
    %2303 = vmatprep.subr.mxu0 0.0
    %2304 = vmatpush1.msra.mxu0 0.0
    %2305 = vmatprep.subr.mxu0 0.0
    %2306 = vmatpush1.msra.mxu0 0.0
    %2307 = vmatprep.subr.mxu0 0.0
    %2308 = vmatpush1.msra.mxu0 0.0
    %2309 = vmatprep.subr.mxu0 0.0
    %2310 = vmatpush1.msra.mxu0 0.0
    %2311 = vmatprep.subr.mxu0 0.0
    %2312 = vmatpush1.msra.mxu0 %v1942
    %2313 = vmatprep.subr.mxu0 0.0
    %2314 = vmatpush1.msra.mxu0 %v1941
    %2315 = vmatprep.subr.mxu0 0.0
    %2316 = vmatpush1.msra.mxu0 %v1940
    %2317 = vmatprep.subr.mxu0 0.0
    %2318 = vmatpush1.msra.mxu0 %v1939
    %2319 = vmatprep.subr.mxu0 0.0
    %2320 = vmatpush2.msra.mxu0 0.0
    %2321 = vmatprep.subr.mxu0 0.0
    %2322 = vmatpush2.msra.mxu0 0.0
    %2323 = vmatprep.subr.mxu0 0.0
    %2324 = vmatpush2.msra.mxu0 0.0
    %2325 = vmatprep.subr.mxu0 0.0
    %2326 = vmatpush2.msra.mxu0 0.0
    %2327 = vmatprep.subr.mxu0 0.0
    %2328 = vmatpush2.msra.mxu0 0.0
    %2329 = vmatprep.subr.mxu0 0.0
    %2330 = vmatpush2.msra.mxu0 0.0
    %2331 = vmatprep.subr.mxu0 0.0
    %2332 = vmatpush2.msra.mxu0 0.0
    %2333 = vmatprep.subr.mxu0 0.0
    %2334 = vmatpush2.msra.mxu0 0.0
    %2335 = vmatprep.subr.mxu0 0.0
    %2336 = vmatpush2.msra.mxu0 0.0
    %2337 = vmatprep.subr.mxu0 0.0
    %2338 = vmatpush2.msra.mxu0 0.0
    %2339 = vmatprep.subr.mxu0 0.0
    %2340 = vmatpush2.msra.mxu0 0.0
    %2341 = vmatprep.subr.mxu0 0.0
    %2342 = vmatpush2.msra.mxu0 0.0
    %2343 = vmatprep.subr.mxu0 0.0
    %2344 = vmatpush2.msra.mxu0 0.0
    %2345 = vmatprep.subr.mxu0 0.0
    %2346 = vmatpush2.msra.mxu0 0.0
    %2347 = vmatprep.subr.mxu0 0.0
    %2348 = vmatpush2.msra.mxu0 0.0
    %2349 = vmatprep.subr.mxu0 0.0
    %2350 = vmatpush2.msra.mxu0 0.0
    %2351 = vmatprep.mubr.f32.mxu0 0.0
    %2352 = vmatmul.mubr.f32.gmra.mxu0 %v2285
    %v2353 = vpop.f32.mrf.mxu0
    %v2354 = vadd.f32 0.0, %v2353
    %v2355 = vpop.f32.mrf.mxu0
    %2356 = vdwg.mxu0
    %v2357 = vadd.f32 %v2180, %v2354
    %v2358 = vxor.u32 %v2357, 2147483648
    %v2359 = vmul.f32 %v2358, 1.442695
    %v2360 = vpow.pop %v2359
    %v2361 = vadd.f32 %v2360, 1.0
    %v2362 = vrcp.pop %v2361
    %v2363 = vmul.f32 1.0, %v2362
    %v2364 = vtanh.pop %v2357
    %v2365 = vmul.f32 %v2363, %v2275
    %2367 = vrot.lane.b32.xlu0 %v2364, 64
    %v2368 = vpop.permute.xlu0 %2367
    %v2370 = vmul.f32 %v2363, %v2368
    %2372 = vrot.lane.b32.xlu0 %v2370, 32
    %v2373 = vpop.permute.xlu0 %2372
    %v2375 = vadd.f32 %v2365, %v2373
    %v2376 = vtanh.pop %v2375
    %2378 = vrot.lane.b32.xlu0 %v2376, 64
    %v2379 = vpop.permute.xlu0 %2378
    %v2381 = vmul.f32 %v2363, %v2379
    %2383 = vrot.lane.b32.xlu0 %v2381, 32
    %v2384 = vpop.permute.xlu0 %2383
    %v2385 = vsel %vm207, %v2384, 0
    %2387 = vmatprep.subr.mxu0 0.0
    %2388 = vmatpush1.msra.mxu0 0.0
    %2389 = vmatprep.subr.mxu0 0.0
    %2390 = vmatpush1.msra.mxu0 0.0
    %2391 = vmatprep.subr.mxu0 0.0
    %2392 = vmatpush1.msra.mxu0 0.0
    %2393 = vmatprep.subr.mxu0 0.0
    %2394 = vmatpush1.msra.mxu0 0.0
    %2395 = vmatprep.subr.mxu0 0.0
    %2396 = vmatpush1.msra.mxu0 0.0
    %2397 = vmatprep.subr.mxu0 0.0
    %2398 = vmatpush1.msra.mxu0 0.0
    %2399 = vmatprep.subr.mxu0 0.0
    %2400 = vmatpush1.msra.mxu0 0.0
    %2401 = vmatprep.subr.mxu0 0.0
    %2402 = vmatpush1.msra.mxu0 0.0
    %2403 = vmatprep.subr.mxu0 0.0
    %2404 = vmatpush1.msra.mxu0 0.0
    %2405 = vmatprep.subr.mxu0 0.0
    %2406 = vmatpush1.msra.mxu0 0.0
    %2407 = vmatprep.subr.mxu0 0.0
    %2408 = vmatpush1.msra.mxu0 0.0
    %2409 = vmatprep.subr.mxu0 0.0
    %2410 = vmatpush1.msra.mxu0 0.0
    %2411 = vmatprep.subr.mxu0 0.0
    %2412 = vmatpush1.msra.mxu0 %v1942
    %2413 = vmatprep.subr.mxu0 0.0
    %2414 = vmatpush1.msra.mxu0 %v1941
    %2415 = vmatprep.subr.mxu0 0.0
    %2416 = vmatpush1.msra.mxu0 %v1940
    %2417 = vmatprep.subr.mxu0 0.0
    %2418 = vmatpush1.msra.mxu0 %v1939
    %2419 = vmatprep.subr.mxu0 0.0
    %2420 = vmatpush2.msra.mxu0 0.0
    %2421 = vmatprep.subr.mxu0 0.0
    %2422 = vmatpush2.msra.mxu0 0.0
    %2423 = vmatprep.subr.mxu0 0.0
    %2424 = vmatpush2.msra.mxu0 0.0
    %2425 = vmatprep.subr.mxu0 0.0
    %2426 = vmatpush2.msra.mxu0 0.0
    %2427 = vmatprep.subr.mxu0 0.0
    %2428 = vmatpush2.msra.mxu0 0.0
    %2429 = vmatprep.subr.mxu0 0.0
    %2430 = vmatpush2.msra.mxu0 0.0
    %2431 = vmatprep.subr.mxu0 0.0
    %2432 = vmatpush2.msra.mxu0 0.0
    %2433 = vmatprep.subr.mxu0 0.0
    %2434 = vmatpush2.msra.mxu0 0.0
    %2435 = vmatprep.subr.mxu0 0.0
    %2436 = vmatpush2.msra.mxu0 0.0
    %2437 = vmatprep.subr.mxu0 0.0
    %2438 = vmatpush2.msra.mxu0 0.0
    %2439 = vmatprep.subr.mxu0 0.0
    %2440 = vmatpush2.msra.mxu0 0.0
    %2441 = vmatprep.subr.mxu0 0.0
    %2442 = vmatpush2.msra.mxu0 0.0
    %2443 = vmatprep.subr.mxu0 0.0
    %2444 = vmatpush2.msra.mxu0 0.0
    %2445 = vmatprep.subr.mxu0 0.0
    %2446 = vmatpush2.msra.mxu0 0.0
    %2447 = vmatprep.subr.mxu0 0.0
    %2448 = vmatpush2.msra.mxu0 0.0
    %2449 = vmatprep.subr.mxu0 0.0
    %2450 = vmatpush2.msra.mxu0 0.0
    %2451 = vmatprep.mubr.f32.mxu0 0.0
    %2452 = vmatmul.mubr.f32.gmra.mxu0 %v2385
    %v2453 = vpop.f32.mrf.mxu0
    %v2454 = vadd.f32 0.0, %v2453
    %v2455 = vpop.f32.mrf.mxu0
    %2456 = vdwg.mxu0
    %v2457 = vadd.f32 %v2181, %v2454
    %v2458 = vxor.u32 %v2457, 2147483648
    %v2459 = vmul.f32 %v2458, 1.442695
    %v2460 = vpow.pop %v2459
    %v2461 = vadd.f32 %v2460, 1.0
    %v2462 = vrcp.pop %v2461
    %v2463 = vmul.f32 1.0, %v2462
    %v2464 = vtanh.pop %v2457
    %v2465 = vmul.f32 %v2463, %v2375
    %2467 = vrot.lane.b32.xlu0 %v2464, 64
    %v2468 = vpop.permute.xlu0 %2467
    %v2470 = vmul.f32 %v2463, %v2468
    %2472 = vrot.lane.b32.xlu0 %v2470, 32
    %v2473 = vpop.permute.xlu0 %2472
    %v2475 = vadd.f32 %v2465, %v2473
    %v2476 = vtanh.pop %v2475
    %2478 = vrot.lane.b32.xlu0 %v2476, 64
    %v2479 = vpop.permute.xlu0 %2478
    %v2481 = vmul.f32 %v2463, %v2479
    %2483 = vrot.lane.b32.xlu0 %v2481, 32
    %v2484 = vpop.permute.xlu0 %2483
    %v2485 = vsel %vm207, %v2484, 0
    %2487 = vmatprep.subr.mxu0 0.0
    %2488 = vmatpush1.msra.mxu0 0.0
    %2489 = vmatprep.subr.mxu0 0.0
    %2490 = vmatpush1.msra.mxu0 0.0
    %2491 = vmatprep.subr.mxu0 0.0
    %2492 = vmatpush1.msra.mxu0 0.0
    %2493 = vmatprep.subr.mxu0 0.0
    %2494 = vmatpush1.msra.mxu0 0.0
    %2495 = vmatprep.subr.mxu0 0.0
    %2496 = vmatpush1.msra.mxu0 0.0
    %2497 = vmatprep.subr.mxu0 0.0
    %2498 = vmatpush1.msra.mxu0 0.0
    %2499 = vmatprep.subr.mxu0 0.0
    %2500 = vmatpush1.msra.mxu0 0.0
    %2501 = vmatprep.subr.mxu0 0.0
    %2502 = vmatpush1.msra.mxu0 0.0
    %2503 = vmatprep.subr.mxu0 0.0
    %2504 = vmatpush1.msra.mxu0 0.0
    %2505 = vmatprep.subr.mxu0 0.0
    %2506 = vmatpush1.msra.mxu0 0.0
    %2507 = vmatprep.subr.mxu0 0.0
    %2508 = vmatpush1.msra.mxu0 0.0
    %2509 = vmatprep.subr.mxu0 0.0
    %2510 = vmatpush1.msra.mxu0 0.0
    %2511 = vmatprep.subr.mxu0 0.0
    %2512 = vmatpush1.msra.mxu0 %v1942
    %2513 = vmatprep.subr.mxu0 0.0
    %2514 = vmatpush1.msra.mxu0 %v1941
    %2515 = vmatprep.subr.mxu0 0.0
    %2516 = vmatpush1.msra.mxu0 %v1940
    %2517 = vmatprep.subr.mxu0 0.0
    %2518 = vmatpush1.msra.mxu0 %v1939
    %2519 = vmatprep.subr.mxu0 0.0
    %2520 = vmatpush2.msra.mxu0 0.0
    %2521 = vmatprep.subr.mxu0 0.0
    %2522 = vmatpush2.msra.mxu0 0.0
    %2523 = vmatprep.subr.mxu0 0.0
    %2524 = vmatpush2.msra.mxu0 0.0
    %2525 = vmatprep.subr.mxu0 0.0
    %2526 = vmatpush2.msra.mxu0 0.0
    %2527 = vmatprep.subr.mxu0 0.0
    %2528 = vmatpush2.msra.mxu0 0.0
    %2529 = vmatprep.subr.mxu0 0.0
    %2530 = vmatpush2.msra.mxu0 0.0
    %2531 = vmatprep.subr.mxu0 0.0
    %2532 = vmatpush2.msra.mxu0 0.0
    %2533 = vmatprep.subr.mxu0 0.0
    %2534 = vmatpush2.msra.mxu0 0.0
    %2535 = vmatprep.subr.mxu0 0.0
    %2536 = vmatpush2.msra.mxu0 0.0
    %2537 = vmatprep.subr.mxu0 0.0
    %2538 = vmatpush2.msra.mxu0 0.0
    %2539 = vmatprep.subr.mxu0 0.0
    %2540 = vmatpush2.msra.mxu0 0.0
    %2541 = vmatprep.subr.mxu0 0.0
    %2542 = vmatpush2.msra.mxu0 0.0
    %2543 = vmatprep.subr.mxu0 0.0
    %2544 = vmatpush2.msra.mxu0 0.0
    %2545 = vmatprep.subr.mxu0 0.0
    %2546 = vmatpush2.msra.mxu0 0.0
    %2547 = vmatprep.subr.mxu0 0.0
    %2548 = vmatpush2.msra.mxu0 0.0
    %2549 = vmatprep.subr.mxu0 0.0
    %2550 = vmatpush2.msra.mxu0 0.0
    %2551 = vmatprep.mubr.f32.mxu0 0.0
    %2552 = vmatmul.mubr.f32.gmra.mxu0 %v2485
    %v2553 = vpop.f32.mrf.mxu0
    %v2554 = vadd.f32 0.0, %v2553
    %v2555 = vpop.f32.mrf.mxu0
    %2556 = vdwg.mxu0
    %v2557 = vadd.f32 %v2182, %v2554
    %v2558 = vxor.u32 %v2557, 2147483648
    %v2559 = vmul.f32 %v2558, 1.442695
    %v2560 = vpow.pop %v2559
    %v2561 = vadd.f32 %v2560, 1.0
    %v2562 = vrcp.pop %v2561
    %v2563 = vmul.f32 1.0, %v2562
    %v2564 = vtanh.pop %v2557
    %v2565 = vmul.f32 %v2563, %v2475
    %2567 = vrot.lane.b32.xlu0 %v2564, 64
    %v2568 = vpop.permute.xlu0 %2567
    %v2570 = vmul.f32 %v2563, %v2568
    %2572 = vrot.lane.b32.xlu0 %v2570, 32
    %v2573 = vpop.permute.xlu0 %2572
    %v2575 = vadd.f32 %v2565, %v2573
    %v2576 = vtanh.pop %v2575
    %2578 = vrot.lane.b32.xlu0 %v2576, 64
    %v2579 = vpop.permute.xlu0 %2578
    %v2581 = vmul.f32 %v2563, %v2579
    %2583 = vrot.lane.b32.xlu0 %v2581, 32
    %v2584 = vpop.permute.xlu0 %2583
    %v2585 = vsel %vm207, %v2584, 0
    %2587 = vmatprep.subr.mxu0 0.0
    %2588 = vmatpush1.msra.mxu0 0.0
    %2589 = vmatprep.subr.mxu0 0.0
    %2590 = vmatpush1.msra.mxu0 0.0
    %2591 = vmatprep.subr.mxu0 0.0
    %2592 = vmatpush1.msra.mxu0 0.0
    %2593 = vmatprep.subr.mxu0 0.0
    %2594 = vmatpush1.msra.mxu0 0.0
    %2595 = vmatprep.subr.mxu0 0.0
    %2596 = vmatpush1.msra.mxu0 0.0
    %2597 = vmatprep.subr.mxu0 0.0
    %2598 = vmatpush1.msra.mxu0 0.0
    %2599 = vmatprep.subr.mxu0 0.0
    %2600 = vmatpush1.msra.mxu0 0.0
    %2601 = vmatprep.subr.mxu0 0.0
    %2602 = vmatpush1.msra.mxu0 0.0
    %2603 = vmatprep.subr.mxu0 0.0
    %2604 = vmatpush1.msra.mxu0 0.0
    %2605 = vmatprep.subr.mxu0 0.0
    %2606 = vmatpush1.msra.mxu0 0.0
    %2607 = vmatprep.subr.mxu0 0.0
    %2608 = vmatpush1.msra.mxu0 0.0
    %2609 = vmatprep.subr.mxu0 0.0
    %2610 = vmatpush1.msra.mxu0 0.0
    %2611 = vmatprep.subr.mxu0 0.0
    %2612 = vmatpush1.msra.mxu0 %v1942
    %2613 = vmatprep.subr.mxu0 0.0
    %2614 = vmatpush1.msra.mxu0 %v1941
    %2615 = vmatprep.subr.mxu0 0.0
    %2616 = vmatpush1.msra.mxu0 %v1940
    %2617 = vmatprep.subr.mxu0 0.0
    %2618 = vmatpush1.msra.mxu0 %v1939
    %2619 = vmatprep.subr.mxu0 0.0
    %2620 = vmatpush2.msra.mxu0 0.0
    %2621 = vmatprep.subr.mxu0 0.0
    %2622 = vmatpush2.msra.mxu0 0.0
    %2623 = vmatprep.subr.mxu0 0.0
    %2624 = vmatpush2.msra.mxu0 0.0
    %2625 = vmatprep.subr.mxu0 0.0
    %2626 = vmatpush2.msra.mxu0 0.0
    %2627 = vmatprep.subr.mxu0 0.0
    %2628 = vmatpush2.msra.mxu0 0.0
    %2629 = vmatprep.subr.mxu0 0.0
    %2630 = vmatpush2.msra.mxu0 0.0
    %2631 = vmatprep.subr.mxu0 0.0
    %2632 = vmatpush2.msra.mxu0 0.0
    %2633 = vmatprep.subr.mxu0 0.0
    %2634 = vmatpush2.msra.mxu0 0.0
    %2635 = vmatprep.subr.mxu0 0.0
    %2636 = vmatpush2.msra.mxu0 0.0
    %2637 = vmatprep.subr.mxu0 0.0
    %2638 = vmatpush2.msra.mxu0 0.0
    %2639 = vmatprep.subr.mxu0 0.0
    %2640 = vmatpush2.msra.mxu0 0.0
    %2641 = vmatprep.subr.mxu0 0.0
    %2642 = vmatpush2.msra.mxu0 0.0
    %2643 = vmatprep.subr.mxu0 0.0
    %2644 = vmatpush2.msra.mxu0 0.0
    %2645 = vmatprep.subr.mxu0 0.0
    %2646 = vmatpush2.msra.mxu0 0.0
    %2647 = vmatprep.subr.mxu0 0.0
    %2648 = vmatpush2.msra.mxu0 0.0
    %2649 = vmatprep.subr.mxu0 0.0
    %2650 = vmatpush2.msra.mxu0 0.0
    %2651 = vmatprep.mubr.f32.mxu0 0.0
    %2652 = vmatmul.mubr.f32.gmra.mxu0 %v2585
    %v2653 = vpop.f32.mrf.mxu0
    %v2654 = vadd.f32 0.0, %v2653
    %v2655 = vpop.f32.mrf.mxu0
    %2656 = vdwg.mxu0
    %v2657 = vadd.f32 %v2183, %v2654
    %v2658 = vxor.u32 %v2657, 2147483648
    %v2659 = vmul.f32 %v2658, 1.442695
    %v2660 = vpow.pop %v2659
    %v2661 = vadd.f32 %v2660, 1.0
    %v2662 = vrcp.pop %v2661
    %v2663 = vmul.f32 1.0, %v2662
    %v2664 = vtanh.pop %v2657
    %v2665 = vmul.f32 %v2663, %v2575
    %2667 = vrot.lane.b32.xlu0 %v2664, 64
    %v2668 = vpop.permute.xlu0 %2667
    %v2670 = vmul.f32 %v2663, %v2668
    %2672 = vrot.lane.b32.xlu0 %v2670, 32
    %v2673 = vpop.permute.xlu0 %2672
    %v2675 = vadd.f32 %v2665, %v2673
    %v2676 = vtanh.pop %v2675
    %2678 = vrot.lane.b32.xlu0 %v2676, 64
    %v2679 = vpop.permute.xlu0 %2678
    %v2681 = vmul.f32 %v2663, %v2679
    %2683 = vrot.lane.b32.xlu0 %v2681, 32
    %v2684 = vpop.permute.xlu0 %2683
    %v2685 = vsel %vm207, %v2684, 0
    %2687 = vmatprep.subr.mxu0 0.0
    %2688 = vmatpush1.msra.mxu0 0.0
    %2689 = vmatprep.subr.mxu0 0.0
    %2690 = vmatpush1.msra.mxu0 0.0
    %2691 = vmatprep.subr.mxu0 0.0
    %2692 = vmatpush1.msra.mxu0 0.0
    %2693 = vmatprep.subr.mxu0 0.0
    %2694 = vmatpush1.msra.mxu0 0.0
    %2695 = vmatprep.subr.mxu0 0.0
    %2696 = vmatpush1.msra.mxu0 0.0
    %2697 = vmatprep.subr.mxu0 0.0
    %2698 = vmatpush1.msra.mxu0 0.0
    %2699 = vmatprep.subr.mxu0 0.0
    %2700 = vmatpush1.msra.mxu0 0.0
    %2701 = vmatprep.subr.mxu0 0.0
    %2702 = vmatpush1.msra.mxu0 0.0
    %2703 = vmatprep.subr.mxu0 0.0
    %2704 = vmatpush1.msra.mxu0 0.0
    %2705 = vmatprep.subr.mxu0 0.0
    %2706 = vmatpush1.msra.mxu0 0.0
    %2707 = vmatprep.subr.mxu0 0.0
    %2708 = vmatpush1.msra.mxu0 0.0
    %2709 = vmatprep.subr.mxu0 0.0
    %2710 = vmatpush1.msra.mxu0 0.0
    %2711 = vmatprep.subr.mxu0 0.0
    %2712 = vmatpush1.msra.mxu0 %v1942
    %2713 = vmatprep.subr.mxu0 0.0
    %2714 = vmatpush1.msra.mxu0 %v1941
    %2715 = vmatprep.subr.mxu0 0.0
    %2716 = vmatpush1.msra.mxu0 %v1940
    %2717 = vmatprep.subr.mxu0 0.0
    %2718 = vmatpush1.msra.mxu0 %v1939
    %2719 = vmatprep.subr.mxu0 0.0
    %2720 = vmatpush2.msra.mxu0 0.0
    %2721 = vmatprep.subr.mxu0 0.0
    %2722 = vmatpush2.msra.mxu0 0.0
    %2723 = vmatprep.subr.mxu0 0.0
    %2724 = vmatpush2.msra.mxu0 0.0
    %2725 = vmatprep.subr.mxu0 0.0
    %2726 = vmatpush2.msra.mxu0 0.0
    %2727 = vmatprep.subr.mxu0 0.0
    %2728 = vmatpush2.msra.mxu0 0.0
    %2729 = vmatprep.subr.mxu0 0.0
    %2730 = vmatpush2.msra.mxu0 0.0
    %2731 = vmatprep.subr.mxu0 0.0
    %2732 = vmatpush2.msra.mxu0 0.0
    %2733 = vmatprep.subr.mxu0 0.0
    %2734 = vmatpush2.msra.mxu0 0.0
    %2735 = vmatprep.subr.mxu0 0.0
    %2736 = vmatpush2.msra.mxu0 0.0
    %2737 = vmatprep.subr.mxu0 0.0
    %2738 = vmatpush2.msra.mxu0 0.0
    %2739 = vmatprep.subr.mxu0 0.0
    %2740 = vmatpush2.msra.mxu0 0.0
    %2741 = vmatprep.subr.mxu0 0.0
    %2742 = vmatpush2.msra.mxu0 0.0
    %2743 = vmatprep.subr.mxu0 0.0
    %2744 = vmatpush2.msra.mxu0 0.0
    %2745 = vmatprep.subr.mxu0 0.0
    %2746 = vmatpush2.msra.mxu0 0.0
    %2747 = vmatprep.subr.mxu0 0.0
    %2748 = vmatpush2.msra.mxu0 0.0
    %2749 = vmatprep.subr.mxu0 0.0
    %2750 = vmatpush2.msra.mxu0 0.0
    %2751 = vmatprep.mubr.f32.mxu0 0.0
    %2752 = vmatmul.mubr.f32.gmra.mxu0 %v2685
    %v2753 = vpop.f32.mrf.mxu0
    %v2754 = vadd.f32 0.0, %v2753
    %v2755 = vpop.f32.mrf.mxu0
    %2756 = vdwg.mxu0
    %v2757 = vadd.f32 %v2184, %v2754
    %v2758 = vxor.u32 %v2757, 2147483648
    %v2759 = vmul.f32 %v2758, 1.442695
    %v2760 = vpow.pop %v2759
    %v2761 = vadd.f32 %v2760, 1.0
    %v2762 = vrcp.pop %v2761
    %v2763 = vmul.f32 1.0, %v2762
    %v2764 = vtanh.pop %v2757
    %v2765 = vmul.f32 %v2763, %v2675
    %2767 = vrot.lane.b32.xlu0 %v2764, 64
    %v2768 = vpop.permute.xlu0 %2767
    %v2770 = vmul.f32 %v2763, %v2768
    %2772 = vrot.lane.b32.xlu0 %v2770, 32
    %v2773 = vpop.permute.xlu0 %2772
    %v2775 = vadd.f32 %v2765, %v2773
    %v2776 = vtanh.pop %v2775
    %2778 = vrot.lane.b32.xlu0 %v2776, 64
    %v2779 = vpop.permute.xlu0 %2778
    %v2781 = vmul.f32 %v2763, %v2779
    %2783 = vrot.lane.b32.xlu0 %v2781, 32
    %v2784 = vpop.permute.xlu0 %2783
    %v2785 = vsel %vm207, %v2784, 0
    %2787 = vmatprep.subr.mxu0 0.0
    %2788 = vmatpush1.msra.mxu0 0.0
    %2789 = vmatprep.subr.mxu0 0.0
    %2790 = vmatpush1.msra.mxu0 0.0
    %2791 = vmatprep.subr.mxu0 0.0
    %2792 = vmatpush1.msra.mxu0 0.0
    %2793 = vmatprep.subr.mxu0 0.0
    %2794 = vmatpush1.msra.mxu0 0.0
    %2795 = vmatprep.subr.mxu0 0.0
    %2796 = vmatpush1.msra.mxu0 0.0
    %2797 = vmatprep.subr.mxu0 0.0
    %2798 = vmatpush1.msra.mxu0 0.0
    %2799 = vmatprep.subr.mxu0 0.0
    %2800 = vmatpush1.msra.mxu0 0.0
    %2801 = vmatprep.subr.mxu0 0.0
    %2802 = vmatpush1.msra.mxu0 0.0
    %2803 = vmatprep.subr.mxu0 0.0
    %2804 = vmatpush1.msra.mxu0 0.0
    %2805 = vmatprep.subr.mxu0 0.0
    %2806 = vmatpush1.msra.mxu0 0.0
    %2807 = vmatprep.subr.mxu0 0.0
    %2808 = vmatpush1.msra.mxu0 0.0
    %2809 = vmatprep.subr.mxu0 0.0
    %2810 = vmatpush1.msra.mxu0 0.0
    %2811 = vmatprep.subr.mxu0 0.0
    %2812 = vmatpush1.msra.mxu0 %v1942
    %2813 = vmatprep.subr.mxu0 0.0
    %2814 = vmatpush1.msra.mxu0 %v1941
    %2815 = vmatprep.subr.mxu0 0.0
    %2816 = vmatpush1.msra.mxu0 %v1940
    %2817 = vmatprep.subr.mxu0 0.0
    %2818 = vmatpush1.msra.mxu0 %v1939
    %2819 = vmatprep.subr.mxu0 0.0
    %2820 = vmatpush2.msra.mxu0 0.0
    %2821 = vmatprep.subr.mxu0 0.0
    %2822 = vmatpush2.msra.mxu0 0.0
    %2823 = vmatprep.subr.mxu0 0.0
    %2824 = vmatpush2.msra.mxu0 0.0
    %2825 = vmatprep.subr.mxu0 0.0
    %2826 = vmatpush2.msra.mxu0 0.0
    %2827 = vmatprep.subr.mxu0 0.0
    %2828 = vmatpush2.msra.mxu0 0.0
    %2829 = vmatprep.subr.mxu0 0.0
    %2830 = vmatpush2.msra.mxu0 0.0
    %2831 = vmatprep.subr.mxu0 0.0
    %2832 = vmatpush2.msra.mxu0 0.0
    %2833 = vmatprep.subr.mxu0 0.0
    %2834 = vmatpush2.msra.mxu0 0.0
    %2835 = vmatprep.subr.mxu0 0.0
    %2836 = vmatpush2.msra.mxu0 0.0
    %2837 = vmatprep.subr.mxu0 0.0
    %2838 = vmatpush2.msra.mxu0 0.0
    %2839 = vmatprep.subr.mxu0 0.0
    %2840 = vmatpush2.msra.mxu0 0.0
    %2841 = vmatprep.subr.mxu0 0.0
    %2842 = vmatpush2.msra.mxu0 0.0
    %2843 = vmatprep.subr.mxu0 0.0
    %2844 = vmatpush2.msra.mxu0 0.0
    %2845 = vmatprep.subr.mxu0 0.0
    %2846 = vmatpush2.msra.mxu0 0.0
    %2847 = vmatprep.subr.mxu0 0.0
    %2848 = vmatpush2.msra.mxu0 0.0
    %2849 = vmatprep.subr.mxu0 0.0
    %2850 = vmatpush2.msra.mxu0 0.0
    %2851 = vmatprep.mubr.f32.mxu0 0.0
    %2852 = vmatmul.mubr.f32.gmra.mxu0 %v2785
    %v2853 = vpop.f32.mrf.mxu0
    %v2854 = vadd.f32 0.0, %v2853
    %v2855 = vpop.f32.mrf.mxu0
    %2856 = vdwg.mxu0
    %v2857 = vadd.f32 %v2185, %v2854
    %v2858 = vxor.u32 %v2857, 2147483648
    %v2859 = vmul.f32 %v2858, 1.442695
    %v2860 = vpow.pop %v2859
    %v2861 = vadd.f32 %v2860, 1.0
    %v2862 = vrcp.pop %v2861
    %v2863 = vmul.f32 1.0, %v2862
    %v2864 = vtanh.pop %v2857
    %v2865 = vmul.f32 %v2863, %v2775
    %2867 = vrot.lane.b32.xlu0 %v2864, 64
    %v2868 = vpop.permute.xlu0 %2867
    %v2870 = vmul.f32 %v2863, %v2868
    %2872 = vrot.lane.b32.xlu0 %v2870, 32
    %v2873 = vpop.permute.xlu0 %2872
    %v2875 = vadd.f32 %v2865, %v2873
    %v2876 = vtanh.pop %v2875
    %2878 = vrot.lane.b32.xlu0 %v2876, 64
    %v2879 = vpop.permute.xlu0 %2878
    %v2881 = vmul.f32 %v2863, %v2879
    %2883 = vrot.lane.b32.xlu0 %v2881, 32
    %v2884 = vpop.permute.xlu0 %2883
    %v2885 = vsel %vm207, %v2884, 0
    %2887 = vmatprep.subr.mxu0 0.0
    %2888 = vmatpush1.msra.mxu0 0.0
    %2889 = vmatprep.subr.mxu0 0.0
    %2890 = vmatpush1.msra.mxu0 0.0
    %2891 = vmatprep.subr.mxu0 0.0
    %2892 = vmatpush1.msra.mxu0 0.0
    %2893 = vmatprep.subr.mxu0 0.0
    %2894 = vmatpush1.msra.mxu0 0.0
    %2895 = vmatprep.subr.mxu0 0.0
    %2896 = vmatpush1.msra.mxu0 0.0
    %2897 = vmatprep.subr.mxu0 0.0
    %2898 = vmatpush1.msra.mxu0 0.0
    %2899 = vmatprep.subr.mxu0 0.0
    %2900 = vmatpush1.msra.mxu0 0.0
    %2901 = vmatprep.subr.mxu0 0.0
    %2902 = vmatpush1.msra.mxu0 0.0
    %2903 = vmatprep.subr.mxu0 0.0
    %2904 = vmatpush1.msra.mxu0 0.0
    %2905 = vmatprep.subr.mxu0 0.0
    %2906 = vmatpush1.msra.mxu0 0.0
    %2907 = vmatprep.subr.mxu0 0.0
    %2908 = vmatpush1.msra.mxu0 0.0
    %2909 = vmatprep.subr.mxu0 0.0
    %2910 = vmatpush1.msra.mxu0 0.0
    %2911 = vmatprep.subr.mxu0 0.0
    %2912 = vmatpush1.msra.mxu0 %v1942
    %2913 = vmatprep.subr.mxu0 0.0
    %2914 = vmatpush1.msra.mxu0 %v1941
    %2915 = vmatprep.subr.mxu0 0.0
    %2916 = vmatpush1.msra.mxu0 %v1940
    %2917 = vmatprep.subr.mxu0 0.0
    %2918 = vmatpush1.msra.mxu0 %v1939
    %2919 = vmatprep.subr.mxu0 0.0
    %2920 = vmatpush2.msra.mxu0 0.0
    %2921 = vmatprep.subr.mxu0 0.0
    %2922 = vmatpush2.msra.mxu0 0.0
    %2923 = vmatprep.subr.mxu0 0.0
    %2924 = vmatpush2.msra.mxu0 0.0
    %2925 = vmatprep.subr.mxu0 0.0
    %2926 = vmatpush2.msra.mxu0 0.0
    %2927 = vmatprep.subr.mxu0 0.0
    %2928 = vmatpush2.msra.mxu0 0.0
    %2929 = vmatprep.subr.mxu0 0.0
    %2930 = vmatpush2.msra.mxu0 0.0
    %2931 = vmatprep.subr.mxu0 0.0
    %2932 = vmatpush2.msra.mxu0 0.0
    %2933 = vmatprep.subr.mxu0 0.0
    %2934 = vmatpush2.msra.mxu0 0.0
    %2935 = vmatprep.subr.mxu0 0.0
    %2936 = vmatpush2.msra.mxu0 0.0
    %2937 = vmatprep.subr.mxu0 0.0
    %2938 = vmatpush2.msra.mxu0 0.0
    %2939 = vmatprep.subr.mxu0 0.0
    %2940 = vmatpush2.msra.mxu0 0.0
    %2941 = vmatprep.subr.mxu0 0.0
    %2942 = vmatpush2.msra.mxu0 0.0
    %2943 = vmatprep.subr.mxu0 0.0
    %2944 = vmatpush2.msra.mxu0 0.0
    %2945 = vmatprep.subr.mxu0 0.0
    %2946 = vmatpush2.msra.mxu0 0.0
    %2947 = vmatprep.subr.mxu0 0.0
    %2948 = vmatpush2.msra.mxu0 0.0
    %2949 = vmatprep.subr.mxu0 0.0
    %2950 = vmatpush2.msra.mxu0 0.0
    %2951 = vmatprep.mubr.f32.mxu0 0.0
    %2952 = vmatmul.mubr.f32.gmra.mxu0 %v2885
    %v2953 = vpop.f32.mrf.mxu0
    %v2954 = vadd.f32 0.0, %v2953
    %v2955 = vpop.f32.mrf.mxu0
    %2956 = vdwg.mxu0
    %v2957 = vadd.f32 %v2186, %v2954
    %v2958 = vxor.u32 %v2957, 2147483648
    %v2959 = vmul.f32 %v2958, 1.442695
    %v2960 = vpow.pop %v2959
    %v2961 = vadd.f32 %v2960, 1.0
    %v2962 = vrcp.pop %v2961
    %v2963 = vmul.f32 1.0, %v2962
    %v2964 = vtanh.pop %v2957
    %v2965 = vmul.f32 %v2963, %v2875
    %2967 = vrot.lane.b32.xlu0 %v2964, 64
    %v2968 = vpop.permute.xlu0 %2967
    %v2970 = vmul.f32 %v2963, %v2968
    %2972 = vrot.lane.b32.xlu0 %v2970, 32
    %v2973 = vpop.permute.xlu0 %2972
    %v2975 = vadd.f32 %v2965, %v2973
    %v2976 = vtanh.pop %v2975
    %2978 = vrot.lane.b32.xlu0 %v2976, 64
    %v2979 = vpop.permute.xlu0 %2978
    %v2981 = vmul.f32 %v2963, %v2979
    %2982 = vmatprep.subr.mxu0 0.0
    %2983 = vmatpush1.msra.mxu0 0.0
    %2984 = vmatprep.subr.mxu0 0.0
    %2985 = vmatpush1.msra.mxu0 0.0
    %2986 = vmatprep.subr.mxu0 0.0
    %2987 = vmatpush1.msra.mxu0 0.0
    %2988 = vmatprep.subr.mxu0 0.0
    %2989 = vmatpush1.msra.mxu0 0.0
    %2990 = vmatprep.subr.mxu0 0.0
    %2991 = vmatpush1.msra.mxu0 0.0
    %2992 = vmatprep.subr.mxu0 0.0
    %2993 = vmatpush1.msra.mxu0 0.0
    %2994 = vmatprep.subr.mxu0 0.0
    %2995 = vmatpush1.msra.mxu0 0.0
    %2996 = vmatprep.subr.mxu0 0.0
    %2997 = vmatpush1.msra.mxu0 0.0
    %2998 = vmatprep.subr.mxu0 0.0
    %2999 = vmatpush1.msra.mxu0 0.0
    %3000 = vmatprep.subr.mxu0 0.0
    %3001 = vmatpush1.msra.mxu0 0.0
    %3002 = vmatprep.subr.mxu0 0.0
    %3003 = vmatpush1.msra.mxu0 0.0
    %3004 = vmatprep.subr.mxu0 0.0
    %3005 = vmatpush1.msra.mxu0 0.0
    %3006 = vmatprep.subr.mxu0 0.0
    %3007 = vmatpush1.msra.mxu0 %v1934
    %3008 = vmatprep.subr.mxu0 0.0
    %3009 = vmatpush1.msra.mxu0 %v1933
    %3010 = vmatprep.subr.mxu0 0.0
    %3011 = vmatpush1.msra.mxu0 %v1932
    %3012 = vmatprep.subr.mxu0 0.0
    %3013 = vmatpush1.msra.mxu0 %v1931
    %3014 = vmatprep.subr.mxu0 0.0
    %3015 = vmatpush2.msra.mxu0 0.0
    %3016 = vmatprep.subr.mxu0 0.0
    %3017 = vmatpush2.msra.mxu0 0.0
    %3018 = vmatprep.subr.mxu0 0.0
    %3019 = vmatpush2.msra.mxu0 0.0
    %3020 = vmatprep.subr.mxu0 0.0
    %3021 = vmatpush2.msra.mxu0 0.0
    %3022 = vmatprep.subr.mxu0 0.0
    %3023 = vmatpush2.msra.mxu0 0.0
    %3024 = vmatprep.subr.mxu0 0.0
    %3025 = vmatpush2.msra.mxu0 0.0
    %3026 = vmatprep.subr.mxu0 0.0
    %3027 = vmatpush2.msra.mxu0 0.0
    %3028 = vmatprep.subr.mxu0 0.0
    %3029 = vmatpush2.msra.mxu0 0.0
    %3030 = vmatprep.subr.mxu0 0.0
    %3031 = vmatpush2.msra.mxu0 0.0
    %3032 = vmatprep.subr.mxu0 0.0
    %3033 = vmatpush2.msra.mxu0 0.0
    %3034 = vmatprep.subr.mxu0 0.0
    %3035 = vmatpush2.msra.mxu0 0.0
    %3036 = vmatprep.subr.mxu0 0.0
    %3037 = vmatpush2.msra.mxu0 0.0
    %3038 = vmatprep.subr.mxu0 0.0
    %3039 = vmatpush2.msra.mxu0 0.0
    %3040 = vmatprep.subr.mxu0 0.0
    %3041 = vmatpush2.msra.mxu0 0.0
    %3042 = vmatprep.subr.mxu0 0.0
    %3043 = vmatpush2.msra.mxu0 0.0
    %3044 = vmatprep.subr.mxu0 0.0
    %3045 = vmatpush2.msra.mxu0 0.0
    %3046 = vmatprep.mubr.f32.mxu0 0.0
    %3047 = vmatmul.mubr.f32.gmra.mxu0 %v1948
    %v3048 = vpop.f32.mrf.mxu0
    %v3049 = vadd.f32 0.0, %v3048
    %v3050 = vpop.f32.mrf.mxu0
    %3051 = vdwg.mxu0
    %v3053 = vlaneseq
    %v3054 = vshrl.u32 %v3053, 7
    %v3055 = vsub.s32 0, %v3054
    %v3056 = vrot.slane %v1944, %v3055
    %v3058 = vadd.f32 %v3056, %v3049
    %3059 = vmatprep.subr.mxu0 0.0
    %3060 = vmatpush1.msra.mxu0 0.0
    %3061 = vmatprep.subr.mxu0 0.0
    %3062 = vmatpush1.msra.mxu0 0.0
    %3063 = vmatprep.subr.mxu0 0.0
    %3064 = vmatpush1.msra.mxu0 0.0
    %3065 = vmatprep.subr.mxu0 0.0
    %3066 = vmatpush1.msra.mxu0 0.0
    %3067 = vmatprep.subr.mxu0 0.0
    %3068 = vmatpush1.msra.mxu0 0.0
    %3069 = vmatprep.subr.mxu0 0.0
    %3070 = vmatpush1.msra.mxu0 0.0
    %3071 = vmatprep.subr.mxu0 0.0
    %3072 = vmatpush1.msra.mxu0 0.0
    %3073 = vmatprep.subr.mxu0 0.0
    %3074 = vmatpush1.msra.mxu0 0.0
    %3075 = vmatprep.subr.mxu0 0.0
    %3076 = vmatpush1.msra.mxu0 0.0
    %3077 = vmatprep.subr.mxu0 0.0
    %3078 = vmatpush1.msra.mxu0 0.0
    %3079 = vmatprep.subr.mxu0 0.0
    %3080 = vmatpush1.msra.mxu0 0.0
    %3081 = vmatprep.subr.mxu0 0.0
    %3082 = vmatpush1.msra.mxu0 0.0
    %3083 = vmatprep.subr.mxu0 0.0
    %3084 = vmatpush1.msra.mxu0 %v1938
    %3085 = vmatprep.subr.mxu0 0.0
    %3086 = vmatpush1.msra.mxu0 %v1937
    %3087 = vmatprep.subr.mxu0 0.0
    %3088 = vmatpush1.msra.mxu0 %v1936
    %3089 = vmatprep.subr.mxu0 0.0
    %3090 = vmatpush1.msra.mxu0 %v1935
    %3091 = vmatprep.subr.mxu0 0.0
    %3092 = vmatpush2.msra.mxu0 0.0
    %3093 = vmatprep.subr.mxu0 0.0
    %3094 = vmatpush2.msra.mxu0 0.0
    %3095 = vmatprep.subr.mxu0 0.0
    %3096 = vmatpush2.msra.mxu0 0.0
    %3097 = vmatprep.subr.mxu0 0.0
    %3098 = vmatpush2.msra.mxu0 0.0
    %3099 = vmatprep.subr.mxu0 0.0
    %3100 = vmatpush2.msra.mxu0 0.0
    %3101 = vmatprep.subr.mxu0 0.0
    %3102 = vmatpush2.msra.mxu0 0.0
    %3103 = vmatprep.subr.mxu0 0.0
    %3104 = vmatpush2.msra.mxu0 0.0
    %3105 = vmatprep.subr.mxu0 0.0
    %3106 = vmatpush2.msra.mxu0 0.0
    %3107 = vmatprep.subr.mxu0 0.0
    %3108 = vmatpush2.msra.mxu0 0.0
    %3109 = vmatprep.subr.mxu0 0.0
    %3110 = vmatpush2.msra.mxu0 0.0
    %3111 = vmatprep.subr.mxu0 0.0
    %3112 = vmatpush2.msra.mxu0 0.0
    %3113 = vmatprep.subr.mxu0 0.0
    %3114 = vmatpush2.msra.mxu0 0.0
    %3115 = vmatprep.subr.mxu0 0.0
    %3116 = vmatpush2.msra.mxu0 0.0
    %3117 = vmatprep.subr.mxu0 0.0
    %3118 = vmatpush2.msra.mxu0 0.0
    %3119 = vmatprep.subr.mxu0 0.0
    %3120 = vmatpush2.msra.mxu0 0.0
    %3121 = vmatprep.subr.mxu0 0.0
    %3122 = vmatpush2.msra.mxu0 0.0
    %3123 = vmatprep.mubr.f32.mxu0 0.0
    %3124 = vmatmul.mubr.f32.gmra.mxu0 %v1226
    %v3125 = vpop.f32.mrf.mxu0
    %v3126 = vadd.f32 0.0, %v3125
    %v3127 = vpop.f32.mrf.mxu0
    %3128 = vdwg.mxu0
    %v3129 = vadd.f32 %v3058, %v3126
    %v3130 = vxor.u32 %v3129, 2147483648
    %v3131 = vmul.f32 %v3130, 1.442695
    %v3132 = vpow.pop %v3131
    %v3133 = vadd.f32 %v3132, 1.0
    %v3134 = vrcp.pop %v3133
    %v3135 = vmul.f32 1.0, %v3134
    %v3136 = vtanh.pop %v3129
    %v3137 = vmul.f32 %v3135, 0.0
    %3139 = vrot.lane.b32.xlu0 %v3136, 64
    %v3140 = vpop.permute.xlu0 %3139
    %v3142 = vmul.f32 %v3135, %v3140
    %3144 = vrot.lane.b32.xlu0 %v3142, 32
    %v3145 = vpop.permute.xlu0 %3144
    %v3147 = vadd.f32 %v3137, %v3145
    %v3148 = vtanh.pop %v3147
    %3150 = vrot.lane.b32.xlu0 %v3148, 64
    %v3151 = vpop.permute.xlu0 %3150
    %v3153 = vmul.f32 %v3135, %v3151
    %v3154 = vld [vmem:[%s7] sm:$0xff]
    %v3155 = vld [vmem:[%s7 + $0x8] sm:$0xff]
    %v3156 = vld [vmem:[%s7 + $0x10] sm:$0xff]
    %v3157 = vld [vmem:[%s7 + $0x18] sm:$0xff]
    %v3158 = vld [vmem:[%s7 + $0x20] sm:$0xff]
    %v3159 = vld [vmem:[%s7 + $0x28] sm:$0xff]
    %v3160 = vld [vmem:[%s7 + $0x30] sm:$0xff]
    %v3161 = vld [vmem:[%s7 + $0x38] sm:$0xff]
    %3163 = vrot.lane.b32.xlu0 %v3153, 32
    %v3164 = vpop.permute.xlu0 %3163
    %v3165 = vsel %vm207, %v3164, 0
    %3167 = vmatprep.subr.mxu0 0.0
    %3168 = vmatpush1.msra.mxu0 0.0
    %3169 = vmatprep.subr.mxu0 0.0
    %3170 = vmatpush1.msra.mxu0 0.0
    %3171 = vmatprep.subr.mxu0 0.0
    %3172 = vmatpush1.msra.mxu0 0.0
    %3173 = vmatprep.subr.mxu0 0.0
    %3174 = vmatpush1.msra.mxu0 0.0
    %3175 = vmatprep.subr.mxu0 0.0
    %3176 = vmatpush1.msra.mxu0 0.0
    %3177 = vmatprep.subr.mxu0 0.0
    %3178 = vmatpush1.msra.mxu0 0.0
    %3179 = vmatprep.subr.mxu0 0.0
    %3180 = vmatpush1.msra.mxu0 0.0
    %3181 = vmatprep.subr.mxu0 0.0
    %3182 = vmatpush1.msra.mxu0 0.0
    %3183 = vmatprep.subr.mxu0 0.0
    %3184 = vmatpush1.msra.mxu0 0.0
    %3185 = vmatprep.subr.mxu0 0.0
    %3186 = vmatpush1.msra.mxu0 0.0
    %3187 = vmatprep.subr.mxu0 0.0
    %3188 = vmatpush1.msra.mxu0 0.0
    %3189 = vmatprep.subr.mxu0 0.0
    %3190 = vmatpush1.msra.mxu0 0.0
    %3191 = vmatprep.subr.mxu0 0.0
    %3192 = vmatpush1.msra.mxu0 %v3161
    %3193 = vmatprep.subr.mxu0 0.0
    %3194 = vmatpush1.msra.mxu0 %v3160
    %3195 = vmatprep.subr.mxu0 0.0
    %3196 = vmatpush1.msra.mxu0 %v3159
    %3197 = vmatprep.subr.mxu0 0.0
    %3198 = vmatpush1.msra.mxu0 %v3158
    %3199 = vmatprep.subr.mxu0 0.0
    %3200 = vmatpush2.msra.mxu0 0.0
    %3201 = vmatprep.subr.mxu0 0.0
    %3202 = vmatpush2.msra.mxu0 0.0
    %3203 = vmatprep.subr.mxu0 0.0
    %3204 = vmatpush2.msra.mxu0 0.0
    %3205 = vmatprep.subr.mxu0 0.0
    %3206 = vmatpush2.msra.mxu0 0.0
    %3207 = vmatprep.subr.mxu0 0.0
    %3208 = vmatpush2.msra.mxu0 0.0
    %3209 = vmatprep.subr.mxu0 0.0
    %3210 = vmatpush2.msra.mxu0 0.0
    %3211 = vmatprep.subr.mxu0 0.0
    %3212 = vmatpush2.msra.mxu0 0.0
    %3213 = vmatprep.subr.mxu0 0.0
    %3214 = vmatpush2.msra.mxu0 0.0
    %3215 = vmatprep.subr.mxu0 0.0
    %3216 = vmatpush2.msra.mxu0 0.0
    %3217 = vmatprep.subr.mxu0 0.0
    %3218 = vmatpush2.msra.mxu0 0.0
    %3219 = vmatprep.subr.mxu0 0.0
    %3220 = vmatpush2.msra.mxu0 0.0
    %3221 = vmatprep.subr.mxu0 0.0
    %3222 = vmatpush2.msra.mxu0 0.0
    %3223 = vmatprep.subr.mxu0 0.0
    %3224 = vmatpush2.msra.mxu0 0.0
    %3225 = vmatprep.subr.mxu0 0.0
    %3226 = vmatpush2.msra.mxu0 0.0
    %3227 = vmatprep.subr.mxu0 0.0
    %3228 = vmatpush2.msra.mxu0 0.0
    %3229 = vmatprep.subr.mxu0 0.0
    %3230 = vmatpush2.msra.mxu0 0.0
    %3231 = vmatprep.mubr.f32.mxu0 0.0
    %3232 = vmatmul.mubr.f32.gmra.mxu0 %v3165
    %v3233 = vpop.f32.mrf.mxu0
    %v3234 = vadd.f32 0.0, %v3233
    %v3235 = vpop.f32.mrf.mxu0
    %3236 = vdwg.mxu0
    %3238 = vrot.lane.b32.xlu0 %v2981, 32
    %v3239 = vpop.permute.xlu0 %3238
    %v3240 = vsel %vm207, %v3239, 0
    %3242 = vmatprep.subr.mxu0 0.0
    %3243 = vmatpush1.msra.mxu0 0.0
    %3244 = vmatprep.subr.mxu0 0.0
    %3245 = vmatpush1.msra.mxu0 0.0
    %3246 = vmatprep.subr.mxu0 0.0
    %3247 = vmatpush1.msra.mxu0 0.0
    %3248 = vmatprep.subr.mxu0 0.0
    %3249 = vmatpush1.msra.mxu0 0.0
    %3250 = vmatprep.subr.mxu0 0.0
    %3251 = vmatpush1.msra.mxu0 0.0
    %3252 = vmatprep.subr.mxu0 0.0
    %3253 = vmatpush1.msra.mxu0 0.0
    %3254 = vmatprep.subr.mxu0 0.0
    %3255 = vmatpush1.msra.mxu0 0.0
    %3256 = vmatprep.subr.mxu0 0.0
    %3257 = vmatpush1.msra.mxu0 0.0
    %3258 = vmatprep.subr.mxu0 0.0
    %3259 = vmatpush1.msra.mxu0 0.0
    %3260 = vmatprep.subr.mxu0 0.0
    %3261 = vmatpush1.msra.mxu0 0.0
    %3262 = vmatprep.subr.mxu0 0.0
    %3263 = vmatpush1.msra.mxu0 0.0
    %3264 = vmatprep.subr.mxu0 0.0
    %3265 = vmatpush1.msra.mxu0 0.0
    %3266 = vmatprep.subr.mxu0 0.0
    %3267 = vmatpush1.msra.mxu0 %v3157
    %3268 = vmatprep.subr.mxu0 0.0
    %3269 = vmatpush1.msra.mxu0 %v3156
    %3270 = vmatprep.subr.mxu0 0.0
    %3271 = vmatpush1.msra.mxu0 %v3155
    %3272 = vmatprep.subr.mxu0 0.0
    %3273 = vmatpush1.msra.mxu0 %v3154
    %3274 = vmatprep.subr.mxu0 0.0
    %3275 = vmatpush2.msra.mxu0 0.0
    %3276 = vmatprep.subr.mxu0 0.0
    %3277 = vmatpush2.msra.mxu0 0.0
    %3278 = vmatprep.subr.mxu0 0.0
    %3279 = vmatpush2.msra.mxu0 0.0
    %3280 = vmatprep.subr.mxu0 0.0
    %3281 = vmatpush2.msra.mxu0 0.0
    %3282 = vmatprep.subr.mxu0 0.0
    %3283 = vmatpush2.msra.mxu0 0.0
    %3284 = vmatprep.subr.mxu0 0.0
    %3285 = vmatpush2.msra.mxu0 0.0
    %3286 = vmatprep.subr.mxu0 0.0
    %3287 = vmatpush2.msra.mxu0 0.0
    %3288 = vmatprep.subr.mxu0 0.0
    %3289 = vmatpush2.msra.mxu0 0.0
    %3290 = vmatprep.subr.mxu0 0.0
    %3291 = vmatpush2.msra.mxu0 0.0
    %3292 = vmatprep.subr.mxu0 0.0
    %3293 = vmatpush2.msra.mxu0 0.0
    %3294 = vmatprep.subr.mxu0 0.0
    %3295 = vmatpush2.msra.mxu0 0.0
    %3296 = vmatprep.subr.mxu0 0.0
    %3297 = vmatpush2.msra.mxu0 0.0
    %3298 = vmatprep.subr.mxu0 0.0
    %3299 = vmatpush2.msra.mxu0 0.0
    %3300 = vmatprep.subr.mxu0 0.0
    %3301 = vmatpush2.msra.mxu0 0.0
    %3302 = vmatprep.subr.mxu0 0.0
    %3303 = vmatpush2.msra.mxu0 0.0
    %3304 = vmatprep.subr.mxu0 0.0
    %3305 = vmatpush2.msra.mxu0 0.0
    %3306 = vmatprep.mubr.f32.mxu0 0.0
    %3307 = vmatmul.mubr.f32.gmra.mxu0 %v3240
    %v3308 = vpop.f32.mrf.mxu0
    %v3309 = vadd.f32 %v3234, %v3308
    %v3310 = vpop.f32.mrf.mxu0
    %3311 = vdwg.mxu0
    %v3312 = vld [vmem:[%s8] sm:$0x1]
    %v3314 = vlaneseq
    %v3315 = vshrl.u32 %v3314, 7
    %v3316 = vsub.s32 0, %v3315
    %v3317 = vrot.slane %v3312, %v3316
    %v3319 = vadd.f32 %v3309, %v3317
    %vm3320 = vcmask 80896
    %3321 = vst.msk [vmem:[#allocation2] sm:$0xff] %vm3320, %v3319
    // Predicated region
    $region38: #{tpu_custom_call.1} parent=1 // pred_check
      _
    $region39: #{tpu_custom_call.1} parent=1 // pred_check_branch
      %3323 = sbr.rel (0) target = $region41
    $region40: #{tpu_custom_call.1} parent=1 // pred_region
      %s3325 = ssub.s32 128, 128
      %3326 = vsyncadd [#allocation3], %s3325
      %s3328 = sshll.u32 [#allocation2], 4
      %s3329 = int_to_ptr.vmem [resolvable:$true] %s3328
      %3331 = dma.vmem_to_hbm [thread:$0]  %s3329, 128, %s9, [#allocation3]
    $region41: #{tpu_custom_call.1} parent=1 // pred_fallthru
      _
    // Predicated region
    $region42: #{tpu_custom_call.1} parent=1 // pred_check
      _
    $region43: #{tpu_custom_call.1} parent=1 // pred_check_branch
      %3333 = sbr.rel (0) target = $region45
    $region44: #{tpu_custom_call.1} parent=1 // pred_region
      %3334 = dma.done [#allocation3], 128
    $region45: #{tpu_custom_call.1} parent=1 // pred_fallthru
      _
    %3335 = vsyncpa [#allocation3], 1

</llo_original>
